<compile_context>
chip_gen: v6e
topology: v6e:2x2x1
jax: 0.10.0
libtpu: 0.0.40
codegen_flags: <defaults>
</compile_context>

<pallas_src>
import functools

import jax
import jax.numpy as jnp
import numpy as np
from jax.experimental import pallas as pl
from jax.experimental.pallas import tpu as pltpu


def _fused_kernel(x_ref, w1_ref, b1_ref, w2_ref, b2_ref,
                  o1_ref, o2_ref,
                  xpad_ref, bp0_ref, bp1_ref, bp2_ref, bp3_ref,
                  *, H, W, C1, C2):
    # x_ref   : [1, H, W, C1]      f32  NHWC input tile
    # w1_ref  : [9*C1, C1]         bf16 conv1 im2col slab, out-channels in (i,j,c) order
    # b1_ref  : [1, C1]            f32  conv1 bias, same permutation
    # w2_ref  : [9*C2, C2]         bf16 conv2 im2col slab
    # b2_ref  : [1, C2]            f32
    # o1_ref  : [1, H*W, C1]       f32  conv1 output slab (lane-dense, 256 lanes)
    # o2_ref  : [1, H*W, 4*C2]     f32  conv2 output slab (lane-dense, 256 lanes)
    # xpad_ref: [H+2, 2*W, C1]     f32  zero-padded conv1 input (halo built in-kernel)
    # bpK_ref : [H+2, 2*W, C2]     f32  parity slab K of the (virtually shuffled) conv1 out
    f32 = jnp.float32
    bp = (bp0_ref, bp1_ref, bp2_ref, bp3_ref)

    # ---- in-kernel zero padding of the conv1 input (no jnp.pad in the wrapper) ----
    xpad_ref[...] = jnp.zeros(xpad_ref.shape, xpad_ref.dtype)
    xpad_ref[1:H + 1, 1:W + 1, :] = x_ref[0]

    # ---- conv1: single im2col matmul, K = 9*C1 ----
    taps1 = []
    for dy in range(3):
        for dx in range(3):
            t = xpad_ref[dy:dy + H, dx:dx + W, :]              # [H, W, C1]
            taps1.append(t.reshape(H * W, C1))
    p1 = jnp.concatenate(taps1, axis=1).astype(w1_ref.dtype)   # [H*W, 9*C1] bf16
    y1 = jnp.dot(p1, w1_ref[...], preferred_element_type=f32)  # [H*W, C1] f32
    y1 = y1 + b1_ref[...]
    o1_ref[0] = y1.astype(o1_ref.dtype)                        # lane-dense store

    # ---- PixelShuffle(2): with the permuted conv1 weights, column block (2i+j)
    # of y1 IS the parity-(i,j) sub-image of the shuffled 2H x 2W intermediate.
    # Scatter the 4 blocks into zero-padded VMEM slabs (halo for conv2's padding).
    for ij in range(4):
        bp[ij][...] = jnp.zeros(bp[ij].shape, bp[ij].dtype)
        blk = y1[:, ij * C2:(ij + 1) * C2].reshape(H, W, C2)
        bp[ij][1:H + 1, 1:W + 1, :] = blk

    # ---- conv2 on the shuffled image, decomposed by output parity (p, q):
    # shuffled row 2u+p+dy-1 = 2*(u+ay) + iy with iy=(p+dy-1)%2, ay=(p+dy-1)//2,
    # i.e. parity slab iy shifted by ay rows (same for columns). All 4 classes are
    # stacked along M and done in one matmul: M = 4*H*W, K = 9*C2.
    patches = []
    for p in range(2):
        for q in range(2):
            taps2 = []
            for dy in range(3):
                sy = p + dy - 1
                iy, ay = sy % 2, sy // 2
                for dx in range(3):
                    sx = q + dx - 1
                    jx, bx = sx % 2, sx // 2
                    t = bp[2 * iy + jx][1 + ay:1 + ay + H, 1 + bx:1 + bx + W, :]
                    taps2.append(t.reshape(H * W, C2))
            patches.append(jnp.concatenate(taps2, axis=1))     # [H*W, 9*C2]
    pm2 = jnp.concatenate(patches, axis=0).astype(w2_ref.dtype)  # [4*H*W, 9*C2] bf16
    y2 = jnp.dot(pm2, w2_ref[...], preferred_element_type=f32)   # [4*H*W, C2] f32
    y2 = y2 + b2_ref[...]

    # Regroup the 4 parity classes from rows into lanes so the store is lane-dense
    # (4*C2 = 256 lanes): o2[u*W+v, (2p+q)*C2 + c] = conv2_out[2u+p, 2v+q, c].
    o2_ref[0] = jnp.concatenate(
        [y2[k * H * W:(k + 1) * H * W, :] for k in range(4)], axis=1
    ).astype(o2_ref.dtype)


def first_layer_4(x, w1, b1, w2, b2):
    """Fused Pallas implementation of firstLayer_4.forward (NCHW in / NCHW out)."""
    N, C1, H, W = x.shape
    C2 = C1 // 4
    assert C1 == w1.shape[0] == w1.shape[1]
    assert w2.shape[0] == w2.shape[1] == C2 == 64  # module hardcodes the 64-ch conv
    bf16 = jnp.bfloat16

    # conv1 OIHW -> im2col slab [9*C1, C1], output channels permuted to pixel-shuffle
    # order (i, j, c): new_out = (2i+j)*C2 + c  <-  old_out = 4c + 2i + j.
    w1_p = jnp.transpose(w1.reshape(C2, 2, 2, C1, 3, 3),
                         (1, 2, 0, 3, 4, 5)).reshape(C1, C1, 3, 3)
    w1_slab = jnp.transpose(w1_p, (2, 3, 1, 0)).reshape(9 * C1, C1).astype(bf16)
    b1_p = jnp.transpose(b1.reshape(C2, 2, 2), (1, 2, 0)).reshape(1, C1)

    w2_slab = jnp.transpose(w2, (2, 3, 1, 0)).reshape(9 * C2, C2).astype(bf16)
    b2_p = b2.reshape(1, C2)

    x_nhwc = jnp.transpose(x, (0, 2, 3, 1))  # single NCHW -> NHWC entry transpose

    kernel = functools.partial(_fused_kernel, H=H, W=W, C1=C1, C2=C2)
    o1_slab, o2_slab = pl.pallas_call(
        kernel,
        out_shape=(jax.ShapeDtypeStruct((N, H * W, C1), x.dtype),
                   jax.ShapeDtypeStruct((N, H * W, 4 * C2), x.dtype)),
        grid_spec=pltpu.PrefetchScalarGridSpec(
            num_scalar_prefetch=0,
            grid=(N,),
            in_specs=[
                pl.BlockSpec((1, H, W, C1), lambda n: (n, 0, 0, 0)),
                pl.BlockSpec((9 * C1, C1), lambda n: (0, 0)),
                pl.BlockSpec((1, C1), lambda n: (0, 0)),
                pl.BlockSpec((9 * C2, C2), lambda n: (0, 0)),
                pl.BlockSpec((1, C2), lambda n: (0, 0)),
            ],
            out_specs=[
                pl.BlockSpec((1, H * W, C1), lambda n: (n, 0, 0)),
                pl.BlockSpec((1, H * W, 4 * C2), lambda n: (n, 0, 0)),
            ],
            scratch_shapes=[
                pltpu.VMEM((H + 2, 2 * W, C1), jnp.float32),   # padded conv1 input
                pltpu.VMEM((H + 2, 2 * W, C2), jnp.float32),   # parity slab (0,0)
                pltpu.VMEM((H + 2, 2 * W, C2), jnp.float32),   # parity slab (0,1)
                pltpu.VMEM((H + 2, 2 * W, C2), jnp.float32),   # parity slab (1,0)
                pltpu.VMEM((H + 2, 2 * W, C2), jnp.float32),   # parity slab (1,1)
            ],
        ),
        # TODO(synk): on v7x (2 TensorCores) add a second "parallel" grid axis
        # (e.g. split conv2's parity classes) to engage the second core.
        compiler_params=pltpu.CompilerParams(dimension_semantics=("parallel",)),
    )(x_nhwc, w1_slab, b1_p, w2_slab, b2_p)

    # Final layout plumbing outside the kernel (on lane-dense slabs):
    # out1[n, c, 2h+i, 2w+j] = o1_slab[n, h*W+w, (2i+j)*C2 + c]
    out1 = o1_slab.reshape(N, H, W, 2, 2, C2)
    out1 = jnp.transpose(out1, (0, 5, 1, 3, 2, 4)).reshape(N, C2, 2 * H, 2 * W)

    # out2[n, cc, 4u+2p+i2, 4v+2q+j2] = o2_slab[n, u*W+v, (2p+q)*C2 + 4cc + 2i2 + j2]
    C3 = C2 // 4
    out2 = o2_slab.reshape(N, H, W, 2, 2, C3, 2, 2)
    out2 = jnp.transpose(out2, (0, 5, 1, 3, 6, 2, 4, 7)).reshape(N, C3, 4 * H, 4 * W)

    return [x, out1, out2]


# ---------------- pure-JAX reference (same precision policy) ----------------

def _pixel_shuffle_ref(x_nchw, r):
    N, C, Hh, Ww = x_nchw.shape
    Co = C // (r * r)
    y = x_nchw.reshape(N, Co, r, r, Hh, Ww)
    y = jnp.transpose(y, (0, 1, 4, 2, 5, 3))
    return y.reshape(N, Co, Hh * r, Ww * r)


def _conv_ref(x, w, b):
    # 3x3 "same" conv, stride 1, with the SAME precision policy as the kernel:
    # bf16 operands, f32 accumulation (bf16 is an explicitly requested TPU opt).
    N, C, Hh, Ww = x.shape
    xp = jnp.pad(x, ((0, 0), (0, 0), (1, 1), (1, 1))).astype(jnp.bfloat16)
    wb = w.astype(jnp.bfloat16)
    acc = jnp.zeros((N, w.shape[0], Hh, Ww), jnp.float32)
    for dy in range(3):
        for dx in range(3):
            patch = xp[:, :, dy:dy + Hh, dx:dx + Ww]
            acc = acc + jnp.einsum('nchw,oc->nohw', patch, wb[:, :, dy, dx],
                                   preferred_element_type=jnp.float32)
    return acc + b.reshape(1, -1, 1, 1)


if __name__ == "__main__":
    n_feats = 256          # PixelShuffle(2) -> n_feats//4 == 64 must match hardcoded conv2
    N, H, W = 2, 8, 8

    key = jax.random.PRNGKey(0)
    k1, k2, k3, k4, kx = jax.random.split(key, 5)

    w1 = jax.random.normal(k1, (n_feats, n_feats, 3, 3), jnp.float32) * 0.02
    b1 = jax.random.normal(k2, (n_feats,), jnp.float32) * 0.02
    w2 = jax.random.normal(k3, (64, 64, 3, 3), jnp.float32) * 0.02
    b2 = jax.random.normal(k4, (64,), jnp.float32) * 0.02
    x = jax.random.normal(kx, (N, n_feats, H, W), jnp.float32)

    outs = jax.jit(first_layer_4)(x, w1, b1, w2, b2)
    outs = [jax.block_until_ready(o) for o in outs]

    assert outs[0].shape == (N, n_feats, H, W)
    assert outs[1].shape == (N, 64, 2 * H, 2 * W)
    assert outs[2].shape == (N, 16, 4 * H, 4 * W)

    ref1 = _pixel_shuffle_ref(_conv_ref(x, w1, b1), 2)
    ref2 = _pixel_shuffle_ref(_conv_ref(ref1, w2, b2), 2)
    np.testing.assert_allclose(np.asarray(outs[0]), np.asarray(x), atol=0, rtol=0)
    np.testing.assert_allclose(np.asarray(outs[1]), np.asarray(ref1), atol=2e-3, rtol=2e-3)
    np.testing.assert_allclose(np.asarray(outs[2]), np.asarray(ref2), atol=2e-3, rtol=2e-3)

    print("KERNEL_OK")
</pallas_src>

<mosaic_0001>
module attributes {stable_mosaic.version = 11 : i64} {
  func.func @_fused_kernel(%arg0: i32, %arg1: memref<1x8x8x256xf32, #tpu.memory_space<vmem>>, %arg2: memref<2304x256xbf16, #tpu.memory_space<vmem>>, %arg3: memref<1x256xf32, #tpu.memory_space<vmem>>, %arg4: memref<576x64xbf16, #tpu.memory_space<vmem>>, %arg5: memref<1x64xf32, #tpu.memory_space<vmem>>, %arg6: memref<1x64x256xf32, #tpu.memory_space<vmem>>, %arg7: memref<1x64x256xf32, #tpu.memory_space<vmem>>, %arg8: memref<10x16x256xf32, #tpu.memory_space<vmem>>, %arg9: memref<10x16x64xf32, #tpu.memory_space<vmem>>, %arg10: memref<10x16x64xf32, #tpu.memory_space<vmem>>, %arg11: memref<10x16x64xf32, #tpu.memory_space<vmem>>, %arg12: memref<10x16x64xf32, #tpu.memory_space<vmem>>) attributes {dimension_semantics = [#tpu.dimension_semantics<parallel>], iteration_bounds = array<i64: 2>, scalar_prefetch = 0 : i64, scratch_operands = 5 : i64, tpu.core_type = #tpu.core_type<tc>, window_params = [{transform_indices = @transform_0, window_bounds = array<i64: 1, 8, 8, 256>}, {pipeline_mode = #tpu.pipeline_mode<synchronous>, transform_indices = @transform_1, window_bounds = array<i64: 2304, 256>}, {pipeline_mode = #tpu.pipeline_mode<synchronous>, transform_indices = @transform_2, window_bounds = array<i64: 1, 256>}, {pipeline_mode = #tpu.pipeline_mode<synchronous>, transform_indices = @transform_3, window_bounds = array<i64: 576, 64>}, {pipeline_mode = #tpu.pipeline_mode<synchronous>, transform_indices = @transform_4, window_bounds = array<i64: 1, 64>}, {transform_indices = @transform_5, window_bounds = array<i64: 1, 64, 256>}, {transform_indices = @transform_6, window_bounds = array<i64: 1, 64, 256>}]} {
    %cst = arith.constant 0.000000e+00 : f32
    %0 = vector.broadcast %cst : f32 to vector<10x16x256xf32>
    %c0 = arith.constant 0 : index
    %c0_0 = arith.constant 0 : index
    %c0_1 = arith.constant 0 : index
    %1 = vector.load %arg8[%c0, %c0_0, %c0_1] : memref<10x16x256xf32, #tpu.memory_space<vmem>>, vector<10x16x256xf32>
    tpu.vector_store %arg8[%c0, %c0_0, %c0_1], %0 {strides = array<i32>} : memref<10x16x256xf32, #tpu.memory_space<vmem>>, vector<10x16x256xf32>,
    %c0_2 = arith.constant 0 : index
    %c0_3 = arith.constant 0 : index
    %c0_4 = arith.constant 0 : index
    %c0_5 = arith.constant 0 : index
    %2 = vector.load %arg1[%c0_2, %c0_3, %c0_4, %c0_5] : memref<1x8x8x256xf32, #tpu.memory_space<vmem>>, vector<1x8x8x256xf32>
    %3 = vector.shape_cast %2 : vector<1x8x8x256xf32> to vector<8x8x256xf32>
    %c1 = arith.constant 1 : index
    %c1_6 = arith.constant 1 : index
    %c0_7 = arith.constant 0 : index
    %4 = vector.load %arg8[%c1, %c1_6, %c0_7] : memref<10x16x256xf32, #tpu.memory_space<vmem>>, vector<8x8x256xf32>
    tpu.vector_store %arg8[%c1, %c1_6, %c0_7], %3 {strides = array<i32>} : memref<10x16x256xf32, #tpu.memory_space<vmem>>, vector<8x8x256xf32>,
    %c0_8 = arith.constant 0 : index
    %c0_9 = arith.constant 0 : index
    %c0_10 = arith.constant 0 : index
    %5 = vector.load %arg8[%c0_8, %c0_9, %c0_10] : memref<10x16x256xf32, #tpu.memory_space<vmem>>, vector<8x8x256xf32>
    %6 = vector.shape_cast %5 : vector<8x8x256xf32> to vector<64x256xf32>
    %c0_11 = arith.constant 0 : index
    %c1_12 = arith.constant 1 : index
    %c0_13 = arith.constant 0 : index
    %7 = vector.load %arg8[%c0_11, %c1_12, %c0_13] : memref<10x16x256xf32, #tpu.memory_space<vmem>>, vector<8x8x256xf32>
    %8 = vector.shape_cast %7 : vector<8x8x256xf32> to vector<64x256xf32>
    %c0_14 = arith.constant 0 : index
    %c2 = arith.constant 2 : index
    %c0_15 = arith.constant 0 : index
    %9 = vector.load %arg8[%c0_14, %c2, %c0_15] : memref<10x16x256xf32, #tpu.memory_space<vmem>>, vector<8x8x256xf32>
    %10 = vector.shape_cast %9 : vector<8x8x256xf32> to vector<64x256xf32>
    %c1_16 = arith.constant 1 : index
    %c0_17 = arith.constant 0 : index
    %c0_18 = arith.constant 0 : index
    %11 = vector.load %arg8[%c1_16, %c0_17, %c0_18] : memref<10x16x256xf32, #tpu.memory_space<vmem>>, vector<8x8x256xf32>
    %12 = vector.shape_cast %11 : vector<8x8x256xf32> to vector<64x256xf32>
    %c1_19 = arith.constant 1 : index
    %c1_20 = arith.constant 1 : index
    %c0_21 = arith.constant 0 : index
    %13 = vector.load %arg8[%c1_19, %c1_20, %c0_21] : memref<10x16x256xf32, #tpu.memory_space<vmem>>, vector<8x8x256xf32>
    %14 = vector.shape_cast %13 : vector<8x8x256xf32> to vector<64x256xf32>
    %c1_22 = arith.constant 1 : index
    %c2_23 = arith.constant 2 : index
    %c0_24 = arith.constant 0 : index
    %15 = vector.load %arg8[%c1_22, %c2_23, %c0_24] : memref<10x16x256xf32, #tpu.memory_space<vmem>>, vector<8x8x256xf32>
    %16 = vector.shape_cast %15 : vector<8x8x256xf32> to vector<64x256xf32>
    %c2_25 = arith.constant 2 : index
    %c0_26 = arith.constant 0 : index
    %c0_27 = arith.constant 0 : index
    %17 = vector.load %arg8[%c2_25, %c0_26, %c0_27] : memref<10x16x256xf32, #tpu.memory_space<vmem>>, vector<8x8x256xf32>
    %18 = vector.shape_cast %17 : vector<8x8x256xf32> to vector<64x256xf32>
    %c2_28 = arith.constant 2 : index
    %c1_29 = arith.constant 1 : index
    %c0_30 = arith.constant 0 : index
    %19 = vector.load %arg8[%c2_28, %c1_29, %c0_30] : memref<10x16x256xf32, #tpu.memory_space<vmem>>, vector<8x8x256xf32>
    %20 = vector.shape_cast %19 : vector<8x8x256xf32> to vector<64x256xf32>
    %c2_31 = arith.constant 2 : index
    %c2_32 = arith.constant 2 : index
    %c0_33 = arith.constant 0 : index
    %21 = vector.load %arg8[%c2_31, %c2_32, %c0_33] : memref<10x16x256xf32, #tpu.memory_space<vmem>>, vector<8x8x256xf32>
    %22 = vector.shape_cast %21 : vector<8x8x256xf32> to vector<64x256xf32>
    %23 = tpu.concatenate %6, %8, %10, %12, %14, %16, %18, %20, %22 in 1 : vector<64x256xf32>, vector<64x256xf32>, vector<64x256xf32>, vector<64x256xf32>, vector<64x256xf32>, vector<64x256xf32>, vector<64x256xf32>, vector<64x256xf32>, vector<64x256xf32> -> vector<64x2304xf32>
    %24 = arith.truncf %23 : vector<64x2304xf32> to vector<64x2304xbf16>
    %c0_34 = arith.constant 0 : index
    %c0_35 = arith.constant 0 : index
    %25 = vector.load %arg2[%c0_34, %c0_35] : memref<2304x256xbf16, #tpu.memory_space<vmem>>, vector<2304x256xbf16>
    %cst_36 = arith.constant dense<0.000000e+00> : vector<64x256xf32>
    %26 = tpu.matmul %24, %25, %cst_36 {dimension_numbers = #tpu.dot_dimension_numbers<[1], [0], [0], [1], [0, 0, 1, 1], [], []>} : vector<64x2304xbf16>, vector<2304x256xbf16>, vector<64x256xf32> -> vector<64x256xf32>
    %c0_37 = arith.constant 0 : index
    %c0_38 = arith.constant 0 : index
    %27 = vector.load %arg3[%c0_37, %c0_38] : memref<1x256xf32, #tpu.memory_space<vmem>>, vector<1x256xf32>
    %28 = vector.broadcast %27 : vector<1x256xf32> to vector<64x256xf32>
    %29 = arith.addf %26, %28 : vector<64x256xf32>
    %c0_39 = arith.constant 0 : index
    %c0_40 = arith.constant 0 : index
    %c0_41 = arith.constant 0 : index
    %30 = vector.load %arg6[%c0_39, %c0_40, %c0_41] : memref<1x64x256xf32, #tpu.memory_space<vmem>>, vector<1x64x256xf32>
    %31 = vector.shape_cast %30 : vector<1x64x256xf32> to vector<64x256xf32>
    %32 = vector.shape_cast %29 : vector<64x256xf32> to vector<1x64x256xf32>
    tpu.vector_store %arg6[%c0_39, %c0_40, %c0_41], %32 {strides = array<i32>} : memref<1x64x256xf32, #tpu.memory_space<vmem>>, vector<1x64x256xf32>,
    %cst_42 = arith.constant 0.000000e+00 : f32
    %33 = vector.broadcast %cst_42 : f32 to vector<10x16x64xf32>
    %c0_43 = arith.constant 0 : index
    %c0_44 = arith.constant 0 : index
    %c0_45 = arith.constant 0 : index
    %34 = vector.load %arg9[%c0_43, %c0_44, %c0_45] : memref<10x16x64xf32, #tpu.memory_space<vmem>>, vector<10x16x64xf32>
    tpu.vector_store %arg9[%c0_43, %c0_44, %c0_45], %33 {strides = array<i32>} : memref<10x16x64xf32, #tpu.memory_space<vmem>>, vector<10x16x64xf32>,
    %35 = vector.extract_strided_slice %29 {offsets = [0, 0], sizes = [64, 64], strides = [1, 1]} : vector<64x256xf32> to vector<64x64xf32>
    %36 = vector.shape_cast %35 : vector<64x64xf32> to vector<8x8x64xf32>
    %c1_46 = arith.constant 1 : index
    %c1_47 = arith.constant 1 : index
    %c0_48 = arith.constant 0 : index
    %37 = vector.load %arg9[%c1_46, %c1_47, %c0_48] : memref<10x16x64xf32, #tpu.memory_space<vmem>>, vector<8x8x64xf32>
    tpu.vector_store %arg9[%c1_46, %c1_47, %c0_48], %36 {strides = array<i32>} : memref<10x16x64xf32, #tpu.memory_space<vmem>>, vector<8x8x64xf32>,
    %cst_49 = arith.constant 0.000000e+00 : f32
    %38 = vector.broadcast %cst_49 : f32 to vector<10x16x64xf32>
    %c0_50 = arith.constant 0 : index
    %c0_51 = arith.constant 0 : index
    %c0_52 = arith.constant 0 : index
    %39 = vector.load %arg10[%c0_50, %c0_51, %c0_52] : memref<10x16x64xf32, #tpu.memory_space<vmem>>, vector<10x16x64xf32>
    tpu.vector_store %arg10[%c0_50, %c0_51, %c0_52], %38 {strides = array<i32>} : memref<10x16x64xf32, #tpu.memory_space<vmem>>, vector<10x16x64xf32>,
    %40 = vector.extract_strided_slice %29 {offsets = [0, 64], sizes = [64, 64], strides = [1, 1]} : vector<64x256xf32> to vector<64x64xf32>
    %41 = vector.shape_cast %40 : vector<64x64xf32> to vector<8x8x64xf32>
    %c1_53 = arith.constant 1 : index
    %c1_54 = arith.constant 1 : index
    %c0_55 = arith.constant 0 : index
    %42 = vector.load %arg10[%c1_53, %c1_54, %c0_55] : memref<10x16x64xf32, #tpu.memory_space<vmem>>, vector<8x8x64xf32>
    tpu.vector_store %arg10[%c1_53, %c1_54, %c0_55], %41 {strides = array<i32>} : memref<10x16x64xf32, #tpu.memory_space<vmem>>, vector<8x8x64xf32>,
    %cst_56 = arith.constant 0.000000e+00 : f32
    %43 = vector.broadcast %cst_56 : f32 to vector<10x16x64xf32>
    %c0_57 = arith.constant 0 : index
    %c0_58 = arith.constant 0 : index
    %c0_59 = arith.constant 0 : index
    %44 = vector.load %arg11[%c0_57, %c0_58, %c0_59] : memref<10x16x64xf32, #tpu.memory_space<vmem>>, vector<10x16x64xf32>
    tpu.vector_store %arg11[%c0_57, %c0_58, %c0_59], %43 {strides = array<i32>} : memref<10x16x64xf32, #tpu.memory_space<vmem>>, vector<10x16x64xf32>,
    %45 = vector.extract_strided_slice %29 {offsets = [0, 128], sizes = [64, 64], strides = [1, 1]} : vector<64x256xf32> to vector<64x64xf32>
    %46 = vector.shape_cast %45 : vector<64x64xf32> to vector<8x8x64xf32>
    %c1_60 = arith.constant 1 : index
    %c1_61 = arith.constant 1 : index
    %c0_62 = arith.constant 0 : index
    %47 = vector.load %arg11[%c1_60, %c1_61, %c0_62] : memref<10x16x64xf32, #tpu.memory_space<vmem>>, vector<8x8x64xf32>
    tpu.vector_store %arg11[%c1_60, %c1_61, %c0_62], %46 {strides = array<i32>} : memref<10x16x64xf32, #tpu.memory_space<vmem>>, vector<8x8x64xf32>,
    %cst_63 = arith.constant 0.000000e+00 : f32
    %48 = vector.broadcast %cst_63 : f32 to vector<10x16x64xf32>
    %c0_64 = arith.constant 0 : index
    %c0_65 = arith.constant 0 : index
    %c0_66 = arith.constant 0 : index
    %49 = vector.load %arg12[%c0_64, %c0_65, %c0_66] : memref<10x16x64xf32, #tpu.memory_space<vmem>>, vector<10x16x64xf32>
    tpu.vector_store %arg12[%c0_64, %c0_65, %c0_66], %48 {strides = array<i32>} : memref<10x16x64xf32, #tpu.memory_space<vmem>>, vector<10x16x64xf32>,
    %50 = vector.extract_strided_slice %29 {offsets = [0, 192], sizes = [64, 64], strides = [1, 1]} : vector<64x256xf32> to vector<64x64xf32>
    %51 = vector.shape_cast %50 : vector<64x64xf32> to vector<8x8x64xf32>
    %c1_67 = arith.constant 1 : index
    %c1_68 = arith.constant 1 : index
    %c0_69 = arith.constant 0 : index
    %52 = vector.load %arg12[%c1_67, %c1_68, %c0_69] : memref<10x16x64xf32, #tpu.memory_space<vmem>>, vector<8x8x64xf32>
    tpu.vector_store %arg12[%c1_67, %c1_68, %c0_69], %51 {strides = array<i32>} : memref<10x16x64xf32, #tpu.memory_space<vmem>>, vector<8x8x64xf32>,
    %c0_70 = arith.constant 0 : index
    %c0_71 = arith.constant 0 : index
    %c0_72 = arith.constant 0 : index
    %53 = vector.load %arg12[%c0_70, %c0_71, %c0_72] : memref<10x16x64xf32, #tpu.memory_space<vmem>>, vector<8x8x64xf32>
    %54 = vector.shape_cast %53 : vector<8x8x64xf32> to vector<64x64xf32>
    %c0_73 = arith.constant 0 : index
    %c1_74 = arith.constant 1 : index
    %c0_75 = arith.constant 0 : index
    %55 = vector.load %arg11[%c0_73, %c1_74, %c0_75] : memref<10x16x64xf32, #tpu.memory_space<vmem>>, vector<8x8x64xf32>
    %56 = vector.shape_cast %55 : vector<8x8x64xf32> to vector<64x64xf32>
    %c0_76 = arith.constant 0 : index
    %c1_77 = arith.constant 1 : index
    %c0_78 = arith.constant 0 : index
    %57 = vector.load %arg12[%c0_76, %c1_77, %c0_78] : memref<10x16x64xf32, #tpu.memory_space<vmem>>, vector<8x8x64xf32>
    %58 = vector.shape_cast %57 : vector<8x8x64xf32> to vector<64x64xf32>
    %c1_79 = arith.constant 1 : index
    %c0_80 = arith.constant 0 : index
    %c0_81 = arith.constant 0 : index
    %59 = vector.load %arg10[%c1_79, %c0_80, %c0_81] : memref<10x16x64xf32, #tpu.memory_space<vmem>>, vector<8x8x64xf32>
    %60 = vector.shape_cast %59 : vector<8x8x64xf32> to vector<64x64xf32>
    %c1_82 = arith.constant 1 : index
    %c1_83 = arith.constant 1 : index
    %c0_84 = arith.constant 0 : index
    %61 = vector.load %arg9[%c1_82, %c1_83, %c0_84] : memref<10x16x64xf32, #tpu.memory_space<vmem>>, vector<8x8x64xf32>
    %62 = vector.shape_cast %61 : vector<8x8x64xf32> to vector<64x64xf32>
    %c1_85 = arith.constant 1 : index
    %c1_86 = arith.constant 1 : index
    %c0_87 = arith.constant 0 : index
    %63 = vector.load %arg10[%c1_85, %c1_86, %c0_87] : memref<10x16x64xf32, #tpu.memory_space<vmem>>, vector<8x8x64xf32>
    %64 = vector.shape_cast %63 : vector<8x8x64xf32> to vector<64x64xf32>
    %c1_88 = arith.constant 1 : index
    %c0_89 = arith.constant 0 : index
    %c0_90 = arith.constant 0 : index
    %65 = vector.load %arg12[%c1_88, %c0_89, %c0_90] : memref<10x16x64xf32, #tpu.memory_space<vmem>>, vector<8x8x64xf32>
    %66 = vector.shape_cast %65 : vector<8x8x64xf32> to vector<64x64xf32>
    %c1_91 = arith.constant 1 : index
    %c1_92 = arith.constant 1 : index
    %c0_93 = arith.constant 0 : index
    %67 = vector.load %arg11[%c1_91, %c1_92, %c0_93] : memref<10x16x64xf32, #tpu.memory_space<vmem>>, vector<8x8x64xf32>
    %68 = vector.shape_cast %67 : vector<8x8x64xf32> to vector<64x64xf32>
    %c1_94 = arith.constant 1 : index
    %c1_95 = arith.constant 1 : index
    %c0_96 = arith.constant 0 : index
    %69 = vector.load %arg12[%c1_94, %c1_95, %c0_96] : memref<10x16x64xf32, #tpu.memory_space<vmem>>, vector<8x8x64xf32>
    %70 = vector.shape_cast %69 : vector<8x8x64xf32> to vector<64x64xf32>
    %71 = tpu.concatenate %54, %56, %58, %60, %62, %64, %66, %68, %70 in 1 : vector<64x64xf32>, vector<64x64xf32>, vector<64x64xf32>, vector<64x64xf32>, vector<64x64xf32>, vector<64x64xf32>, vector<64x64xf32>, vector<64x64xf32>, vector<64x64xf32> -> vector<64x576xf32>
    %c0_97 = arith.constant 0 : index
    %c1_98 = arith.constant 1 : index
    %c0_99 = arith.constant 0 : index
    %72 = vector.load %arg11[%c0_97, %c1_98, %c0_99] : memref<10x16x64xf32, #tpu.memory_space<vmem>>, vector<8x8x64xf32>
    %73 = vector.shape_cast %72 : vector<8x8x64xf32> to vector<64x64xf32>
    %c0_100 = arith.constant 0 : index
    %c1_101 = arith.constant 1 : index
    %c0_102 = arith.constant 0 : index
    %74 = vector.load %arg12[%c0_100, %c1_101, %c0_102] : memref<10x16x64xf32, #tpu.memory_space<vmem>>, vector<8x8x64xf32>
    %75 = vector.shape_cast %74 : vector<8x8x64xf32> to vector<64x64xf32>
    %c0_103 = arith.constant 0 : index
    %c2_104 = arith.constant 2 : index
    %c0_105 = arith.constant 0 : index
    %76 = vector.load %arg11[%c0_103, %c2_104, %c0_105] : memref<10x16x64xf32, #tpu.memory_space<vmem>>, vector<8x8x64xf32>
    %77 = vector.shape_cast %76 : vector<8x8x64xf32> to vector<64x64xf32>
    %c1_106 = arith.constant 1 : index
    %c1_107 = arith.constant 1 : index
    %c0_108 = arith.constant 0 : index
    %78 = vector.load %arg9[%c1_106, %c1_107, %c0_108] : memref<10x16x64xf32, #tpu.memory_space<vmem>>, vector<8x8x64xf32>
    %79 = vector.shape_cast %78 : vector<8x8x64xf32> to vector<64x64xf32>
    %c1_109 = arith.constant 1 : index
    %c1_110 = arith.constant 1 : index
    %c0_111 = arith.constant 0 : index
    %80 = vector.load %arg10[%c1_109, %c1_110, %c0_111] : memref<10x16x64xf32, #tpu.memory_space<vmem>>, vector<8x8x64xf32>
    %81 = vector.shape_cast %80 : vector<8x8x64xf32> to vector<64x64xf32>
    %c1_112 = arith.constant 1 : index
    %c2_113 = arith.constant 2 : index
    %c0_114 = arith.constant 0 : index
    %82 = vector.load %arg9[%c1_112, %c2_113, %c0_114] : memref<10x16x64xf32, #tpu.memory_space<vmem>>, vector<8x8x64xf32>
    %83 = vector.shape_cast %82 : vector<8x8x64xf32> to vector<64x64xf32>
    %c1_115 = arith.constant 1 : index
    %c1_116 = arith.constant 1 : index
    %c0_117 = arith.constant 0 : index
    %84 = vector.load %arg11[%c1_115, %c1_116, %c0_117] : memref<10x16x64xf32, #tpu.memory_space<vmem>>, vector<8x8x64xf32>
    %85 = vector.shape_cast %84 : vector<8x8x64xf32> to vector<64x64xf32>
    %c1_118 = arith.constant 1 : index
    %c1_119 = arith.constant 1 : index
    %c0_120 = arith.constant 0 : index
    %86 = vector.load %arg12[%c1_118, %c1_119, %c0_120] : memref<10x16x64xf32, #tpu.memory_space<vmem>>, vector<8x8x64xf32>
    %87 = vector.shape_cast %86 : vector<8x8x64xf32> to vector<64x64xf32>
    %c1_121 = arith.constant 1 : index
    %c2_122 = arith.constant 2 : index
    %c0_123 = arith.constant 0 : index
    %88 = vector.load %arg11[%c1_121, %c2_122, %c0_123] : memref<10x16x64xf32, #tpu.memory_space<vmem>>, vector<8x8x64xf32>
    %89 = vector.shape_cast %88 : vector<8x8x64xf32> to vector<64x64xf32>
    %90 = tpu.concatenate %73, %75, %77, %79, %81, %83, %85, %87, %89 in 1 : vector<64x64xf32>, vector<64x64xf32>, vector<64x64xf32>, vector<64x64xf32>, vector<64x64xf32>, vector<64x64xf32>, vector<64x64xf32>, vector<64x64xf32>, vector<64x64xf32> -> vector<64x576xf32>
    %c1_124 = arith.constant 1 : index
    %c0_125 = arith.constant 0 : index
    %c0_126 = arith.constant 0 : index
    %91 = vector.load %arg10[%c1_124, %c0_125, %c0_126] : memref<10x16x64xf32, #tpu.memory_space<vmem>>, vector<8x8x64xf32>
    %92 = vector.shape_cast %91 : vector<8x8x64xf32> to vector<64x64xf32>
    %c1_127 = arith.constant 1 : index
    %c1_128 = arith.constant 1 : index
    %c0_129 = arith.constant 0 : index
    %93 = vector.load %arg9[%c1_127, %c1_128, %c0_129] : memref<10x16x64xf32, #tpu.memory_space<vmem>>, vector<8x8x64xf32>
    %94 = vector.shape_cast %93 : vector<8x8x64xf32> to vector<64x64xf32>
    %c1_130 = arith.constant 1 : index
    %c1_131 = arith.constant 1 : index
    %c0_132 = arith.constant 0 : index
    %95 = vector.load %arg10[%c1_130, %c1_131, %c0_132] : memref<10x16x64xf32, #tpu.memory_space<vmem>>, vector<8x8x64xf32>
    %96 = vector.shape_cast %95 : vector<8x8x64xf32> to vector<64x64xf32>
    %c1_133 = arith.constant 1 : index
    %c0_134 = arith.constant 0 : index
    %c0_135 = arith.constant 0 : index
    %97 = vector.load %arg12[%c1_133, %c0_134, %c0_135] : memref<10x16x64xf32, #tpu.memory_space<vmem>>, vector<8x8x64xf32>
    %98 = vector.shape_cast %97 : vector<8x8x64xf32> to vector<64x64xf32>
    %c1_136 = arith.constant 1 : index
    %c1_137 = arith.constant 1 : index
    %c0_138 = arith.constant 0 : index
    %99 = vector.load %arg11[%c1_136, %c1_137, %c0_138] : memref<10x16x64xf32, #tpu.memory_space<vmem>>, vector<8x8x64xf32>
    %100 = vector.shape_cast %99 : vector<8x8x64xf32> to vector<64x64xf32>
    %c1_139 = arith.constant 1 : index
    %c1_140 = arith.constant 1 : index
    %c0_141 = arith.constant 0 : index
    %101 = vector.load %arg12[%c1_139, %c1_140, %c0_141] : memref<10x16x64xf32, #tpu.memory_space<vmem>>, vector<8x8x64xf32>
    %102 = vector.shape_cast %101 : vector<8x8x64xf32> to vector<64x64xf32>
    %c2_142 = arith.constant 2 : index
    %c0_143 = arith.constant 0 : index
    %c0_144 = arith.constant 0 : index
    %103 = vector.load %arg10[%c2_142, %c0_143, %c0_144] : memref<10x16x64xf32, #tpu.memory_space<vmem>>, vector<8x8x64xf32>
    %104 = vector.shape_cast %103 : vector<8x8x64xf32> to vector<64x64xf32>
    %c2_145 = arith.constant 2 : index
    %c1_146 = arith.constant 1 : index
    %c0_147 = arith.constant 0 : index
    %105 = vector.load %arg9[%c2_145, %c1_146, %c0_147] : memref<10x16x64xf32, #tpu.memory_space<vmem>>, vector<8x8x64xf32>
    %106 = vector.shape_cast %105 : vector<8x8x64xf32> to vector<64x64xf32>
    %c2_148 = arith.constant 2 : index
    %c1_149 = arith.constant 1 : index
    %c0_150 = arith.constant 0 : index
    %107 = vector.load %arg10[%c2_148, %c1_149, %c0_150] : memref<10x16x64xf32, #tpu.memory_space<vmem>>, vector<8x8x64xf32>
    %108 = vector.shape_cast %107 : vector<8x8x64xf32> to vector<64x64xf32>
    %109 = tpu.concatenate %92, %94, %96, %98, %100, %102, %104, %106, %108 in 1 : vector<64x64xf32>, vector<64x64xf32>, vector<64x64xf32>, vector<64x64xf32>, vector<64x64xf32>, vector<64x64xf32>, vector<64x64xf32>, vector<64x64xf32>, vector<64x64xf32> -> vector<64x576xf32>
    %c1_151 = arith.constant 1 : index
    %c1_152 = arith.constant 1 : index
    %c0_153 = arith.constant 0 : index
    %110 = vector.load %arg9[%c1_151, %c1_152, %c0_153] : memref<10x16x64xf32, #tpu.memory_space<vmem>>, vector<8x8x64xf32>
    %111 = vector.shape_cast %110 : vector<8x8x64xf32> to vector<64x64xf32>
    %c1_154 = arith.constant 1 : index
    %c1_155 = arith.constant 1 : index
    %c0_156 = arith.constant 0 : index
    %112 = vector.load %arg10[%c1_154, %c1_155, %c0_156] : memref<10x16x64xf32, #tpu.memory_space<vmem>>, vector<8x8x64xf32>
    %113 = vector.shape_cast %112 : vector<8x8x64xf32> to vector<64x64xf32>
    %c1_157 = arith.constant 1 : index
    %c2_158 = arith.constant 2 : index
    %c0_159 = arith.constant 0 : index
    %114 = vector.load %arg9[%c1_157, %c2_158, %c0_159] : memref<10x16x64xf32, #tpu.memory_space<vmem>>, vector<8x8x64xf32>
    %115 = vector.shape_cast %114 : vector<8x8x64xf32> to vector<64x64xf32>
    %c1_160 = arith.constant 1 : index
    %c1_161 = arith.constant 1 : index
    %c0_162 = arith.constant 0 : index
    %116 = vector.load %arg11[%c1_160, %c1_161, %c0_162] : memref<10x16x64xf32, #tpu.memory_space<vmem>>, vector<8x8x64xf32>
    %117 = vector.shape_cast %116 : vector<8x8x64xf32> to vector<64x64xf32>
    %c1_163 = arith.constant 1 : index
    %c1_164 = arith.constant 1 : index
    %c0_165 = arith.constant 0 : index
    %118 = vector.load %arg12[%c1_163, %c1_164, %c0_165] : memref<10x16x64xf32, #tpu.memory_space<vmem>>, vector<8x8x64xf32>
    %119 = vector.shape_cast %118 : vector<8x8x64xf32> to vector<64x64xf32>
    %c1_166 = arith.constant 1 : index
    %c2_167 = arith.constant 2 : index
    %c0_168 = arith.constant 0 : index
    %120 = vector.load %arg11[%c1_166, %c2_167, %c0_168] : memref<10x16x64xf32, #tpu.memory_space<vmem>>, vector<8x8x64xf32>
    %121 = vector.shape_cast %120 : vector<8x8x64xf32> to vector<64x64xf32>
    %c2_169 = arith.constant 2 : index
    %c1_170 = arith.constant 1 : index
    %c0_171 = arith.constant 0 : index
    %122 = vector.load %arg9[%c2_169, %c1_170, %c0_171] : memref<10x16x64xf32, #tpu.memory_space<vmem>>, vector<8x8x64xf32>
    %123 = vector.shape_cast %122 : vector<8x8x64xf32> to vector<64x64xf32>
    %c2_172 = arith.constant 2 : index
    %c1_173 = arith.constant 1 : index
    %c0_174 = arith.constant 0 : index
    %124 = vector.load %arg10[%c2_172, %c1_173, %c0_174] : memref<10x16x64xf32, #tpu.memory_space<vmem>>, vector<8x8x64xf32>
    %125 = vector.shape_cast %124 : vector<8x8x64xf32> to vector<64x64xf32>
    %c2_175 = arith.constant 2 : index
    %c2_176 = arith.constant 2 : index
    %c0_177 = arith.constant 0 : index
    %126 = vector.load %arg9[%c2_175, %c2_176, %c0_177] : memref<10x16x64xf32, #tpu.memory_space<vmem>>, vector<8x8x64xf32>
    %127 = vector.shape_cast %126 : vector<8x8x64xf32> to vector<64x64xf32>
    %128 = tpu.concatenate %111, %113, %115, %117, %119, %121, %123, %125, %127 in 1 : vector<64x64xf32>, vector<64x64xf32>, vector<64x64xf32>, vector<64x64xf32>, vector<64x64xf32>, vector<64x64xf32>, vector<64x64xf32>, vector<64x64xf32>, vector<64x64xf32> -> vector<64x576xf32>
    %129 = tpu.concatenate %71, %90, %109, %128 in 0 : vector<64x576xf32>, vector<64x576xf32>, vector<64x576xf32>, vector<64x576xf32> -> vector<256x576xf32>
    %130 = arith.truncf %129 : vector<256x576xf32> to vector<256x576xbf16>
    %c0_178 = arith.constant 0 : index
    %c0_179 = arith.constant 0 : index
    %131 = vector.load %arg4[%c0_178, %c0_179] : memref<576x64xbf16, #tpu.memory_space<vmem>>, vector<576x64xbf16>
    %cst_180 = arith.constant dense<0.000000e+00> : vector<256x64xf32>
    %132 = tpu.matmul %130, %131, %cst_180 {dimension_numbers = #tpu.dot_dimension_numbers<[1], [0], [0], [1], [0, 0, 1, 1], [], []>} : vector<256x576xbf16>, vector<576x64xbf16>, vector<256x64xf32> -> vector<256x64xf32>
    %c0_181 = arith.constant 0 : index
    %c0_182 = arith.constant 0 : index
    %133 = vector.load %arg5[%c0_181, %c0_182] : memref<1x64xf32, #tpu.memory_space<vmem>>, vector<1x64xf32>
    %134 = vector.broadcast %133 : vector<1x64xf32> to vector<256x64xf32>
    %135 = arith.addf %132, %134 : vector<256x64xf32>
    %136 = vector.extract_strided_slice %135 {offsets = [0, 0], sizes = [64, 64], strides = [1, 1]} : vector<256x64xf32> to vector<64x64xf32>
    %137 = vector.extract_strided_slice %135 {offsets = [64, 0], sizes = [64, 64], strides = [1, 1]} : vector<256x64xf32> to vector<64x64xf32>
    %138 = vector.extract_strided_slice %135 {offsets = [128, 0], sizes = [64, 64], strides = [1, 1]} : vector<256x64xf32> to vector<64x64xf32>
    %139 = vector.extract_strided_slice %135 {offsets = [192, 0], sizes = [64, 64], strides = [1, 1]} : vector<256x64xf32> to vector<64x64xf32>
    %140 = tpu.concatenate %136, %137, %138, %139 in 1 : vector<64x64xf32>, vector<64x64xf32>, vector<64x64xf32>, vector<64x64xf32> -> vector<64x256xf32>
    %c0_183 = arith.constant 0 : index
    %c0_184 = arith.constant 0 : index
    %c0_185 = arith.constant 0 : index
    %141 = vector.load %arg7[%c0_183, %c0_184, %c0_185] : memref<1x64x256xf32, #tpu.memory_space<vmem>>, vector<1x64x256xf32>
    %142 = vector.shape_cast %141 : vector<1x64x256xf32> to vector<64x256xf32>
    %143 = vector.shape_cast %140 : vector<64x256xf32> to vector<1x64x256xf32>
    tpu.vector_store %arg7[%c0_183, %c0_184, %c0_185], %143 {strides = array<i32>} : memref<1x64x256xf32, #tpu.memory_space<vmem>>, vector<1x64x256xf32>,
    return
  }
  func.func @transform_0(%arg0: i32) -> (i32, i32, i32, i32) {
    %c0_i32 = arith.constant 0 : i32
    %c0_i32_0 = arith.constant 0 : i32
    %c0_i32_1 = arith.constant 0 : i32
    %c0_i32_2 = arith.constant 0 : i32
    return %arg0, %c0_i32, %c0_i32_0, %c0_i32_1 : i32, i32, i32, i32
  }
  func.func @transform_1(%arg0: i32) -> (i32, i32) {
    %c0_i32 = arith.constant 0 : i32
    %c0_i32_0 = arith.constant 0 : i32
    %c0_i32_1 = arith.constant 0 : i32
    return %c0_i32, %c0_i32_0 : i32, i32
  }
  func.func @transform_2(%arg0: i32) -> (i32, i32) {
    %c0_i32 = arith.constant 0 : i32
    %c0_i32_0 = arith.constant 0 : i32
    %c0_i32_1 = arith.constant 0 : i32
    return %c0_i32, %c0_i32_0 : i32, i32
  }
  func.func @transform_3(%arg0: i32) -> (i32, i32) {
    %c0_i32 = arith.constant 0 : i32
    %c0_i32_0 = arith.constant 0 : i32
    %c0_i32_1 = arith.constant 0 : i32
    return %c0_i32, %c0_i32_0 : i32, i32
  }
  func.func @transform_4(%arg0: i32) -> (i32, i32) {
    %c0_i32 = arith.constant 0 : i32
    %c0_i32_0 = arith.constant 0 : i32
    %c0_i32_1 = arith.constant 0 : i32
    return %c0_i32, %c0_i32_0 : i32, i32
  }
  func.func @transform_5(%arg0: i32) -> (i32, i32, i32) {
    %c0_i32 = arith.constant 0 : i32
    %c0_i32_0 = arith.constant 0 : i32
    %c0_i32_1 = arith.constant 0 : i32
    return %arg0, %c0_i32, %c0_i32_0 : i32, i32, i32
  }
  func.func @transform_6(%arg0: i32) -> (i32, i32, i32) {
    %c0_i32 = arith.constant 0 : i32
    %c0_i32_0 = arith.constant 0 : i32
    %c0_i32_1 = arith.constant 0 : i32
    return %arg0, %c0_i32, %c0_i32_0 : i32, i32, i32
  }
}

</mosaic_0001>

<llo_original>
// kernel: first_layer_4.1
$region0: #{first_layer_4.1}
  #allocation0 [shape = 'u32[]', space=smem, size = 0x4, offset = 0x4, fixed_abs, tag = 'smem constant byte address 0x4 - core index']
  #allocation1 [shape = 'u32[144,128]{1,0:T(1,128)}', space=vmem, size = 0x12000, scoped, tag = 'internal scratch']
  #allocation2 [shape = 'f32[10,16,256]{2,1,0:T(8,128)}', space=vmem, size = 0x28000, scoped, tag = 'scratch operand']
  #allocation3 [shape = 'f32[10,16,64]{2,1,0:T(8,128)}', space=vmem, size = 0x14000, scoped, tag = 'scratch operand']
  #allocation4 [shape = 'f32[10,16,64]{2,1,0:T(8,128)}', space=vmem, size = 0x14000, scoped, tag = 'scratch operand']
  #allocation5 [shape = 'f32[10,16,64]{2,1,0:T(8,128)}', space=vmem, size = 0x14000, scoped, tag = 'scratch operand']
  #allocation6 [shape = 'f32[10,16,64]{2,1,0:T(8,128)}', space=vmem, size = 0x14000, scoped, tag = 'scratch operand']
  %s0 = inlined_call_operand.vmem [shape: f32[2,8,8,256], index: 0, kind: input, shape index: {}]
  %s1 = inlined_call_operand.vmem [shape: bf16[2304,256], index: 1, kind: input, shape index: {}]
  %s2 = inlined_call_operand.vmem [shape: f32[1,256], index: 2, kind: input, shape index: {}]
  %s3 = inlined_call_operand.vmem [shape: bf16[576,64], index: 3, kind: input, shape index: {}]
  %s4 = inlined_call_operand.vmem [shape: f32[1,64], index: 4, kind: input, shape index: {}]
  %s5 = inlined_call_operand.vmem [shape: f32[2,64,256], index: 5, kind: output, shape index: {0}]
  %s6 = inlined_call_operand.vmem [shape: f32[2,64,256], index: 6, kind: output, shape index: {1}]
  %7 = xla_tuple %s5, %s6
  %s8 = sld [smem:[#allocation0]]
  $region61: #{first_layer_4.1} parent=0
    _
  %s10 = ssub.s32 1, %s8
  %s11 = scalar_select 0, %s10, %s8
  loop: start=0, step=1, limit=4
  $region2: #{first_layer_4.1} parent=0 // loop_pre_header
    _
  $region3: #{first_layer_4.1} parent=0 // loop_header
    %s13 = sphi 0, %s17
    %p14 = scmp.ge.s32.totalorder %s13, 4
    %s23 = sphi 0, %s25
    %s26 = sphi 0, %s23
    %s27 = sphi 0, %s26
    %s43 = sphi 0, %s27
    %s47 = sphi 0, %s47
    %s49 = sphi 0, %s47
    %s50 = sphi 0, %s49
    %s64 = sphi 0, %s50
    %s68 = sphi 0, %s68
    %s70 = sphi 0, %s68
    %s71 = sphi 0, %s70
    %s85 = sphi 0, %s71
    %s89 = sphi 0, %s89
    %s91 = sphi 0, %s89
    %s92 = sphi 0, %s91
    %s106 = sphi 0, %s92
    %s110 = sphi 0, %s110
    %s112 = sphi 0, %s110
    %s113 = sphi 0, %s112
    %s127 = sphi 0, %s113
    %s133 = sphi 0, %s135
    %s136 = sphi 0, %s133
    %s137 = sphi 0, %s136
    %s153 = sphi 0, %s137
    %s159 = sphi 0, %s161
    %s162 = sphi 0, %s159
    %s163 = sphi 0, %s162
    %s179 = sphi 0, %s163
  $region4: #{first_layer_4.1} parent=0 // loop_header_branch
    %16 = sbr.rel (%p14) target = $region8
  $region5: #{first_layer_4.1} parent=0 // loop_body
    %s18 = ssub.s32 %s13, 1
    %s19 = ssub.s32 %s13, 2
    %s20 = sadd.s32 %s13, 1
    %s21 = ssub.s32 %s13, %s20
    %p22 = scmp.eq.s32.totalorder %s21, 0
    %s24 = sadd.s32 %s23, 1
    %s25 = scalar_select %p22, %s23, %s24
    %p28 = pneg %p22
    %p29 = scmp.eq.s32.totalorder %s13, 1
    %p30 = por %p28, %p29
    %p31 = scmp.ne.s32.totalorder %s23, %s26
    %p32 = scmp.eq.s32.totalorder %s13, 0
    %p33 = por %p31, %p32
    %p34 = scmp.ne.s32.totalorder %s23, %s26
    %p35 = scmp.eq.s32.totalorder %s18, 1
    %p36 = por %p34, %p35
    %p37 = scmp.ne.s32.totalorder %s26, %s27
    %p38 = scmp.eq.s32.totalorder %s18, 0
    %p39 = por %p37, %p38
    %p40 = scmp.ne.s32.totalorder %s26, %s27
    %p41 = scmp.eq.s32.totalorder %s19, 1
    %p42 = por %p40, %p41
    %p44 = scmp.ne.s32.totalorder %s27, %s43
    %p45 = scmp.eq.s32.totalorder %s19, 0
    %p46 = por %p44, %p45
    %s48 = sadd.s32 %s47, 1
    %p51 = scmp.eq.s32.totalorder %s13, 1
    %p52 = scmp.ne.s32.totalorder %s47, %s49
    %p53 = scmp.eq.s32.totalorder %s13, 0
    %p54 = por %p52, %p53
    %p55 = scmp.ne.s32.totalorder %s47, %s49
    %p56 = scmp.eq.s32.totalorder %s18, 1
    %p57 = por %p55, %p56
    %p58 = scmp.ne.s32.totalorder %s49, %s50
    %p59 = scmp.eq.s32.totalorder %s18, 0
    %p60 = por %p58, %p59
    %p61 = scmp.ne.s32.totalorder %s49, %s50
    %p62 = scmp.eq.s32.totalorder %s19, 1
    %p63 = por %p61, %p62
    %p65 = scmp.ne.s32.totalorder %s50, %s64
    %p66 = scmp.eq.s32.totalorder %s19, 0
    %p67 = por %p65, %p66
    %s69 = sadd.s32 %s68, 1
    %p72 = scmp.eq.s32.totalorder %s13, 1
    %p73 = scmp.ne.s32.totalorder %s68, %s70
    %p74 = scmp.eq.s32.totalorder %s13, 0
    %p75 = por %p73, %p74
    %p76 = scmp.ne.s32.totalorder %s68, %s70
    %p77 = scmp.eq.s32.totalorder %s18, 1
    %p78 = por %p76, %p77
    %p79 = scmp.ne.s32.totalorder %s70, %s71
    %p80 = scmp.eq.s32.totalorder %s18, 0
    %p81 = por %p79, %p80
    %p82 = scmp.ne.s32.totalorder %s70, %s71
    %p83 = scmp.eq.s32.totalorder %s19, 1
    %p84 = por %p82, %p83
    %p86 = scmp.ne.s32.totalorder %s71, %s85
    %p87 = scmp.eq.s32.totalorder %s19, 0
    %p88 = por %p86, %p87
    %s90 = sadd.s32 %s89, 1
    %p93 = scmp.eq.s32.totalorder %s13, 1
    %p94 = scmp.ne.s32.totalorder %s89, %s91
    %p95 = scmp.eq.s32.totalorder %s13, 0
    %p96 = por %p94, %p95
    %p97 = scmp.ne.s32.totalorder %s89, %s91
    %p98 = scmp.eq.s32.totalorder %s18, 1
    %p99 = por %p97, %p98
    %p100 = scmp.ne.s32.totalorder %s91, %s92
    %p101 = scmp.eq.s32.totalorder %s18, 0
    %p102 = por %p100, %p101
    %p103 = scmp.ne.s32.totalorder %s91, %s92
    %p104 = scmp.eq.s32.totalorder %s19, 1
    %p105 = por %p103, %p104
    %p107 = scmp.ne.s32.totalorder %s92, %s106
    %p108 = scmp.eq.s32.totalorder %s19, 0
    %p109 = por %p107, %p108
    %s111 = sadd.s32 %s110, 1
    %p114 = scmp.eq.s32.totalorder %s13, 1
    %p115 = scmp.ne.s32.totalorder %s110, %s112
    %p116 = scmp.eq.s32.totalorder %s13, 0
    %p117 = por %p115, %p116
    %p118 = scmp.ne.s32.totalorder %s110, %s112
    %p119 = scmp.eq.s32.totalorder %s18, 1
    %p120 = por %p118, %p119
    %p121 = scmp.ne.s32.totalorder %s112, %s113
    %p122 = scmp.eq.s32.totalorder %s18, 0
    %p123 = por %p121, %p122
    %p124 = scmp.ne.s32.totalorder %s112, %s113
    %p125 = scmp.eq.s32.totalorder %s19, 1
    %p126 = por %p124, %p125
    %p128 = scmp.ne.s32.totalorder %s113, %s127
    %p129 = scmp.eq.s32.totalorder %s19, 0
    %p130 = por %p128, %p129
    %s131 = ssub.s32 %s13, %s20
    %p132 = scmp.eq.s32.totalorder %s131, 0
    %s134 = sadd.s32 %s133, 1
    %s135 = scalar_select %p132, %s133, %s134
    %p138 = pneg %p132
    %p139 = scmp.eq.s32.totalorder %s13, 1
    %p140 = por %p138, %p139
    %p141 = scmp.ne.s32.totalorder %s133, %s136
    %p142 = scmp.eq.s32.totalorder %s13, 0
    %p143 = por %p141, %p142
    %p144 = scmp.ne.s32.totalorder %s133, %s136
    %p145 = scmp.eq.s32.totalorder %s18, 1
    %p146 = por %p144, %p145
    %p147 = scmp.ne.s32.totalorder %s136, %s137
    %p148 = scmp.eq.s32.totalorder %s18, 0
    %p149 = por %p147, %p148
    %p150 = scmp.ne.s32.totalorder %s136, %s137
    %p151 = scmp.eq.s32.totalorder %s19, 1
    %p152 = por %p150, %p151
    %p154 = scmp.ne.s32.totalorder %s137, %s153
    %p155 = scmp.eq.s32.totalorder %s19, 0
    %p156 = por %p154, %p155
    %s157 = ssub.s32 %s13, %s20
    %p158 = scmp.eq.s32.totalorder %s157, 0
    %s160 = sadd.s32 %s159, 1
    %s161 = scalar_select %p158, %s159, %s160
    %p164 = pneg %p158
    %p165 = scmp.eq.s32.totalorder %s13, 1
    %p166 = por %p164, %p165
    %p167 = scmp.ne.s32.totalorder %s159, %s162
    %p168 = scmp.eq.s32.totalorder %s13, 0
    %p169 = por %p167, %p168
    %p170 = scmp.ne.s32.totalorder %s159, %s162
    %p171 = scmp.eq.s32.totalorder %s18, 1
    %p172 = por %p170, %p171
    %p173 = scmp.ne.s32.totalorder %s162, %s163
    %p174 = scmp.eq.s32.totalorder %s18, 0
    %p175 = por %p173, %p174
    %p176 = scmp.ne.s32.totalorder %s162, %s163
    %p177 = scmp.eq.s32.totalorder %s19, 1
    %p178 = por %p176, %p177
    %p180 = scmp.ne.s32.totalorder %s163, %s179
    %p181 = scmp.eq.s32.totalorder %s19, 0
    %p182 = por %p180, %p181
    %p183 = scmp.le.s32.totalorder 1, %s13
    %p184 = scmp.lt.s32.totalorder %s13, 3
    %p185 = pnand %p183, %p184
    %p186 = pneg %p185
    // Predicated region
    $region9: #{first_layer_4.1} parent=5 // pred_check
      _
    $region10: #{first_layer_4.1} parent=5 // pred_check_branch
      %188 = sbr.rel (%p185) target = $region12
    $region11: #{first_layer_4.1} parent=5 // pred_region
      %s189 = ssub.s32 %s13, 1
      // Predicated region
      $region13: #{first_layer_4.1} parent=11 // pred_check
        %p190 = pneg %p60
      $region14: #{first_layer_4.1} parent=11 // pred_check_branch
        %192 = sbr.rel (%p190) target = $region16
      $region15: #{first_layer_4.1} parent=11 // pred_region
        _
      $region16: #{first_layer_4.1} parent=11 // pred_fallthru
        _
      // Predicated region
      $region17: #{first_layer_4.1} parent=11 // pred_check
        %p193 = pneg %p81
      $region18: #{first_layer_4.1} parent=11 // pred_check_branch
        %195 = sbr.rel (%p193) target = $region20
      $region19: #{first_layer_4.1} parent=11 // pred_region
        _
      $region20: #{first_layer_4.1} parent=11 // pred_fallthru
        _
      // Predicated region
      $region21: #{first_layer_4.1} parent=11 // pred_check
        %p196 = pneg %p102
      $region22: #{first_layer_4.1} parent=11 // pred_check_branch
        %198 = sbr.rel (%p196) target = $region24
      $region23: #{first_layer_4.1} parent=11 // pred_region
        _
      $region24: #{first_layer_4.1} parent=11 // pred_fallthru
        _
      // Predicated region
      $region25: #{first_layer_4.1} parent=11 // pred_check
        %p199 = pneg %p123
      $region26: #{first_layer_4.1} parent=11 // pred_check_branch
        %201 = sbr.rel (%p199) target = $region28
      $region27: #{first_layer_4.1} parent=11 // pred_region
        _
      $region28: #{first_layer_4.1} parent=11 // pred_fallthru
        _
    $region12: #{first_layer_4.1} parent=5 // pred_fallthru
      _
    %p202 = scmp.lt.s32.totalorder %s13, 2
    // Predicated region
    $region29: #{first_layer_4.1} parent=5 // pred_check
      %p203 = pneg %p202
    $region30: #{first_layer_4.1} parent=5 // pred_check_branch
      %205 = sbr.rel (%p203) target = $region32
    $region31: #{first_layer_4.1} parent=5 // pred_region
      // Predicated region
      $region33: #{first_layer_4.1} parent=31 // pred_check
        %p206 = pneg %p33
      $region34: #{first_layer_4.1} parent=31 // pred_check_branch
        %208 = sbr.rel (%p206) target = $region36
      $region35: #{first_layer_4.1} parent=31 // pred_region
        %p209 = scmp.lt.s32.totalorder %s13, 1
        %s210 = scalar_select %p209, %s13, 1
        %s211 = smul.addr %s210, 16
        %s212 = smul.addr %s211, 8
        %s213 = scalar_lea.vmem %s0, %s212
      $region36: #{first_layer_4.1} parent=31 // pred_fallthru
        _
    $region32: #{first_layer_4.1} parent=5 // pred_fallthru
      _
    %p214 = scmp.le.s32.totalorder 1, %s13
    %p215 = scmp.lt.s32.totalorder %s13, 3
    %p216 = pnand %p214, %p215
    %p217 = pneg %p216
    // Predicated region
    $region37: #{first_layer_4.1} parent=5 // pred_check
      _
    $region38: #{first_layer_4.1} parent=5 // pred_check_branch
      %219 = sbr.rel (%p216) target = $region40
    $region39: #{first_layer_4.1} parent=5 // pred_region
      %s220 = ssub.s32 %s13, 1
      %p221 = scmp.lt.s32.totalorder %s18, 1
      %s222 = scalar_select %p221, %s18, 1
      %s223 = smul.addr %s222, 16
      %s224 = smul.addr %s223, 8
      %s225 = scalar_lea.vmem %s0, %s224
      %p226 = pneg %p39
      %p227 = pneg %p36
      %p228 = pneg %p60
      %p229 = pneg %p57
      %p230 = pneg %p81
      %p231 = pneg %p78
      %p232 = pneg %p102
      %p233 = pneg %p99
      %p234 = pneg %p123
      %p235 = pneg %p120
      %p236 = pneg %p149
      %p237 = pneg %p146
      %p238 = scmp.lt.s32.totalorder %s18, 1
      %s239 = scalar_select %p238, %s18, 1
      %s240 = smul.addr %s239, 16
      %s241 = smul.addr %s240, 8
      %s242 = scalar_lea.vmem %s5, %s241
      %p243 = pneg %p175
      %p244 = pneg %p172
      %p245 = scmp.lt.s32.totalorder %s18, 1
      %s246 = scalar_select %p245, %s18, 1
      %s247 = smul.addr %s246, 16
      %s248 = smul.addr %s247, 8
      %s249 = scalar_lea.vmem %s6, %s248
      %p250 = scmp.lt.s32.totalorder %s18, 1
      %s251 = scalar_select %p250, %s18, 1
      %s252 = smul.addr %s251, 16
      %s253 = smul.addr %s252, 8
      %s254 = scalar_lea.vmem %s0, %s253
      %p255 = scmp.lt.s32.totalorder %s18, 1
      %s256 = scalar_select %p255, %s18, 1
      %s257 = smul.addr %s256, 16
      %s258 = smul.addr %s257, 8
      %s259 = scalar_lea.vmem %s5, %s258
      %p260 = scmp.lt.s32.totalorder %s18, 1
      %s261 = scalar_select %p260, %s18, 1
      %s262 = smul.addr %s261, 16
      %s263 = smul.addr %s262, 8
      %s264 = scalar_lea.vmem %s6, %s263
      %266 = vst [vmem:[#allocation2] sm:$0xff] 0.0
      %267 = vst [vmem:[#allocation2 + $0x8] sm:$0xff] 0.0
      %268 = vst [vmem:[#allocation2 + $0x10] sm:$0xff] 0.0
      %269 = vst [vmem:[#allocation2 + $0x18] sm:$0xff] 0.0
      %270 = vst [vmem:[#allocation2 + $0x20] sm:$0xff] 0.0
      %271 = vst [vmem:[#allocation2 + $0x28] sm:$0xff] 0.0
      %272 = vst [vmem:[#allocation2 + $0x30] sm:$0xff] 0.0
      %273 = vst [vmem:[#allocation2 + $0x38] sm:$0xff] 0.0
      %274 = vst [vmem:[#allocation2 + $0x40] sm:$0xff] 0.0
      %275 = vst [vmem:[#allocation2 + $0x48] sm:$0xff] 0.0
      %276 = vst [vmem:[#allocation2 + $0x50] sm:$0xff] 0.0
      %277 = vst [vmem:[#allocation2 + $0x58] sm:$0xff] 0.0
      %278 = vst [vmem:[#allocation2 + $0x60] sm:$0xff] 0.0
      %279 = vst [vmem:[#allocation2 + $0x68] sm:$0xff] 0.0
      %280 = vst [vmem:[#allocation2 + $0x70] sm:$0xff] 0.0
      %281 = vst [vmem:[#allocation2 + $0x78] sm:$0xff] 0.0
      %282 = vst [vmem:[#allocation2 + $0x80] sm:$0xff] 0.0
      %283 = vst [vmem:[#allocation2 + $0x88] sm:$0xff] 0.0
      %284 = vst [vmem:[#allocation2 + $0x90] sm:$0xff] 0.0
      %285 = vst [vmem:[#allocation2 + $0x98] sm:$0xff] 0.0
      %286 = vst [vmem:[#allocation2 + $0xa0] sm:$0xff] 0.0
      %287 = vst [vmem:[#allocation2 + $0xa8] sm:$0xff] 0.0
      %288 = vst [vmem:[#allocation2 + $0xb0] sm:$0xff] 0.0
      %289 = vst [vmem:[#allocation2 + $0xb8] sm:$0xff] 0.0
      %290 = vst [vmem:[#allocation2 + $0xc0] sm:$0xff] 0.0
      %291 = vst [vmem:[#allocation2 + $0xc8] sm:$0xff] 0.0
      %292 = vst [vmem:[#allocation2 + $0xd0] sm:$0xff] 0.0
      %293 = vst [vmem:[#allocation2 + $0xd8] sm:$0xff] 0.0
      %294 = vst [vmem:[#allocation2 + $0xe0] sm:$0xff] 0.0
      %295 = vst [vmem:[#allocation2 + $0xe8] sm:$0xff] 0.0
      %296 = vst [vmem:[#allocation2 + $0xf0] sm:$0xff] 0.0
      %297 = vst [vmem:[#allocation2 + $0xf8] sm:$0xff] 0.0
      %298 = vst [vmem:[#allocation2 + $0x100] sm:$0xff] 0.0
      %299 = vst [vmem:[#allocation2 + $0x108] sm:$0xff] 0.0
      %300 = vst [vmem:[#allocation2 + $0x110] sm:$0xff] 0.0
      %301 = vst [vmem:[#allocation2 + $0x118] sm:$0xff] 0.0
      %302 = vst [vmem:[#allocation2 + $0x120] sm:$0xff] 0.0
      %303 = vst [vmem:[#allocation2 + $0x128] sm:$0xff] 0.0
      %304 = vst [vmem:[#allocation2 + $0x130] sm:$0xff] 0.0
      %305 = vst [vmem:[#allocation2 + $0x138] sm:$0xff] 0.0
      %v306 = vld [vmem:[%s254] sm:$0xff]
      %v307 = vld [vmem:[%s254 + $0x8] sm:$0xff]
      %v308 = vld [vmem:[%s254 + $0x10] sm:$0xff]
      %v309 = vld [vmem:[%s254 + $0x18] sm:$0xff]
      %v310 = vld [vmem:[%s254 + $0x20] sm:$0xff]
      %v311 = vld [vmem:[%s254 + $0x28] sm:$0xff]
      %v312 = vld [vmem:[%s254 + $0x30] sm:$0xff]
      %v313 = vld [vmem:[%s254 + $0x38] sm:$0xff]
      %v314 = vld [vmem:[%s254 + $0x40] sm:$0xff]
      %v315 = vld [vmem:[%s254 + $0x48] sm:$0xff]
      %v316 = vld [vmem:[%s254 + $0x50] sm:$0xff]
      %v317 = vld [vmem:[%s254 + $0x58] sm:$0xff]
      %v318 = vld [vmem:[%s254 + $0x60] sm:$0xff]
      %v319 = vld [vmem:[%s254 + $0x68] sm:$0xff]
      %v320 = vld [vmem:[%s254 + $0x70] sm:$0xff]
      %v321 = vld [vmem:[%s254 + $0x78] sm:$0xff]
      %v338 = vrot.slane %v306, 7
      %v339 = vrot.slane %v307, 7
      %v340 = vrot.slane %v308, 7
      %v341 = vrot.slane %v309, 7
      %v342 = vrot.slane %v310, 7
      %v343 = vrot.slane %v311, 7
      %v344 = vrot.slane %v312, 7
      %v345 = vrot.slane %v313, 7
      %v346 = vrot.slane %v314, 7
      %v347 = vrot.slane %v315, 7
      %v348 = vrot.slane %v316, 7
      %v349 = vrot.slane %v317, 7
      %v350 = vrot.slane %v318, 7
      %v351 = vrot.slane %v319, 7
      %v352 = vrot.slane %v320, 7
      %v353 = vrot.slane %v321, 7
      %s370 = scalar_lea.vmem [#allocation2], 32
      %371 = vst [vmem:[%s370] sm:$0xfe] %v338
      %372 = vst [vmem:[%s370 + $0x8] sm:$0xfe] %v339
      %373 = vst [vmem:[%s370 + $0x10] sm:$0x1] %v338
      %374 = vst [vmem:[%s370 + $0x18] sm:$0x1] %v339
      %375 = vst [vmem:[%s370 + $0x20] sm:$0xfe] %v340
      %376 = vst [vmem:[%s370 + $0x28] sm:$0xfe] %v341
      %377 = vst [vmem:[%s370 + $0x30] sm:$0x1] %v340
      %378 = vst [vmem:[%s370 + $0x38] sm:$0x1] %v341
      %379 = vst [vmem:[%s370 + $0x40] sm:$0xfe] %v342
      %380 = vst [vmem:[%s370 + $0x48] sm:$0xfe] %v343
      %381 = vst [vmem:[%s370 + $0x50] sm:$0x1] %v342
      %382 = vst [vmem:[%s370 + $0x58] sm:$0x1] %v343
      %383 = vst [vmem:[%s370 + $0x60] sm:$0xfe] %v344
      %384 = vst [vmem:[%s370 + $0x68] sm:$0xfe] %v345
      %385 = vst [vmem:[%s370 + $0x70] sm:$0x1] %v344
      %386 = vst [vmem:[%s370 + $0x78] sm:$0x1] %v345
      %387 = vst [vmem:[%s370 + $0x80] sm:$0xfe] %v346
      %388 = vst [vmem:[%s370 + $0x88] sm:$0xfe] %v347
      %389 = vst [vmem:[%s370 + $0x90] sm:$0x1] %v346
      %390 = vst [vmem:[%s370 + $0x98] sm:$0x1] %v347
      %391 = vst [vmem:[%s370 + $0xa0] sm:$0xfe] %v348
      %392 = vst [vmem:[%s370 + $0xa8] sm:$0xfe] %v349
      %393 = vst [vmem:[%s370 + $0xb0] sm:$0x1] %v348
      %394 = vst [vmem:[%s370 + $0xb8] sm:$0x1] %v349
      %395 = vst [vmem:[%s370 + $0xc0] sm:$0xfe] %v350
      %396 = vst [vmem:[%s370 + $0xc8] sm:$0xfe] %v351
      %397 = vst [vmem:[%s370 + $0xd0] sm:$0x1] %v350
      %398 = vst [vmem:[%s370 + $0xd8] sm:$0x1] %v351
      %399 = vst [vmem:[%s370 + $0xe0] sm:$0xfe] %v352
      %400 = vst [vmem:[%s370 + $0xe8] sm:$0xfe] %v353
      %401 = vst [vmem:[%s370 + $0xf0] sm:$0x1] %v352
      %402 = vst [vmem:[%s370 + $0xf8] sm:$0x1] %v353
      %v403 = vld [vmem:[#allocation2] sm:$0xff]
      %v404 = vld [vmem:[#allocation2 + $0x8] sm:$0xff]
      %v405 = vld [vmem:[#allocation2 + $0x20] sm:$0xff]
      %v406 = vld [vmem:[#allocation2 + $0x28] sm:$0xff]
      %v407 = vld [vmem:[#allocation2 + $0x40] sm:$0xff]
      %v408 = vld [vmem:[#allocation2 + $0x48] sm:$0xff]
      %v409 = vld [vmem:[#allocation2 + $0x60] sm:$0xff]
      %v410 = vld [vmem:[#allocation2 + $0x68] sm:$0xff]
      %v411 = vld [vmem:[#allocation2 + $0x80] sm:$0xff]
      %v412 = vld [vmem:[#allocation2 + $0x88] sm:$0xff]
      %v413 = vld [vmem:[#allocation2 + $0xa0] sm:$0xff]
      %v414 = vld [vmem:[#allocation2 + $0xa8] sm:$0xff]
      %v415 = vld [vmem:[#allocation2 + $0xc0] sm:$0xff]
      %v416 = vld [vmem:[#allocation2 + $0xc8] sm:$0xff]
      %v417 = vld [vmem:[#allocation2 + $0xe0] sm:$0xff]
      %v418 = vld [vmem:[#allocation2 + $0xe8] sm:$0xff]
      %v419 = vld [vmem:[#allocation2] sm:$0xfe]
      %v420 = vld [vmem:[#allocation2 + $0x8] sm:$0xfe]
      %v421 = vld [vmem:[#allocation2 + $0x10] sm:$0x1]
      %v422 = vld [vmem:[#allocation2 + $0x18] sm:$0x1]
      %v423 = vld [vmem:[#allocation2 + $0x20] sm:$0xfe]
      %v424 = vld [vmem:[#allocation2 + $0x28] sm:$0xfe]
      %v425 = vld [vmem:[#allocation2 + $0x30] sm:$0x1]
      %v426 = vld [vmem:[#allocation2 + $0x38] sm:$0x1]
      %v427 = vld [vmem:[#allocation2 + $0x40] sm:$0xfe]
      %v428 = vld [vmem:[#allocation2 + $0x48] sm:$0xfe]
      %v429 = vld [vmem:[#allocation2 + $0x50] sm:$0x1]
      %v430 = vld [vmem:[#allocation2 + $0x58] sm:$0x1]
      %v431 = vld [vmem:[#allocation2 + $0x60] sm:$0xfe]
      %v432 = vld [vmem:[#allocation2 + $0x68] sm:$0xfe]
      %v433 = vld [vmem:[#allocation2 + $0x70] sm:$0x1]
      %v434 = vld [vmem:[#allocation2 + $0x78] sm:$0x1]
      %v435 = vld [vmem:[#allocation2 + $0x80] sm:$0xfe]
      %v436 = vld [vmem:[#allocation2 + $0x88] sm:$0xfe]
      %v437 = vld [vmem:[#allocation2 + $0x90] sm:$0x1]
      %v438 = vld [vmem:[#allocation2 + $0x98] sm:$0x1]
      %v439 = vld [vmem:[#allocation2 + $0xa0] sm:$0xfe]
      %v440 = vld [vmem:[#allocation2 + $0xa8] sm:$0xfe]
      %v441 = vld [vmem:[#allocation2 + $0xb0] sm:$0x1]
      %v442 = vld [vmem:[#allocation2 + $0xb8] sm:$0x1]
      %v443 = vld [vmem:[#allocation2 + $0xc0] sm:$0xfe]
      %v444 = vld [vmem:[#allocation2 + $0xc8] sm:$0xfe]
      %v445 = vld [vmem:[#allocation2 + $0xd0] sm:$0x1]
      %v446 = vld [vmem:[#allocation2 + $0xd8] sm:$0x1]
      %v447 = vld [vmem:[#allocation2 + $0xe0] sm:$0xfe]
      %v448 = vld [vmem:[#allocation2 + $0xe8] sm:$0xfe]
      %v449 = vld [vmem:[#allocation2 + $0xf0] sm:$0x1]
      %v450 = vld [vmem:[#allocation2 + $0xf8] sm:$0x1]
      %vm483 = vcmask 1046528
      %v484 = vrot.slane %v419, 1
      %v485 = vrot.slane %v421, 1
      %v486 = vsel %vm483, %v484, %v485
      %v487 = vrot.slane %v420, 1
      %v488 = vrot.slane %v422, 1
      %v489 = vsel %vm483, %v487, %v488
      %v490 = vrot.slane %v423, 1
      %v491 = vrot.slane %v425, 1
      %v492 = vsel %vm483, %v490, %v491
      %v493 = vrot.slane %v424, 1
      %v494 = vrot.slane %v426, 1
      %v495 = vsel %vm483, %v493, %v494
      %v496 = vrot.slane %v427, 1
      %v497 = vrot.slane %v429, 1
      %v498 = vsel %vm483, %v496, %v497
      %v499 = vrot.slane %v428, 1
      %v500 = vrot.slane %v430, 1
      %v501 = vsel %vm483, %v499, %v500
      %v502 = vrot.slane %v431, 1
      %v503 = vrot.slane %v433, 1
      %v504 = vsel %vm483, %v502, %v503
      %v505 = vrot.slane %v432, 1
      %v506 = vrot.slane %v434, 1
      %v507 = vsel %vm483, %v505, %v506
      %v508 = vrot.slane %v435, 1
      %v509 = vrot.slane %v437, 1
      %v510 = vsel %vm483, %v508, %v509
      %v511 = vrot.slane %v436, 1
      %v512 = vrot.slane %v438, 1
      %v513 = vsel %vm483, %v511, %v512
      %v514 = vrot.slane %v439, 1
      %v515 = vrot.slane %v441, 1
      %v516 = vsel %vm483, %v514, %v515
      %v517 = vrot.slane %v440, 1
      %v518 = vrot.slane %v442, 1
      %v519 = vsel %vm483, %v517, %v518
      %v520 = vrot.slane %v443, 1
      %v521 = vrot.slane %v445, 1
      %v522 = vsel %vm483, %v520, %v521
      %v523 = vrot.slane %v444, 1
      %v524 = vrot.slane %v446, 1
      %v525 = vsel %vm483, %v523, %v524
      %v526 = vrot.slane %v447, 1
      %v527 = vrot.slane %v449, 1
      %v528 = vsel %vm483, %v526, %v527
      %v529 = vrot.slane %v448, 1
      %v530 = vrot.slane %v450, 1
      %v531 = vsel %vm483, %v529, %v530
      %v548 = vld [vmem:[#allocation2] sm:$0xfc]
      %v549 = vld [vmem:[#allocation2 + $0x8] sm:$0xfc]
      %v550 = vld [vmem:[#allocation2 + $0x10] sm:$0x3]
      %v551 = vld [vmem:[#allocation2 + $0x18] sm:$0x3]
      %v552 = vld [vmem:[#allocation2 + $0x20] sm:$0xfc]
      %v553 = vld [vmem:[#allocation2 + $0x28] sm:$0xfc]
      %v554 = vld [vmem:[#allocation2 + $0x30] sm:$0x3]
      %v555 = vld [vmem:[#allocation2 + $0x38] sm:$0x3]
      %v556 = vld [vmem:[#allocation2 + $0x40] sm:$0xfc]
      %v557 = vld [vmem:[#allocation2 + $0x48] sm:$0xfc]
      %v558 = vld [vmem:[#allocation2 + $0x50] sm:$0x3]
      %v559 = vld [vmem:[#allocation2 + $0x58] sm:$0x3]
      %v560 = vld [vmem:[#allocation2 + $0x60] sm:$0xfc]
      %v561 = vld [vmem:[#allocation2 + $0x68] sm:$0xfc]
      %v562 = vld [vmem:[#allocation2 + $0x70] sm:$0x3]
      %v563 = vld [vmem:[#allocation2 + $0x78] sm:$0x3]
      %v564 = vld [vmem:[#allocation2 + $0x80] sm:$0xfc]
      %v565 = vld [vmem:[#allocation2 + $0x88] sm:$0xfc]
      %v566 = vld [vmem:[#allocation2 + $0x90] sm:$0x3]
      %v567 = vld [vmem:[#allocation2 + $0x98] sm:$0x3]
      %v568 = vld [vmem:[#allocation2 + $0xa0] sm:$0xfc]
      %v569 = vld [vmem:[#allocation2 + $0xa8] sm:$0xfc]
      %v570 = vld [vmem:[#allocation2 + $0xb0] sm:$0x3]
      %v571 = vld [vmem:[#allocation2 + $0xb8] sm:$0x3]
      %v572 = vld [vmem:[#allocation2 + $0xc0] sm:$0xfc]
      %v573 = vld [vmem:[#allocation2 + $0xc8] sm:$0xfc]
      %v574 = vld [vmem:[#allocation2 + $0xd0] sm:$0x3]
      %v575 = vld [vmem:[#allocation2 + $0xd8] sm:$0x3]
      %v576 = vld [vmem:[#allocation2 + $0xe0] sm:$0xfc]
      %v577 = vld [vmem:[#allocation2 + $0xe8] sm:$0xfc]
      %v578 = vld [vmem:[#allocation2 + $0xf0] sm:$0x3]
      %v579 = vld [vmem:[#allocation2 + $0xf8] sm:$0x3]
      %vm612 = vcmask 1045504
      %v613 = vrot.slane %v548, 2
      %v614 = vrot.slane %v550, 2
      %v615 = vsel %vm612, %v613, %v614
      %v616 = vrot.slane %v549, 2
      %v617 = vrot.slane %v551, 2
      %v618 = vsel %vm612, %v616, %v617
      %v619 = vrot.slane %v552, 2
      %v620 = vrot.slane %v554, 2
      %v621 = vsel %vm612, %v619, %v620
      %v622 = vrot.slane %v553, 2
      %v623 = vrot.slane %v555, 2
      %v624 = vsel %vm612, %v622, %v623
      %v625 = vrot.slane %v556, 2
      %v626 = vrot.slane %v558, 2
      %v627 = vsel %vm612, %v625, %v626
      %v628 = vrot.slane %v557, 2
      %v629 = vrot.slane %v559, 2
      %v630 = vsel %vm612, %v628, %v629
      %v631 = vrot.slane %v560, 2
      %v632 = vrot.slane %v562, 2
      %v633 = vsel %vm612, %v631, %v632
      %v634 = vrot.slane %v561, 2
      %v635 = vrot.slane %v563, 2
      %v636 = vsel %vm612, %v634, %v635
      %v637 = vrot.slane %v564, 2
      %v638 = vrot.slane %v566, 2
      %v639 = vsel %vm612, %v637, %v638
      %v640 = vrot.slane %v565, 2
      %v641 = vrot.slane %v567, 2
      %v642 = vsel %vm612, %v640, %v641
      %v643 = vrot.slane %v568, 2
      %v644 = vrot.slane %v570, 2
      %v645 = vsel %vm612, %v643, %v644
      %v646 = vrot.slane %v569, 2
      %v647 = vrot.slane %v571, 2
      %v648 = vsel %vm612, %v646, %v647
      %v649 = vrot.slane %v572, 2
      %v650 = vrot.slane %v574, 2
      %v651 = vsel %vm612, %v649, %v650
      %v652 = vrot.slane %v573, 2
      %v653 = vrot.slane %v575, 2
      %v654 = vsel %vm612, %v652, %v653
      %v655 = vrot.slane %v576, 2
      %v656 = vrot.slane %v578, 2
      %v657 = vsel %vm612, %v655, %v656
      %v658 = vrot.slane %v577, 2
      %v659 = vrot.slane %v579, 2
      %v660 = vsel %vm612, %v658, %v659
      %v677 = vld [vmem:[%s370] sm:$0xff]
      %v678 = vld [vmem:[%s370 + $0x8] sm:$0xff]
      %v679 = vld [vmem:[%s370 + $0x20] sm:$0xff]
      %v680 = vld [vmem:[%s370 + $0x28] sm:$0xff]
      %v681 = vld [vmem:[%s370 + $0x40] sm:$0xff]
      %v682 = vld [vmem:[%s370 + $0x48] sm:$0xff]
      %v683 = vld [vmem:[%s370 + $0x60] sm:$0xff]
      %v684 = vld [vmem:[%s370 + $0x68] sm:$0xff]
      %v685 = vld [vmem:[%s370 + $0x80] sm:$0xff]
      %v686 = vld [vmem:[%s370 + $0x88] sm:$0xff]
      %v687 = vld [vmem:[%s370 + $0xa0] sm:$0xff]
      %v688 = vld [vmem:[%s370 + $0xa8] sm:$0xff]
      %v689 = vld [vmem:[%s370 + $0xc0] sm:$0xff]
      %v690 = vld [vmem:[%s370 + $0xc8] sm:$0xff]
      %v691 = vld [vmem:[%s370 + $0xe0] sm:$0xff]
      %v692 = vld [vmem:[%s370 + $0xe8] sm:$0xff]
      %v693 = vld [vmem:[%s370] sm:$0xfe]
      %v694 = vld [vmem:[%s370 + $0x8] sm:$0xfe]
      %v695 = vld [vmem:[%s370 + $0x10] sm:$0x1]
      %v696 = vld [vmem:[%s370 + $0x18] sm:$0x1]
      %v697 = vld [vmem:[%s370 + $0x20] sm:$0xfe]
      %v698 = vld [vmem:[%s370 + $0x28] sm:$0xfe]
      %v699 = vld [vmem:[%s370 + $0x30] sm:$0x1]
      %v700 = vld [vmem:[%s370 + $0x38] sm:$0x1]
      %v701 = vld [vmem:[%s370 + $0x40] sm:$0xfe]
      %v702 = vld [vmem:[%s370 + $0x48] sm:$0xfe]
      %v703 = vld [vmem:[%s370 + $0x50] sm:$0x1]
      %v704 = vld [vmem:[%s370 + $0x58] sm:$0x1]
      %v705 = vld [vmem:[%s370 + $0x60] sm:$0xfe]
      %v706 = vld [vmem:[%s370 + $0x68] sm:$0xfe]
      %v707 = vld [vmem:[%s370 + $0x70] sm:$0x1]
      %v708 = vld [vmem:[%s370 + $0x78] sm:$0x1]
      %v709 = vld [vmem:[%s370 + $0x80] sm:$0xfe]
      %v710 = vld [vmem:[%s370 + $0x88] sm:$0xfe]
      %v711 = vld [vmem:[%s370 + $0x90] sm:$0x1]
      %v712 = vld [vmem:[%s370 + $0x98] sm:$0x1]
      %v713 = vld [vmem:[%s370 + $0xa0] sm:$0xfe]
      %v714 = vld [vmem:[%s370 + $0xa8] sm:$0xfe]
      %v715 = vld [vmem:[%s370 + $0xb0] sm:$0x1]
      %v716 = vld [vmem:[%s370 + $0xb8] sm:$0x1]
      %v717 = vld [vmem:[%s370 + $0xc0] sm:$0xfe]
      %v718 = vld [vmem:[%s370 + $0xc8] sm:$0xfe]
      %v719 = vld [vmem:[%s370 + $0xd0] sm:$0x1]
      %v720 = vld [vmem:[%s370 + $0xd8] sm:$0x1]
      %v721 = vld [vmem:[%s370 + $0xe0] sm:$0xfe]
      %v722 = vld [vmem:[%s370 + $0xe8] sm:$0xfe]
      %v723 = vld [vmem:[%s370 + $0xf0] sm:$0x1]
      %v724 = vld [vmem:[%s370 + $0xf8] sm:$0x1]
      %v757 = vrot.slane %v693, 1
      %v758 = vrot.slane %v695, 1
      %v759 = vsel %vm483, %v757, %v758
      %v760 = vrot.slane %v694, 1
      %v761 = vrot.slane %v696, 1
      %v762 = vsel %vm483, %v760, %v761
      %v763 = vrot.slane %v697, 1
      %v764 = vrot.slane %v699, 1
      %v765 = vsel %vm483, %v763, %v764
      %v766 = vrot.slane %v698, 1
      %v767 = vrot.slane %v700, 1
      %v768 = vsel %vm483, %v766, %v767
      %v769 = vrot.slane %v701, 1
      %v770 = vrot.slane %v703, 1
      %v771 = vsel %vm483, %v769, %v770
      %v772 = vrot.slane %v702, 1
      %v773 = vrot.slane %v704, 1
      %v774 = vsel %vm483, %v772, %v773
      %v775 = vrot.slane %v705, 1
      %v776 = vrot.slane %v707, 1
      %v777 = vsel %vm483, %v775, %v776
      %v778 = vrot.slane %v706, 1
      %v779 = vrot.slane %v708, 1
      %v780 = vsel %vm483, %v778, %v779
      %v781 = vrot.slane %v709, 1
      %v782 = vrot.slane %v711, 1
      %v783 = vsel %vm483, %v781, %v782
      %v784 = vrot.slane %v710, 1
      %v785 = vrot.slane %v712, 1
      %v786 = vsel %vm483, %v784, %v785
      %v787 = vrot.slane %v713, 1
      %v788 = vrot.slane %v715, 1
      %v789 = vsel %vm483, %v787, %v788
      %v790 = vrot.slane %v714, 1
      %v791 = vrot.slane %v716, 1
      %v792 = vsel %vm483, %v790, %v791
      %v793 = vrot.slane %v717, 1
      %v794 = vrot.slane %v719, 1
      %v795 = vsel %vm483, %v793, %v794
      %v796 = vrot.slane %v718, 1
      %v797 = vrot.slane %v720, 1
      %v798 = vsel %vm483, %v796, %v797
      %v799 = vrot.slane %v721, 1
      %v800 = vrot.slane %v723, 1
      %v801 = vsel %vm483, %v799, %v800
      %v802 = vrot.slane %v722, 1
      %v803 = vrot.slane %v724, 1
      %v804 = vsel %vm483, %v802, %v803
      %v821 = vld [vmem:[%s370] sm:$0xfc]
      %v822 = vld [vmem:[%s370 + $0x8] sm:$0xfc]
      %v823 = vld [vmem:[%s370 + $0x10] sm:$0x3]
      %v824 = vld [vmem:[%s370 + $0x18] sm:$0x3]
      %v825 = vld [vmem:[%s370 + $0x20] sm:$0xfc]
      %v826 = vld [vmem:[%s370 + $0x28] sm:$0xfc]
      %v827 = vld [vmem:[%s370 + $0x30] sm:$0x3]
      %v828 = vld [vmem:[%s370 + $0x38] sm:$0x3]
      %v829 = vld [vmem:[%s370 + $0x40] sm:$0xfc]
      %v830 = vld [vmem:[%s370 + $0x48] sm:$0xfc]
      %v831 = vld [vmem:[%s370 + $0x50] sm:$0x3]
      %v832 = vld [vmem:[%s370 + $0x58] sm:$0x3]
      %v833 = vld [vmem:[%s370 + $0x60] sm:$0xfc]
      %v834 = vld [vmem:[%s370 + $0x68] sm:$0xfc]
      %v835 = vld [vmem:[%s370 + $0x70] sm:$0x3]
      %v836 = vld [vmem:[%s370 + $0x78] sm:$0x3]
      %v837 = vld [vmem:[%s370 + $0x80] sm:$0xfc]
      %v838 = vld [vmem:[%s370 + $0x88] sm:$0xfc]
      %v839 = vld [vmem:[%s370 + $0x90] sm:$0x3]
      %v840 = vld [vmem:[%s370 + $0x98] sm:$0x3]
      %v841 = vld [vmem:[%s370 + $0xa0] sm:$0xfc]
      %v842 = vld [vmem:[%s370 + $0xa8] sm:$0xfc]
      %v843 = vld [vmem:[%s370 + $0xb0] sm:$0x3]
      %v844 = vld [vmem:[%s370 + $0xb8] sm:$0x3]
      %v845 = vld [vmem:[%s370 + $0xc0] sm:$0xfc]
      %v846 = vld [vmem:[%s370 + $0xc8] sm:$0xfc]
      %v847 = vld [vmem:[%s370 + $0xd0] sm:$0x3]
      %v848 = vld [vmem:[%s370 + $0xd8] sm:$0x3]
      %v849 = vld [vmem:[%s370 + $0xe0] sm:$0xfc]
      %v850 = vld [vmem:[%s370 + $0xe8] sm:$0xfc]
      %v851 = vld [vmem:[%s370 + $0xf0] sm:$0x3]
      %v852 = vld [vmem:[%s370 + $0xf8] sm:$0x3]
      %v885 = vrot.slane %v821, 2
      %v886 = vrot.slane %v823, 2
      %v887 = vsel %vm612, %v885, %v886
      %v888 = vrot.slane %v822, 2
      %v889 = vrot.slane %v824, 2
      %v890 = vsel %vm612, %v888, %v889
      %v891 = vrot.slane %v825, 2
      %v892 = vrot.slane %v827, 2
      %v893 = vsel %vm612, %v891, %v892
      %v894 = vrot.slane %v826, 2
      %v895 = vrot.slane %v828, 2
      %v896 = vsel %vm612, %v894, %v895
      %v897 = vrot.slane %v829, 2
      %v898 = vrot.slane %v831, 2
      %v899 = vsel %vm612, %v897, %v898
      %v900 = vrot.slane %v830, 2
      %v901 = vrot.slane %v832, 2
      %v902 = vsel %vm612, %v900, %v901
      %v903 = vrot.slane %v833, 2
      %v904 = vrot.slane %v835, 2
      %v905 = vsel %vm612, %v903, %v904
      %v906 = vrot.slane %v834, 2
      %v907 = vrot.slane %v836, 2
      %v908 = vsel %vm612, %v906, %v907
      %v909 = vrot.slane %v837, 2
      %v910 = vrot.slane %v839, 2
      %v911 = vsel %vm612, %v909, %v910
      %v912 = vrot.slane %v838, 2
      %v913 = vrot.slane %v840, 2
      %v914 = vsel %vm612, %v912, %v913
      %v915 = vrot.slane %v841, 2
      %v916 = vrot.slane %v843, 2
      %v917 = vsel %vm612, %v915, %v916
      %v918 = vrot.slane %v842, 2
      %v919 = vrot.slane %v844, 2
      %v920 = vsel %vm612, %v918, %v919
      %v921 = vrot.slane %v845, 2
      %v922 = vrot.slane %v847, 2
      %v923 = vsel %vm612, %v921, %v922
      %v924 = vrot.slane %v846, 2
      %v925 = vrot.slane %v848, 2
      %v926 = vsel %vm612, %v924, %v925
      %v927 = vrot.slane %v849, 2
      %v928 = vrot.slane %v851, 2
      %v929 = vsel %vm612, %v927, %v928
      %v930 = vrot.slane %v850, 2
      %v931 = vrot.slane %v852, 2
      %v932 = vsel %vm612, %v930, %v931
      %s949 = scalar_lea.vmem [#allocation2], 64
      %v950 = vld [vmem:[%s949] sm:$0xff]
      %v951 = vld [vmem:[%s949 + $0x8] sm:$0xff]
      %v952 = vld [vmem:[%s949 + $0x20] sm:$0xff]
      %v953 = vld [vmem:[%s949 + $0x28] sm:$0xff]
      %v954 = vld [vmem:[%s949 + $0x40] sm:$0xff]
      %v955 = vld [vmem:[%s949 + $0x48] sm:$0xff]
      %v956 = vld [vmem:[%s949 + $0x60] sm:$0xff]
      %v957 = vld [vmem:[%s949 + $0x68] sm:$0xff]
      %v958 = vld [vmem:[%s949 + $0x80] sm:$0xff]
      %v959 = vld [vmem:[%s949 + $0x88] sm:$0xff]
      %v960 = vld [vmem:[%s949 + $0xa0] sm:$0xff]
      %v961 = vld [vmem:[%s949 + $0xa8] sm:$0xff]
      %v962 = vld [vmem:[%s949 + $0xc0] sm:$0xff]
      %v963 = vld [vmem:[%s949 + $0xc8] sm:$0xff]
      %v964 = vld [vmem:[%s949 + $0xe0] sm:$0xff]
      %v965 = vld [vmem:[%s949 + $0xe8] sm:$0xff]
      %v966 = vld [vmem:[%s949] sm:$0xfe]
      %v967 = vld [vmem:[%s949 + $0x8] sm:$0xfe]
      %v968 = vld [vmem:[%s949 + $0x10] sm:$0x1]
      %v969 = vld [vmem:[%s949 + $0x18] sm:$0x1]
      %v970 = vld [vmem:[%s949 + $0x20] sm:$0xfe]
      %v971 = vld [vmem:[%s949 + $0x28] sm:$0xfe]
      %v972 = vld [vmem:[%s949 + $0x30] sm:$0x1]
      %v973 = vld [vmem:[%s949 + $0x38] sm:$0x1]
      %v974 = vld [vmem:[%s949 + $0x40] sm:$0xfe]
      %v975 = vld [vmem:[%s949 + $0x48] sm:$0xfe]
      %v976 = vld [vmem:[%s949 + $0x50] sm:$0x1]
      %v977 = vld [vmem:[%s949 + $0x58] sm:$0x1]
      %v978 = vld [vmem:[%s949 + $0x60] sm:$0xfe]
      %v979 = vld [vmem:[%s949 + $0x68] sm:$0xfe]
      %v980 = vld [vmem:[%s949 + $0x70] sm:$0x1]
      %v981 = vld [vmem:[%s949 + $0x78] sm:$0x1]
      %v982 = vld [vmem:[%s949 + $0x80] sm:$0xfe]
      %v983 = vld [vmem:[%s949 + $0x88] sm:$0xfe]
      %v984 = vld [vmem:[%s949 + $0x90] sm:$0x1]
      %v985 = vld [vmem:[%s949 + $0x98] sm:$0x1]
      %v986 = vld [vmem:[%s949 + $0xa0] sm:$0xfe]
      %v987 = vld [vmem:[%s949 + $0xa8] sm:$0xfe]
      %v988 = vld [vmem:[%s949 + $0xb0] sm:$0x1]
      %v989 = vld [vmem:[%s949 + $0xb8] sm:$0x1]
      %v990 = vld [vmem:[%s949 + $0xc0] sm:$0xfe]
      %v991 = vld [vmem:[%s949 + $0xc8] sm:$0xfe]
      %v992 = vld [vmem:[%s949 + $0xd0] sm:$0x1]
      %v993 = vld [vmem:[%s949 + $0xd8] sm:$0x1]
      %v994 = vld [vmem:[%s949 + $0xe0] sm:$0xfe]
      %v995 = vld [vmem:[%s949 + $0xe8] sm:$0xfe]
      %v996 = vld [vmem:[%s949 + $0xf0] sm:$0x1]
      %v997 = vld [vmem:[%s949 + $0xf8] sm:$0x1]
      %v1030 = vrot.slane %v966, 1
      %v1031 = vrot.slane %v968, 1
      %v1032 = vsel %vm483, %v1030, %v1031
      %v1033 = vrot.slane %v967, 1
      %v1034 = vrot.slane %v969, 1
      %v1035 = vsel %vm483, %v1033, %v1034
      %v1036 = vrot.slane %v970, 1
      %v1037 = vrot.slane %v972, 1
      %v1038 = vsel %vm483, %v1036, %v1037
      %v1039 = vrot.slane %v971, 1
      %v1040 = vrot.slane %v973, 1
      %v1041 = vsel %vm483, %v1039, %v1040
      %v1042 = vrot.slane %v974, 1
      %v1043 = vrot.slane %v976, 1
      %v1044 = vsel %vm483, %v1042, %v1043
      %v1045 = vrot.slane %v975, 1
      %v1046 = vrot.slane %v977, 1
      %v1047 = vsel %vm483, %v1045, %v1046
      %v1048 = vrot.slane %v978, 1
      %v1049 = vrot.slane %v980, 1
      %v1050 = vsel %vm483, %v1048, %v1049
      %v1051 = vrot.slane %v979, 1
      %v1052 = vrot.slane %v981, 1
      %v1053 = vsel %vm483, %v1051, %v1052
      %v1054 = vrot.slane %v982, 1
      %v1055 = vrot.slane %v984, 1
      %v1056 = vsel %vm483, %v1054, %v1055
      %v1057 = vrot.slane %v983, 1
      %v1058 = vrot.slane %v985, 1
      %v1059 = vsel %vm483, %v1057, %v1058
      %v1060 = vrot.slane %v986, 1
      %v1061 = vrot.slane %v988, 1
      %v1062 = vsel %vm483, %v1060, %v1061
      %v1063 = vrot.slane %v987, 1
      %v1064 = vrot.slane %v989, 1
      %v1065 = vsel %vm483, %v1063, %v1064
      %v1066 = vrot.slane %v990, 1
      %v1067 = vrot.slane %v992, 1
      %v1068 = vsel %vm483, %v1066, %v1067
      %v1069 = vrot.slane %v991, 1
      %v1070 = vrot.slane %v993, 1
      %v1071 = vsel %vm483, %v1069, %v1070
      %v1072 = vrot.slane %v994, 1
      %v1073 = vrot.slane %v996, 1
      %v1074 = vsel %vm483, %v1072, %v1073
      %v1075 = vrot.slane %v995, 1
      %v1076 = vrot.slane %v997, 1
      %v1077 = vsel %vm483, %v1075, %v1076
      %v1094 = vld [vmem:[%s949] sm:$0xfc]
      %v1095 = vld [vmem:[%s949 + $0x8] sm:$0xfc]
      %v1096 = vld [vmem:[%s949 + $0x10] sm:$0x3]
      %v1097 = vld [vmem:[%s949 + $0x18] sm:$0x3]
      %v1098 = vld [vmem:[%s949 + $0x20] sm:$0xfc]
      %v1099 = vld [vmem:[%s949 + $0x28] sm:$0xfc]
      %v1100 = vld [vmem:[%s949 + $0x30] sm:$0x3]
      %v1101 = vld [vmem:[%s949 + $0x38] sm:$0x3]
      %v1102 = vld [vmem:[%s949 + $0x40] sm:$0xfc]
      %v1103 = vld [vmem:[%s949 + $0x48] sm:$0xfc]
      %v1104 = vld [vmem:[%s949 + $0x50] sm:$0x3]
      %v1105 = vld [vmem:[%s949 + $0x58] sm:$0x3]
      %v1106 = vld [vmem:[%s949 + $0x60] sm:$0xfc]
      %v1107 = vld [vmem:[%s949 + $0x68] sm:$0xfc]
      %v1108 = vld [vmem:[%s949 + $0x70] sm:$0x3]
      %v1109 = vld [vmem:[%s949 + $0x78] sm:$0x3]
      %v1110 = vld [vmem:[%s949 + $0x80] sm:$0xfc]
      %v1111 = vld [vmem:[%s949 + $0x88] sm:$0xfc]
      %v1112 = vld [vmem:[%s949 + $0x90] sm:$0x3]
      %v1113 = vld [vmem:[%s949 + $0x98] sm:$0x3]
      %v1114 = vld [vmem:[%s949 + $0xa0] sm:$0xfc]
      %v1115 = vld [vmem:[%s949 + $0xa8] sm:$0xfc]
      %v1116 = vld [vmem:[%s949 + $0xb0] sm:$0x3]
      %v1117 = vld [vmem:[%s949 + $0xb8] sm:$0x3]
      %v1118 = vld [vmem:[%s949 + $0xc0] sm:$0xfc]
      %v1119 = vld [vmem:[%s949 + $0xc8] sm:$0xfc]
      %v1120 = vld [vmem:[%s949 + $0xd0] sm:$0x3]
      %v1121 = vld [vmem:[%s949 + $0xd8] sm:$0x3]
      %v1122 = vld [vmem:[%s949 + $0xe0] sm:$0xfc]
      %v1123 = vld [vmem:[%s949 + $0xe8] sm:$0xfc]
      %v1124 = vld [vmem:[%s949 + $0xf0] sm:$0x3]
      %v1125 = vld [vmem:[%s949 + $0xf8] sm:$0x3]
      %v1158 = vrot.slane %v1094, 2
      %v1159 = vrot.slane %v1096, 2
      %v1160 = vsel %vm612, %v1158, %v1159
      %v1161 = vrot.slane %v1095, 2
      %v1162 = vrot.slane %v1097, 2
      %v1163 = vsel %vm612, %v1161, %v1162
      %v1164 = vrot.slane %v1098, 2
      %v1165 = vrot.slane %v1100, 2
      %v1166 = vsel %vm612, %v1164, %v1165
      %v1167 = vrot.slane %v1099, 2
      %v1168 = vrot.slane %v1101, 2
      %v1169 = vsel %vm612, %v1167, %v1168
      %v1170 = vrot.slane %v1102, 2
      %v1171 = vrot.slane %v1104, 2
      %v1172 = vsel %vm612, %v1170, %v1171
      %v1173 = vrot.slane %v1103, 2
      %v1174 = vrot.slane %v1105, 2
      %v1175 = vsel %vm612, %v1173, %v1174
      %v1176 = vrot.slane %v1106, 2
      %v1177 = vrot.slane %v1108, 2
      %v1178 = vsel %vm612, %v1176, %v1177
      %v1179 = vrot.slane %v1107, 2
      %v1180 = vrot.slane %v1109, 2
      %v1181 = vsel %vm612, %v1179, %v1180
      %v1182 = vrot.slane %v1110, 2
      %v1183 = vrot.slane %v1112, 2
      %v1184 = vsel %vm612, %v1182, %v1183
      %v1185 = vrot.slane %v1111, 2
      %v1186 = vrot.slane %v1113, 2
      %v1187 = vsel %vm612, %v1185, %v1186
      %v1188 = vrot.slane %v1114, 2
      %v1189 = vrot.slane %v1116, 2
      %v1190 = vsel %vm612, %v1188, %v1189
      %v1191 = vrot.slane %v1115, 2
      %v1192 = vrot.slane %v1117, 2
      %v1193 = vsel %vm612, %v1191, %v1192
      %v1194 = vrot.slane %v1118, 2
      %v1195 = vrot.slane %v1120, 2
      %v1196 = vsel %vm612, %v1194, %v1195
      %v1197 = vrot.slane %v1119, 2
      %v1198 = vrot.slane %v1121, 2
      %v1199 = vsel %vm612, %v1197, %v1198
      %v1200 = vrot.slane %v1122, 2
      %v1201 = vrot.slane %v1124, 2
      %v1202 = vsel %vm612, %v1200, %v1201
      %v1203 = vrot.slane %v1123, 2
      %v1204 = vrot.slane %v1125, 2
      %v1205 = vsel %vm612, %v1203, %v1204
      %v1222 = vpack.c.bf16 %v405, %v403
      %v1223 = vpack.c.bf16 %v406, %v404
      %v1224 = vpack.c.bf16 %v492, %v486
      %v1225 = vpack.c.bf16 %v495, %v489
      %v1226 = vpack.c.bf16 %v621, %v615
      %v1227 = vpack.c.bf16 %v624, %v618
      %v1228 = vpack.c.bf16 %v679, %v677
      %v1229 = vpack.c.bf16 %v680, %v678
      %v1230 = vpack.c.bf16 %v765, %v759
      %v1231 = vpack.c.bf16 %v768, %v762
      %v1232 = vpack.c.bf16 %v893, %v887
      %v1233 = vpack.c.bf16 %v896, %v890
      %v1234 = vpack.c.bf16 %v952, %v950
      %v1235 = vpack.c.bf16 %v953, %v951
      %v1236 = vpack.c.bf16 %v1038, %v1032
      %v1237 = vpack.c.bf16 %v1041, %v1035
      %v1238 = vpack.c.bf16 %v1166, %v1160
      %v1239 = vpack.c.bf16 %v1169, %v1163
      %v1240 = vpack.c.bf16 %v409, %v407
      %v1241 = vpack.c.bf16 %v410, %v408
      %v1242 = vpack.c.bf16 %v504, %v498
      %v1243 = vpack.c.bf16 %v507, %v501
      %v1244 = vpack.c.bf16 %v633, %v627
      %v1245 = vpack.c.bf16 %v636, %v630
      %v1246 = vpack.c.bf16 %v683, %v681
      %v1247 = vpack.c.bf16 %v684, %v682
      %v1248 = vpack.c.bf16 %v777, %v771
      %v1249 = vpack.c.bf16 %v780, %v774
      %v1250 = vpack.c.bf16 %v905, %v899
      %v1251 = vpack.c.bf16 %v908, %v902
      %v1252 = vpack.c.bf16 %v956, %v954
      %v1253 = vpack.c.bf16 %v957, %v955
      %v1254 = vpack.c.bf16 %v1050, %v1044
      %v1255 = vpack.c.bf16 %v1053, %v1047
      %v1256 = vpack.c.bf16 %v1178, %v1172
      %v1257 = vpack.c.bf16 %v1181, %v1175
      %v1258 = vpack.c.bf16 %v413, %v411
      %v1259 = vpack.c.bf16 %v414, %v412
      %v1260 = vpack.c.bf16 %v516, %v510
      %v1261 = vpack.c.bf16 %v519, %v513
      %v1262 = vpack.c.bf16 %v645, %v639
      %v1263 = vpack.c.bf16 %v648, %v642
      %v1264 = vpack.c.bf16 %v687, %v685
      %v1265 = vpack.c.bf16 %v688, %v686
      %v1266 = vpack.c.bf16 %v789, %v783
      %v1267 = vpack.c.bf16 %v792, %v786
      %v1268 = vpack.c.bf16 %v917, %v911
      %v1269 = vpack.c.bf16 %v920, %v914
      %v1270 = vpack.c.bf16 %v960, %v958
      %v1271 = vpack.c.bf16 %v961, %v959
      %v1272 = vpack.c.bf16 %v1062, %v1056
      %v1273 = vpack.c.bf16 %v1065, %v1059
      %v1274 = vpack.c.bf16 %v1190, %v1184
      %v1275 = vpack.c.bf16 %v1193, %v1187
      %v1276 = vpack.c.bf16 %v417, %v415
      %v1277 = vpack.c.bf16 %v418, %v416
      %v1278 = vpack.c.bf16 %v528, %v522
      %v1279 = vpack.c.bf16 %v531, %v525
      %v1280 = vpack.c.bf16 %v657, %v651
      %v1281 = vpack.c.bf16 %v660, %v654
      %v1282 = vpack.c.bf16 %v691, %v689
      %v1283 = vpack.c.bf16 %v692, %v690
      %v1284 = vpack.c.bf16 %v801, %v795
      %v1285 = vpack.c.bf16 %v804, %v798
      %v1286 = vpack.c.bf16 %v929, %v923
      %v1287 = vpack.c.bf16 %v932, %v926
      %v1288 = vpack.c.bf16 %v964, %v962
      %v1289 = vpack.c.bf16 %v965, %v963
      %v1290 = vpack.c.bf16 %v1074, %v1068
      %v1291 = vpack.c.bf16 %v1077, %v1071
      %v1292 = vpack.c.bf16 %v1202, %v1196
      %v1293 = vpack.c.bf16 %v1205, %v1199
      %v1294 = vld [vmem:[%s1] sm:$0xff]
      %v1295 = vld [vmem:[%s1 + $0x8] sm:$0xff]
      %v1296 = vld [vmem:[%s1 + $0x10] sm:$0xff]
      %v1297 = vld [vmem:[%s1 + $0x18] sm:$0xff]
      %v1298 = vld [vmem:[%s1 + $0x20] sm:$0xff]
      %v1299 = vld [vmem:[%s1 + $0x28] sm:$0xff]
      %v1300 = vld [vmem:[%s1 + $0x30] sm:$0xff]
      %v1301 = vld [vmem:[%s1 + $0x38] sm:$0xff]
      %v1302 = vld [vmem:[%s1 + $0x40] sm:$0xff]
      %v1303 = vld [vmem:[%s1 + $0x48] sm:$0xff]
      %v1304 = vld [vmem:[%s1 + $0x50] sm:$0xff]
      %v1305 = vld [vmem:[%s1 + $0x58] sm:$0xff]
      %v1306 = vld [vmem:[%s1 + $0x60] sm:$0xff]
      %v1307 = vld [vmem:[%s1 + $0x68] sm:$0xff]
      %v1308 = vld [vmem:[%s1 + $0x70] sm:$0xff]
      %v1309 = vld [vmem:[%s1 + $0x78] sm:$0xff]
      %v1310 = vld [vmem:[%s1 + $0x80] sm:$0xff]
      %v1311 = vld [vmem:[%s1 + $0x88] sm:$0xff]
      %v1312 = vld [vmem:[%s1 + $0x90] sm:$0xff]
      %v1313 = vld [vmem:[%s1 + $0x98] sm:$0xff]
      %v1314 = vld [vmem:[%s1 + $0xa0] sm:$0xff]
      %v1315 = vld [vmem:[%s1 + $0xa8] sm:$0xff]
      %v1316 = vld [vmem:[%s1 + $0xb0] sm:$0xff]
      %v1317 = vld [vmem:[%s1 + $0xb8] sm:$0xff]
      %v1318 = vld [vmem:[%s1 + $0xc0] sm:$0xff]
      %v1319 = vld [vmem:[%s1 + $0xc8] sm:$0xff]
      %v1320 = vld [vmem:[%s1 + $0xd0] sm:$0xff]
      %v1321 = vld [vmem:[%s1 + $0xd8] sm:$0xff]
      %v1322 = vld [vmem:[%s1 + $0xe0] sm:$0xff]
      %v1323 = vld [vmem:[%s1 + $0xe8] sm:$0xff]
      %v1324 = vld [vmem:[%s1 + $0xf0] sm:$0xff]
      %v1325 = vld [vmem:[%s1 + $0xf8] sm:$0xff]
      %v1326 = vld [vmem:[%s1 + $0x100] sm:$0xff]
      %v1327 = vld [vmem:[%s1 + $0x108] sm:$0xff]
      %v1328 = vld [vmem:[%s1 + $0x110] sm:$0xff]
      %v1329 = vld [vmem:[%s1 + $0x118] sm:$0xff]
      %v1330 = vld [vmem:[%s1 + $0x120] sm:$0xff]
      %v1331 = vld [vmem:[%s1 + $0x128] sm:$0xff]
      %v1332 = vld [vmem:[%s1 + $0x130] sm:$0xff]
      %v1333 = vld [vmem:[%s1 + $0x138] sm:$0xff]
      %v1334 = vld [vmem:[%s1 + $0x140] sm:$0xff]
      %v1335 = vld [vmem:[%s1 + $0x148] sm:$0xff]
      %v1336 = vld [vmem:[%s1 + $0x150] sm:$0xff]
      %v1337 = vld [vmem:[%s1 + $0x158] sm:$0xff]
      %v1338 = vld [vmem:[%s1 + $0x160] sm:$0xff]
      %v1339 = vld [vmem:[%s1 + $0x168] sm:$0xff]
      %v1340 = vld [vmem:[%s1 + $0x170] sm:$0xff]
      %v1341 = vld [vmem:[%s1 + $0x178] sm:$0xff]
      %v1342 = vld [vmem:[%s1 + $0x180] sm:$0xff]
      %v1343 = vld [vmem:[%s1 + $0x188] sm:$0xff]
      %v1344 = vld [vmem:[%s1 + $0x190] sm:$0xff]
      %v1345 = vld [vmem:[%s1 + $0x198] sm:$0xff]
      %v1346 = vld [vmem:[%s1 + $0x1a0] sm:$0xff]
      %v1347 = vld [vmem:[%s1 + $0x1a8] sm:$0xff]
      %v1348 = vld [vmem:[%s1 + $0x1b0] sm:$0xff]
      %v1349 = vld [vmem:[%s1 + $0x1b8] sm:$0xff]
      %v1350 = vld [vmem:[%s1 + $0x1c0] sm:$0xff]
      %v1351 = vld [vmem:[%s1 + $0x1c8] sm:$0xff]
      %v1352 = vld [vmem:[%s1 + $0x1d0] sm:$0xff]
      %v1353 = vld [vmem:[%s1 + $0x1d8] sm:$0xff]
      %v1354 = vld [vmem:[%s1 + $0x1e0] sm:$0xff]
      %v1355 = vld [vmem:[%s1 + $0x1e8] sm:$0xff]
      %v1356 = vld [vmem:[%s1 + $0x1f0] sm:$0xff]
      %v1357 = vld [vmem:[%s1 + $0x1f8] sm:$0xff]
      %v1358 = vld [vmem:[%s1 + $0x200] sm:$0xff]
      %v1359 = vld [vmem:[%s1 + $0x208] sm:$0xff]
      %v1360 = vld [vmem:[%s1 + $0x210] sm:$0xff]
      %v1361 = vld [vmem:[%s1 + $0x218] sm:$0xff]
      %v1362 = vld [vmem:[%s1 + $0x220] sm:$0xff]
      %v1363 = vld [vmem:[%s1 + $0x228] sm:$0xff]
      %v1364 = vld [vmem:[%s1 + $0x230] sm:$0xff]
      %v1365 = vld [vmem:[%s1 + $0x238] sm:$0xff]
      %v1366 = vld [vmem:[%s1 + $0x240] sm:$0xff]
      %v1367 = vld [vmem:[%s1 + $0x248] sm:$0xff]
      %v1368 = vld [vmem:[%s1 + $0x250] sm:$0xff]
      %v1369 = vld [vmem:[%s1 + $0x258] sm:$0xff]
      %v1370 = vld [vmem:[%s1 + $0x260] sm:$0xff]
      %v1371 = vld [vmem:[%s1 + $0x268] sm:$0xff]
      %v1372 = vld [vmem:[%s1 + $0x270] sm:$0xff]
      %v1373 = vld [vmem:[%s1 + $0x278] sm:$0xff]
      %v1374 = vld [vmem:[%s1 + $0x280] sm:$0xff]
      %v1375 = vld [vmem:[%s1 + $0x288] sm:$0xff]
      %v1376 = vld [vmem:[%s1 + $0x290] sm:$0xff]
      %v1377 = vld [vmem:[%s1 + $0x298] sm:$0xff]
      %v1378 = vld [vmem:[%s1 + $0x2a0] sm:$0xff]
      %v1379 = vld [vmem:[%s1 + $0x2a8] sm:$0xff]
      %v1380 = vld [vmem:[%s1 + $0x2b0] sm:$0xff]
      %v1381 = vld [vmem:[%s1 + $0x2b8] sm:$0xff]
      %v1382 = vld [vmem:[%s1 + $0x2c0] sm:$0xff]
      %v1383 = vld [vmem:[%s1 + $0x2c8] sm:$0xff]
      %v1384 = vld [vmem:[%s1 + $0x2d0] sm:$0xff]
      %v1385 = vld [vmem:[%s1 + $0x2d8] sm:$0xff]
      %v1386 = vld [vmem:[%s1 + $0x2e0] sm:$0xff]
      %v1387 = vld [vmem:[%s1 + $0x2e8] sm:$0xff]
      %v1388 = vld [vmem:[%s1 + $0x2f0] sm:$0xff]
      %v1389 = vld [vmem:[%s1 + $0x2f8] sm:$0xff]
      %v1390 = vld [vmem:[%s1 + $0x300] sm:$0xff]
      %v1391 = vld [vmem:[%s1 + $0x308] sm:$0xff]
      %v1392 = vld [vmem:[%s1 + $0x310] sm:$0xff]
      %v1393 = vld [vmem:[%s1 + $0x318] sm:$0xff]
      %v1394 = vld [vmem:[%s1 + $0x320] sm:$0xff]
      %v1395 = vld [vmem:[%s1 + $0x328] sm:$0xff]
      %v1396 = vld [vmem:[%s1 + $0x330] sm:$0xff]
      %v1397 = vld [vmem:[%s1 + $0x338] sm:$0xff]
      %v1398 = vld [vmem:[%s1 + $0x340] sm:$0xff]
      %v1399 = vld [vmem:[%s1 + $0x348] sm:$0xff]
      %v1400 = vld [vmem:[%s1 + $0x350] sm:$0xff]
      %v1401 = vld [vmem:[%s1 + $0x358] sm:$0xff]
      %v1402 = vld [vmem:[%s1 + $0x360] sm:$0xff]
      %v1403 = vld [vmem:[%s1 + $0x368] sm:$0xff]
      %v1404 = vld [vmem:[%s1 + $0x370] sm:$0xff]
      %v1405 = vld [vmem:[%s1 + $0x378] sm:$0xff]
      %v1406 = vld [vmem:[%s1 + $0x380] sm:$0xff]
      %v1407 = vld [vmem:[%s1 + $0x388] sm:$0xff]
      %v1408 = vld [vmem:[%s1 + $0x390] sm:$0xff]
      %v1409 = vld [vmem:[%s1 + $0x398] sm:$0xff]
      %v1410 = vld [vmem:[%s1 + $0x3a0] sm:$0xff]
      %v1411 = vld [vmem:[%s1 + $0x3a8] sm:$0xff]
      %v1412 = vld [vmem:[%s1 + $0x3b0] sm:$0xff]
      %v1413 = vld [vmem:[%s1 + $0x3b8] sm:$0xff]
      %v1414 = vld [vmem:[%s1 + $0x3c0] sm:$0xff]
      %v1415 = vld [vmem:[%s1 + $0x3c8] sm:$0xff]
      %v1416 = vld [vmem:[%s1 + $0x3d0] sm:$0xff]
      %v1417 = vld [vmem:[%s1 + $0x3d8] sm:$0xff]
      %v1418 = vld [vmem:[%s1 + $0x3e0] sm:$0xff]
      %v1419 = vld [vmem:[%s1 + $0x3e8] sm:$0xff]
      %v1420 = vld [vmem:[%s1 + $0x3f0] sm:$0xff]
      %v1421 = vld [vmem:[%s1 + $0x3f8] sm:$0xff]
      %v1422 = vld [vmem:[%s1 + $0x400] sm:$0xff]
      %v1423 = vld [vmem:[%s1 + $0x408] sm:$0xff]
      %v1424 = vld [vmem:[%s1 + $0x410] sm:$0xff]
      %v1425 = vld [vmem:[%s1 + $0x418] sm:$0xff]
      %v1426 = vld [vmem:[%s1 + $0x420] sm:$0xff]
      %v1427 = vld [vmem:[%s1 + $0x428] sm:$0xff]
      %v1428 = vld [vmem:[%s1 + $0x430] sm:$0xff]
      %v1429 = vld [vmem:[%s1 + $0x438] sm:$0xff]
      %v1430 = vld [vmem:[%s1 + $0x440] sm:$0xff]
      %v1431 = vld [vmem:[%s1 + $0x448] sm:$0xff]
      %v1432 = vld [vmem:[%s1 + $0x450] sm:$0xff]
      %v1433 = vld [vmem:[%s1 + $0x458] sm:$0xff]
      %v1434 = vld [vmem:[%s1 + $0x460] sm:$0xff]
      %v1435 = vld [vmem:[%s1 + $0x468] sm:$0xff]
      %v1436 = vld [vmem:[%s1 + $0x470] sm:$0xff]
      %v1437 = vld [vmem:[%s1 + $0x478] sm:$0xff]
      %v1438 = vld [vmem:[%s1 + $0x480] sm:$0xff]
      %v1439 = vld [vmem:[%s1 + $0x488] sm:$0xff]
      %v1440 = vld [vmem:[%s1 + $0x490] sm:$0xff]
      %v1441 = vld [vmem:[%s1 + $0x498] sm:$0xff]
      %v1442 = vld [vmem:[%s1 + $0x4a0] sm:$0xff]
      %v1443 = vld [vmem:[%s1 + $0x4a8] sm:$0xff]
      %v1444 = vld [vmem:[%s1 + $0x4b0] sm:$0xff]
      %v1445 = vld [vmem:[%s1 + $0x4b8] sm:$0xff]
      %v1446 = vld [vmem:[%s1 + $0x4c0] sm:$0xff]
      %v1447 = vld [vmem:[%s1 + $0x4c8] sm:$0xff]
      %v1448 = vld [vmem:[%s1 + $0x4d0] sm:$0xff]
      %v1449 = vld [vmem:[%s1 + $0x4d8] sm:$0xff]
      %v1450 = vld [vmem:[%s1 + $0x4e0] sm:$0xff]
      %v1451 = vld [vmem:[%s1 + $0x4e8] sm:$0xff]
      %v1452 = vld [vmem:[%s1 + $0x4f0] sm:$0xff]
      %v1453 = vld [vmem:[%s1 + $0x4f8] sm:$0xff]
      %v1454 = vld [vmem:[%s1 + $0x500] sm:$0xff]
      %v1455 = vld [vmem:[%s1 + $0x508] sm:$0xff]
      %v1456 = vld [vmem:[%s1 + $0x510] sm:$0xff]
      %v1457 = vld [vmem:[%s1 + $0x518] sm:$0xff]
      %v1458 = vld [vmem:[%s1 + $0x520] sm:$0xff]
      %v1459 = vld [vmem:[%s1 + $0x528] sm:$0xff]
      %v1460 = vld [vmem:[%s1 + $0x530] sm:$0xff]
      %v1461 = vld [vmem:[%s1 + $0x538] sm:$0xff]
      %v1462 = vld [vmem:[%s1 + $0x540] sm:$0xff]
      %v1463 = vld [vmem:[%s1 + $0x548] sm:$0xff]
      %v1464 = vld [vmem:[%s1 + $0x550] sm:$0xff]
      %v1465 = vld [vmem:[%s1 + $0x558] sm:$0xff]
      %v1466 = vld [vmem:[%s1 + $0x560] sm:$0xff]
      %v1467 = vld [vmem:[%s1 + $0x568] sm:$0xff]
      %v1468 = vld [vmem:[%s1 + $0x570] sm:$0xff]
      %v1469 = vld [vmem:[%s1 + $0x578] sm:$0xff]
      %v1470 = vld [vmem:[%s1 + $0x580] sm:$0xff]
      %v1471 = vld [vmem:[%s1 + $0x588] sm:$0xff]
      %v1472 = vld [vmem:[%s1 + $0x590] sm:$0xff]
      %v1473 = vld [vmem:[%s1 + $0x598] sm:$0xff]
      %v1474 = vld [vmem:[%s1 + $0x5a0] sm:$0xff]
      %v1475 = vld [vmem:[%s1 + $0x5a8] sm:$0xff]
      %v1476 = vld [vmem:[%s1 + $0x5b0] sm:$0xff]
      %v1477 = vld [vmem:[%s1 + $0x5b8] sm:$0xff]
      %v1478 = vld [vmem:[%s1 + $0x5c0] sm:$0xff]
      %v1479 = vld [vmem:[%s1 + $0x5c8] sm:$0xff]
      %v1480 = vld [vmem:[%s1 + $0x5d0] sm:$0xff]
      %v1481 = vld [vmem:[%s1 + $0x5d8] sm:$0xff]
      %v1482 = vld [vmem:[%s1 + $0x5e0] sm:$0xff]
      %v1483 = vld [vmem:[%s1 + $0x5e8] sm:$0xff]
      %v1484 = vld [vmem:[%s1 + $0x5f0] sm:$0xff]
      %v1485 = vld [vmem:[%s1 + $0x5f8] sm:$0xff]
      %v1486 = vld [vmem:[%s1 + $0x600] sm:$0xff]
      %v1487 = vld [vmem:[%s1 + $0x608] sm:$0xff]
      %v1488 = vld [vmem:[%s1 + $0x610] sm:$0xff]
      %v1489 = vld [vmem:[%s1 + $0x618] sm:$0xff]
      %v1490 = vld [vmem:[%s1 + $0x620] sm:$0xff]
      %v1491 = vld [vmem:[%s1 + $0x628] sm:$0xff]
      %v1492 = vld [vmem:[%s1 + $0x630] sm:$0xff]
      %v1493 = vld [vmem:[%s1 + $0x638] sm:$0xff]
      %v1494 = vld [vmem:[%s1 + $0x640] sm:$0xff]
      %v1495 = vld [vmem:[%s1 + $0x648] sm:$0xff]
      %v1496 = vld [vmem:[%s1 + $0x650] sm:$0xff]
      %v1497 = vld [vmem:[%s1 + $0x658] sm:$0xff]
      %v1498 = vld [vmem:[%s1 + $0x660] sm:$0xff]
      %v1499 = vld [vmem:[%s1 + $0x668] sm:$0xff]
      %v1500 = vld [vmem:[%s1 + $0x670] sm:$0xff]
      %v1501 = vld [vmem:[%s1 + $0x678] sm:$0xff]
      %v1502 = vld [vmem:[%s1 + $0x680] sm:$0xff]
      %v1503 = vld [vmem:[%s1 + $0x688] sm:$0xff]
      %v1504 = vld [vmem:[%s1 + $0x690] sm:$0xff]
      %v1505 = vld [vmem:[%s1 + $0x698] sm:$0xff]
      %v1506 = vld [vmem:[%s1 + $0x6a0] sm:$0xff]
      %v1507 = vld [vmem:[%s1 + $0x6a8] sm:$0xff]
      %v1508 = vld [vmem:[%s1 + $0x6b0] sm:$0xff]
      %v1509 = vld [vmem:[%s1 + $0x6b8] sm:$0xff]
      %v1510 = vld [vmem:[%s1 + $0x6c0] sm:$0xff]
      %v1511 = vld [vmem:[%s1 + $0x6c8] sm:$0xff]
      %v1512 = vld [vmem:[%s1 + $0x6d0] sm:$0xff]
      %v1513 = vld [vmem:[%s1 + $0x6d8] sm:$0xff]
      %v1514 = vld [vmem:[%s1 + $0x6e0] sm:$0xff]
      %v1515 = vld [vmem:[%s1 + $0x6e8] sm:$0xff]
      %v1516 = vld [vmem:[%s1 + $0x6f0] sm:$0xff]
      %v1517 = vld [vmem:[%s1 + $0x6f8] sm:$0xff]
      %v1518 = vld [vmem:[%s1 + $0x700] sm:$0xff]
      %v1519 = vld [vmem:[%s1 + $0x708] sm:$0xff]
      %v1520 = vld [vmem:[%s1 + $0x710] sm:$0xff]
      %v1521 = vld [vmem:[%s1 + $0x718] sm:$0xff]
      %v1522 = vld [vmem:[%s1 + $0x720] sm:$0xff]
      %v1523 = vld [vmem:[%s1 + $0x728] sm:$0xff]
      %v1524 = vld [vmem:[%s1 + $0x730] sm:$0xff]
      %v1525 = vld [vmem:[%s1 + $0x738] sm:$0xff]
      %v1526 = vld [vmem:[%s1 + $0x740] sm:$0xff]
      %v1527 = vld [vmem:[%s1 + $0x748] sm:$0xff]
      %v1528 = vld [vmem:[%s1 + $0x750] sm:$0xff]
      %v1529 = vld [vmem:[%s1 + $0x758] sm:$0xff]
      %v1530 = vld [vmem:[%s1 + $0x760] sm:$0xff]
      %v1531 = vld [vmem:[%s1 + $0x768] sm:$0xff]
      %v1532 = vld [vmem:[%s1 + $0x770] sm:$0xff]
      %v1533 = vld [vmem:[%s1 + $0x778] sm:$0xff]
      %v1534 = vld [vmem:[%s1 + $0x780] sm:$0xff]
      %v1535 = vld [vmem:[%s1 + $0x788] sm:$0xff]
      %v1536 = vld [vmem:[%s1 + $0x790] sm:$0xff]
      %v1537 = vld [vmem:[%s1 + $0x798] sm:$0xff]
      %v1538 = vld [vmem:[%s1 + $0x7a0] sm:$0xff]
      %v1539 = vld [vmem:[%s1 + $0x7a8] sm:$0xff]
      %v1540 = vld [vmem:[%s1 + $0x7b0] sm:$0xff]
      %v1541 = vld [vmem:[%s1 + $0x7b8] sm:$0xff]
      %v1542 = vld [vmem:[%s1 + $0x7c0] sm:$0xff]
      %v1543 = vld [vmem:[%s1 + $0x7c8] sm:$0xff]
      %v1544 = vld [vmem:[%s1 + $0x7d0] sm:$0xff]
      %v1545 = vld [vmem:[%s1 + $0x7d8] sm:$0xff]
      %v1546 = vld [vmem:[%s1 + $0x7e0] sm:$0xff]
      %v1547 = vld [vmem:[%s1 + $0x7e8] sm:$0xff]
      %v1548 = vld [vmem:[%s1 + $0x7f0] sm:$0xff]
      %v1549 = vld [vmem:[%s1 + $0x7f8] sm:$0xff]
      %v1550 = vld [vmem:[%s1 + $0x800] sm:$0xff]
      %v1551 = vld [vmem:[%s1 + $0x808] sm:$0xff]
      %v1552 = vld [vmem:[%s1 + $0x810] sm:$0xff]
      %v1553 = vld [vmem:[%s1 + $0x818] sm:$0xff]
      %v1554 = vld [vmem:[%s1 + $0x820] sm:$0xff]
      %v1555 = vld [vmem:[%s1 + $0x828] sm:$0xff]
      %v1556 = vld [vmem:[%s1 + $0x830] sm:$0xff]
      %v1557 = vld [vmem:[%s1 + $0x838] sm:$0xff]
      %v1558 = vld [vmem:[%s1 + $0x840] sm:$0xff]
      %v1559 = vld [vmem:[%s1 + $0x848] sm:$0xff]
      %v1560 = vld [vmem:[%s1 + $0x850] sm:$0xff]
      %v1561 = vld [vmem:[%s1 + $0x858] sm:$0xff]
      %v1562 = vld [vmem:[%s1 + $0x860] sm:$0xff]
      %v1563 = vld [vmem:[%s1 + $0x868] sm:$0xff]
      %v1564 = vld [vmem:[%s1 + $0x870] sm:$0xff]
      %v1565 = vld [vmem:[%s1 + $0x878] sm:$0xff]
      %v1566 = vld [vmem:[%s1 + $0x880] sm:$0xff]
      %v1567 = vld [vmem:[%s1 + $0x888] sm:$0xff]
      %v1568 = vld [vmem:[%s1 + $0x890] sm:$0xff]
      %v1569 = vld [vmem:[%s1 + $0x898] sm:$0xff]
      %v1570 = vld [vmem:[%s1 + $0x8a0] sm:$0xff]
      %v1571 = vld [vmem:[%s1 + $0x8a8] sm:$0xff]
      %v1572 = vld [vmem:[%s1 + $0x8b0] sm:$0xff]
      %v1573 = vld [vmem:[%s1 + $0x8b8] sm:$0xff]
      %v1574 = vld [vmem:[%s1 + $0x8c0] sm:$0xff]
      %v1575 = vld [vmem:[%s1 + $0x8c8] sm:$0xff]
      %v1576 = vld [vmem:[%s1 + $0x8d0] sm:$0xff]
      %v1577 = vld [vmem:[%s1 + $0x8d8] sm:$0xff]
      %v1578 = vld [vmem:[%s1 + $0x8e0] sm:$0xff]
      %v1579 = vld [vmem:[%s1 + $0x8e8] sm:$0xff]
      %v1580 = vld [vmem:[%s1 + $0x8f0] sm:$0xff]
      %v1581 = vld [vmem:[%s1 + $0x8f8] sm:$0xff]
      %v1582 = vld [vmem:[%s2] sm:$0x3]
      %v1584 = vlaneseq
      %v1585 = vshrl.u32 %v1584, 7
      %v1586 = vsub.s32 0, %v1585
      %v1587 = vrot.slane %v1582, %v1586
      %v1588 = vlaneseq
      %v1589 = vshrl.u32 %v1588, 7
      %v1590 = vsub.s32 1, %v1589
      %v1591 = vrot.slane %v1582, %v1590
      %v1882 = vunpack.c.l.b16 %v1294
      %v1883 = vunpack.c.h.b16 %v1294
      %v1884 = vunpack.c.l.b16 %v1295
      %v1885 = vunpack.c.h.b16 %v1295
      %v1886 = vunpack.c.l.b16 %v1296
      %v1887 = vunpack.c.h.b16 %v1296
      %v1888 = vunpack.c.l.b16 %v1297
      %v1889 = vunpack.c.h.b16 %v1297
      %v1890 = vunpack.c.l.b16 %v1298
      %v1891 = vunpack.c.h.b16 %v1298
      %v1892 = vunpack.c.l.b16 %v1299
      %v1893 = vunpack.c.h.b16 %v1299
      %v1894 = vunpack.c.l.b16 %v1300
      %v1895 = vunpack.c.h.b16 %v1300
      %v1896 = vunpack.c.l.b16 %v1301
      %v1897 = vunpack.c.h.b16 %v1301
      %v1898 = vunpack.c.l.b16 %v1302
      %v1899 = vunpack.c.h.b16 %v1302
      %v1900 = vunpack.c.l.b16 %v1303
      %v1901 = vunpack.c.h.b16 %v1303
      %v1902 = vunpack.c.l.b16 %v1304
      %v1903 = vunpack.c.h.b16 %v1304
      %v1904 = vunpack.c.l.b16 %v1305
      %v1905 = vunpack.c.h.b16 %v1305
      %v1906 = vunpack.c.l.b16 %v1306
      %v1907 = vunpack.c.h.b16 %v1306
      %v1908 = vunpack.c.l.b16 %v1307
      %v1909 = vunpack.c.h.b16 %v1307
      %v1910 = vunpack.c.l.b16 %v1308
      %v1911 = vunpack.c.h.b16 %v1308
      %v1912 = vunpack.c.l.b16 %v1309
      %v1913 = vunpack.c.h.b16 %v1309
      %v1914 = vunpack.c.l.b16 %v1310
      %v1915 = vunpack.c.h.b16 %v1310
      %v1916 = vunpack.c.l.b16 %v1311
      %v1917 = vunpack.c.h.b16 %v1311
      %v1918 = vunpack.c.l.b16 %v1312
      %v1919 = vunpack.c.h.b16 %v1312
      %v1920 = vunpack.c.l.b16 %v1313
      %v1921 = vunpack.c.h.b16 %v1313
      %v1922 = vunpack.c.l.b16 %v1314
      %v1923 = vunpack.c.h.b16 %v1314
      %v1924 = vunpack.c.l.b16 %v1315
      %v1925 = vunpack.c.h.b16 %v1315
      %v1926 = vunpack.c.l.b16 %v1316
      %v1927 = vunpack.c.h.b16 %v1316
      %v1928 = vunpack.c.l.b16 %v1317
      %v1929 = vunpack.c.h.b16 %v1317
      %v1930 = vunpack.c.l.b16 %v1318
      %v1931 = vunpack.c.h.b16 %v1318
      %v1932 = vunpack.c.l.b16 %v1319
      %v1933 = vunpack.c.h.b16 %v1319
      %v1934 = vunpack.c.l.b16 %v1320
      %v1935 = vunpack.c.h.b16 %v1320
      %v1936 = vunpack.c.l.b16 %v1321
      %v1937 = vunpack.c.h.b16 %v1321
      %v1938 = vunpack.c.l.b16 %v1322
      %v1939 = vunpack.c.h.b16 %v1322
      %v1940 = vunpack.c.l.b16 %v1323
      %v1941 = vunpack.c.h.b16 %v1323
      %v1942 = vunpack.c.l.b16 %v1324
      %v1943 = vunpack.c.h.b16 %v1324
      %v1944 = vunpack.c.l.b16 %v1325
      %v1945 = vunpack.c.h.b16 %v1325
      %v1946 = vunpack.c.l.b16 %v1326
      %v1947 = vunpack.c.h.b16 %v1326
      %v1948 = vunpack.c.l.b16 %v1327
      %v1949 = vunpack.c.h.b16 %v1327
      %v1950 = vunpack.c.l.b16 %v1328
      %v1951 = vunpack.c.h.b16 %v1328
      %v1952 = vunpack.c.l.b16 %v1329
      %v1953 = vunpack.c.h.b16 %v1329
      %v1954 = vunpack.c.l.b16 %v1330
      %v1955 = vunpack.c.h.b16 %v1330
      %v1956 = vunpack.c.l.b16 %v1331
      %v1957 = vunpack.c.h.b16 %v1331
      %v1958 = vunpack.c.l.b16 %v1332
      %v1959 = vunpack.c.h.b16 %v1332
      %v1960 = vunpack.c.l.b16 %v1333
      %v1961 = vunpack.c.h.b16 %v1333
      %v1962 = vunpack.c.l.b16 %v1334
      %v1963 = vunpack.c.h.b16 %v1334
      %v1964 = vunpack.c.l.b16 %v1335
      %v1965 = vunpack.c.h.b16 %v1335
      %v1966 = vunpack.c.l.b16 %v1336
      %v1967 = vunpack.c.h.b16 %v1336
      %v1968 = vunpack.c.l.b16 %v1337
      %v1969 = vunpack.c.h.b16 %v1337
      %v1970 = vunpack.c.l.b16 %v1338
      %v1971 = vunpack.c.h.b16 %v1338
      %v1972 = vunpack.c.l.b16 %v1339
      %v1973 = vunpack.c.h.b16 %v1339
      %v1974 = vunpack.c.l.b16 %v1340
      %v1975 = vunpack.c.h.b16 %v1340
      %v1976 = vunpack.c.l.b16 %v1341
      %v1977 = vunpack.c.h.b16 %v1341
      %v1978 = vunpack.c.l.b16 %v1342
      %v1979 = vunpack.c.h.b16 %v1342
      %v1980 = vunpack.c.l.b16 %v1343
      %v1981 = vunpack.c.h.b16 %v1343
      %v1982 = vunpack.c.l.b16 %v1344
      %v1983 = vunpack.c.h.b16 %v1344
      %v1984 = vunpack.c.l.b16 %v1345
      %v1985 = vunpack.c.h.b16 %v1345
      %v1986 = vunpack.c.l.b16 %v1346
      %v1987 = vunpack.c.h.b16 %v1346
      %v1988 = vunpack.c.l.b16 %v1347
      %v1989 = vunpack.c.h.b16 %v1347
      %v1990 = vunpack.c.l.b16 %v1348
      %v1991 = vunpack.c.h.b16 %v1348
      %v1992 = vunpack.c.l.b16 %v1349
      %v1993 = vunpack.c.h.b16 %v1349
      %v1994 = vunpack.c.l.b16 %v1350
      %v1995 = vunpack.c.h.b16 %v1350
      %v1996 = vunpack.c.l.b16 %v1351
      %v1997 = vunpack.c.h.b16 %v1351
      %v1998 = vunpack.c.l.b16 %v1352
      %v1999 = vunpack.c.h.b16 %v1352
      %v2000 = vunpack.c.l.b16 %v1353
      %v2001 = vunpack.c.h.b16 %v1353
      %v2002 = vunpack.c.l.b16 %v1354
      %v2003 = vunpack.c.h.b16 %v1354
      %v2004 = vunpack.c.l.b16 %v1355
      %v2005 = vunpack.c.h.b16 %v1355
      %v2006 = vunpack.c.l.b16 %v1356
      %v2007 = vunpack.c.h.b16 %v1356
      %v2008 = vunpack.c.l.b16 %v1357
      %v2009 = vunpack.c.h.b16 %v1357
      %v2010 = vunpack.c.l.b16 %v1358
      %v2011 = vunpack.c.h.b16 %v1358
      %v2012 = vunpack.c.l.b16 %v1359
      %v2013 = vunpack.c.h.b16 %v1359
      %v2014 = vunpack.c.l.b16 %v1360
      %v2015 = vunpack.c.h.b16 %v1360
      %v2016 = vunpack.c.l.b16 %v1361
      %v2017 = vunpack.c.h.b16 %v1361
      %v2018 = vunpack.c.l.b16 %v1362
      %v2019 = vunpack.c.h.b16 %v1362
      %v2020 = vunpack.c.l.b16 %v1363
      %v2021 = vunpack.c.h.b16 %v1363
      %v2022 = vunpack.c.l.b16 %v1364
      %v2023 = vunpack.c.h.b16 %v1364
      %v2024 = vunpack.c.l.b16 %v1365
      %v2025 = vunpack.c.h.b16 %v1365
      %v2026 = vunpack.c.l.b16 %v1366
      %v2027 = vunpack.c.h.b16 %v1366
      %v2028 = vunpack.c.l.b16 %v1367
      %v2029 = vunpack.c.h.b16 %v1367
      %v2030 = vunpack.c.l.b16 %v1368
      %v2031 = vunpack.c.h.b16 %v1368
      %v2032 = vunpack.c.l.b16 %v1369
      %v2033 = vunpack.c.h.b16 %v1369
      %v2034 = vunpack.c.l.b16 %v1370
      %v2035 = vunpack.c.h.b16 %v1370
      %v2036 = vunpack.c.l.b16 %v1371
      %v2037 = vunpack.c.h.b16 %v1371
      %v2038 = vunpack.c.l.b16 %v1372
      %v2039 = vunpack.c.h.b16 %v1372
      %v2040 = vunpack.c.l.b16 %v1373
      %v2041 = vunpack.c.h.b16 %v1373
      %v2042 = vunpack.c.l.b16 %v1374
      %v2043 = vunpack.c.h.b16 %v1374
      %v2044 = vunpack.c.l.b16 %v1375
      %v2045 = vunpack.c.h.b16 %v1375
      %v2046 = vunpack.c.l.b16 %v1376
      %v2047 = vunpack.c.h.b16 %v1376
      %v2048 = vunpack.c.l.b16 %v1377
      %v2049 = vunpack.c.h.b16 %v1377
      %v2050 = vunpack.c.l.b16 %v1378
      %v2051 = vunpack.c.h.b16 %v1378
      %v2052 = vunpack.c.l.b16 %v1379
      %v2053 = vunpack.c.h.b16 %v1379
      %v2054 = vunpack.c.l.b16 %v1380
      %v2055 = vunpack.c.h.b16 %v1380
      %v2056 = vunpack.c.l.b16 %v1381
      %v2057 = vunpack.c.h.b16 %v1381
      %v2058 = vunpack.c.l.b16 %v1382
      %v2059 = vunpack.c.h.b16 %v1382
      %v2060 = vunpack.c.l.b16 %v1383
      %v2061 = vunpack.c.h.b16 %v1383
      %v2062 = vunpack.c.l.b16 %v1384
      %v2063 = vunpack.c.h.b16 %v1384
      %v2064 = vunpack.c.l.b16 %v1385
      %v2065 = vunpack.c.h.b16 %v1385
      %v2066 = vunpack.c.l.b16 %v1386
      %v2067 = vunpack.c.h.b16 %v1386
      %v2068 = vunpack.c.l.b16 %v1387
      %v2069 = vunpack.c.h.b16 %v1387
      %v2070 = vunpack.c.l.b16 %v1388
      %v2071 = vunpack.c.h.b16 %v1388
      %v2072 = vunpack.c.l.b16 %v1389
      %v2073 = vunpack.c.h.b16 %v1389
      %v2074 = vunpack.c.l.b16 %v1390
      %v2075 = vunpack.c.h.b16 %v1390
      %v2076 = vunpack.c.l.b16 %v1391
      %v2077 = vunpack.c.h.b16 %v1391
      %v2078 = vunpack.c.l.b16 %v1392
      %v2079 = vunpack.c.h.b16 %v1392
      %v2080 = vunpack.c.l.b16 %v1393
      %v2081 = vunpack.c.h.b16 %v1393
      %v2082 = vunpack.c.l.b16 %v1394
      %v2083 = vunpack.c.h.b16 %v1394
      %v2084 = vunpack.c.l.b16 %v1395
      %v2085 = vunpack.c.h.b16 %v1395
      %v2086 = vunpack.c.l.b16 %v1396
      %v2087 = vunpack.c.h.b16 %v1396
      %v2088 = vunpack.c.l.b16 %v1397
      %v2089 = vunpack.c.h.b16 %v1397
      %v2090 = vunpack.c.l.b16 %v1398
      %v2091 = vunpack.c.h.b16 %v1398
      %v2092 = vunpack.c.l.b16 %v1399
      %v2093 = vunpack.c.h.b16 %v1399
      %v2094 = vunpack.c.l.b16 %v1400
      %v2095 = vunpack.c.h.b16 %v1400
      %v2096 = vunpack.c.l.b16 %v1401
      %v2097 = vunpack.c.h.b16 %v1401
      %v2098 = vunpack.c.l.b16 %v1402
      %v2099 = vunpack.c.h.b16 %v1402
      %v2100 = vunpack.c.l.b16 %v1403
      %v2101 = vunpack.c.h.b16 %v1403
      %v2102 = vunpack.c.l.b16 %v1404
      %v2103 = vunpack.c.h.b16 %v1404
      %v2104 = vunpack.c.l.b16 %v1405
      %v2105 = vunpack.c.h.b16 %v1405
      %v2106 = vunpack.c.l.b16 %v1406
      %v2107 = vunpack.c.h.b16 %v1406
      %v2108 = vunpack.c.l.b16 %v1407
      %v2109 = vunpack.c.h.b16 %v1407
      %v2110 = vunpack.c.l.b16 %v1408
      %v2111 = vunpack.c.h.b16 %v1408
      %v2112 = vunpack.c.l.b16 %v1409
      %v2113 = vunpack.c.h.b16 %v1409
      %v2114 = vunpack.c.l.b16 %v1410
      %v2115 = vunpack.c.h.b16 %v1410
      %v2116 = vunpack.c.l.b16 %v1411
      %v2117 = vunpack.c.h.b16 %v1411
      %v2118 = vunpack.c.l.b16 %v1412
      %v2119 = vunpack.c.h.b16 %v1412
      %v2120 = vunpack.c.l.b16 %v1413
      %v2121 = vunpack.c.h.b16 %v1413
      %v2122 = vunpack.c.l.b16 %v1414
      %v2123 = vunpack.c.h.b16 %v1414
      %v2124 = vunpack.c.l.b16 %v1415
      %v2125 = vunpack.c.h.b16 %v1415
      %v2126 = vunpack.c.l.b16 %v1416
      %v2127 = vunpack.c.h.b16 %v1416
      %v2128 = vunpack.c.l.b16 %v1417
      %v2129 = vunpack.c.h.b16 %v1417
      %v2130 = vunpack.c.l.b16 %v1418
      %v2131 = vunpack.c.h.b16 %v1418
      %v2132 = vunpack.c.l.b16 %v1419
      %v2133 = vunpack.c.h.b16 %v1419
      %v2134 = vunpack.c.l.b16 %v1420
      %v2135 = vunpack.c.h.b16 %v1420
      %v2136 = vunpack.c.l.b16 %v1421
      %v2137 = vunpack.c.h.b16 %v1421
      %v2138 = vunpack.c.l.b16 %v1422
      %v2139 = vunpack.c.h.b16 %v1422
      %v2140 = vunpack.c.l.b16 %v1423
      %v2141 = vunpack.c.h.b16 %v1423
      %v2142 = vunpack.c.l.b16 %v1424
      %v2143 = vunpack.c.h.b16 %v1424
      %v2144 = vunpack.c.l.b16 %v1425
      %v2145 = vunpack.c.h.b16 %v1425
      %v2146 = vunpack.c.l.b16 %v1426
      %v2147 = vunpack.c.h.b16 %v1426
      %v2148 = vunpack.c.l.b16 %v1427
      %v2149 = vunpack.c.h.b16 %v1427
      %v2150 = vunpack.c.l.b16 %v1428
      %v2151 = vunpack.c.h.b16 %v1428
      %v2152 = vunpack.c.l.b16 %v1429
      %v2153 = vunpack.c.h.b16 %v1429
      %v2154 = vunpack.c.l.b16 %v1430
      %v2155 = vunpack.c.h.b16 %v1430
      %v2156 = vunpack.c.l.b16 %v1431
      %v2157 = vunpack.c.h.b16 %v1431
      %v2158 = vunpack.c.l.b16 %v1432
      %v2159 = vunpack.c.h.b16 %v1432
      %v2160 = vunpack.c.l.b16 %v1433
      %v2161 = vunpack.c.h.b16 %v1433
      %v2162 = vunpack.c.l.b16 %v1434
      %v2163 = vunpack.c.h.b16 %v1434
      %v2164 = vunpack.c.l.b16 %v1435
      %v2165 = vunpack.c.h.b16 %v1435
      %v2166 = vunpack.c.l.b16 %v1436
      %v2167 = vunpack.c.h.b16 %v1436
      %v2168 = vunpack.c.l.b16 %v1437
      %v2169 = vunpack.c.h.b16 %v1437
      %v2170 = vunpack.c.l.b16 %v1438
      %v2171 = vunpack.c.h.b16 %v1438
      %v2172 = vunpack.c.l.b16 %v1439
      %v2173 = vunpack.c.h.b16 %v1439
      %v2174 = vunpack.c.l.b16 %v1440
      %v2175 = vunpack.c.h.b16 %v1440
      %v2176 = vunpack.c.l.b16 %v1441
      %v2177 = vunpack.c.h.b16 %v1441
      %v2178 = vunpack.c.l.b16 %v1442
      %v2179 = vunpack.c.h.b16 %v1442
      %v2180 = vunpack.c.l.b16 %v1443
      %v2181 = vunpack.c.h.b16 %v1443
      %v2182 = vunpack.c.l.b16 %v1444
      %v2183 = vunpack.c.h.b16 %v1444
      %v2184 = vunpack.c.l.b16 %v1445
      %v2185 = vunpack.c.h.b16 %v1445
      %v2186 = vunpack.c.l.b16 %v1446
      %v2187 = vunpack.c.h.b16 %v1446
      %v2188 = vunpack.c.l.b16 %v1447
      %v2189 = vunpack.c.h.b16 %v1447
      %v2190 = vunpack.c.l.b16 %v1448
      %v2191 = vunpack.c.h.b16 %v1448
      %v2192 = vunpack.c.l.b16 %v1449
      %v2193 = vunpack.c.h.b16 %v1449
      %v2194 = vunpack.c.l.b16 %v1450
      %v2195 = vunpack.c.h.b16 %v1450
      %v2196 = vunpack.c.l.b16 %v1451
      %v2197 = vunpack.c.h.b16 %v1451
      %v2198 = vunpack.c.l.b16 %v1452
      %v2199 = vunpack.c.h.b16 %v1452
      %v2200 = vunpack.c.l.b16 %v1453
      %v2201 = vunpack.c.h.b16 %v1453
      %v2202 = vunpack.c.l.b16 %v1454
      %v2203 = vunpack.c.h.b16 %v1454
      %v2204 = vunpack.c.l.b16 %v1455
      %v2205 = vunpack.c.h.b16 %v1455
      %v2206 = vunpack.c.l.b16 %v1456
      %v2207 = vunpack.c.h.b16 %v1456
      %v2208 = vunpack.c.l.b16 %v1457
      %v2209 = vunpack.c.h.b16 %v1457
      %v2210 = vunpack.c.l.b16 %v1458
      %v2211 = vunpack.c.h.b16 %v1458
      %v2212 = vunpack.c.l.b16 %v1459
      %v2213 = vunpack.c.h.b16 %v1459
      %v2214 = vunpack.c.l.b16 %v1460
      %v2215 = vunpack.c.h.b16 %v1460
      %v2216 = vunpack.c.l.b16 %v1461
      %v2217 = vunpack.c.h.b16 %v1461
      %v2218 = vunpack.c.l.b16 %v1462
      %v2219 = vunpack.c.h.b16 %v1462
      %v2220 = vunpack.c.l.b16 %v1463
      %v2221 = vunpack.c.h.b16 %v1463
      %v2222 = vunpack.c.l.b16 %v1464
      %v2223 = vunpack.c.h.b16 %v1464
      %v2224 = vunpack.c.l.b16 %v1465
      %v2225 = vunpack.c.h.b16 %v1465
      %v2226 = vunpack.c.l.b16 %v1466
      %v2227 = vunpack.c.h.b16 %v1466
      %v2228 = vunpack.c.l.b16 %v1467
      %v2229 = vunpack.c.h.b16 %v1467
      %v2230 = vunpack.c.l.b16 %v1468
      %v2231 = vunpack.c.h.b16 %v1468
      %v2232 = vunpack.c.l.b16 %v1469
      %v2233 = vunpack.c.h.b16 %v1469
      %v2234 = vunpack.c.l.b16 %v1470
      %v2235 = vunpack.c.h.b16 %v1470
      %v2236 = vunpack.c.l.b16 %v1471
      %v2237 = vunpack.c.h.b16 %v1471
      %v2238 = vunpack.c.l.b16 %v1472
      %v2239 = vunpack.c.h.b16 %v1472
      %v2240 = vunpack.c.l.b16 %v1473
      %v2241 = vunpack.c.h.b16 %v1473
      %v2242 = vunpack.c.l.b16 %v1474
      %v2243 = vunpack.c.h.b16 %v1474
      %v2244 = vunpack.c.l.b16 %v1475
      %v2245 = vunpack.c.h.b16 %v1475
      %v2246 = vunpack.c.l.b16 %v1476
      %v2247 = vunpack.c.h.b16 %v1476
      %v2248 = vunpack.c.l.b16 %v1477
      %v2249 = vunpack.c.h.b16 %v1477
      %v2250 = vunpack.c.l.b16 %v1478
      %v2251 = vunpack.c.h.b16 %v1478
      %v2252 = vunpack.c.l.b16 %v1479
      %v2253 = vunpack.c.h.b16 %v1479
      %v2254 = vunpack.c.l.b16 %v1480
      %v2255 = vunpack.c.h.b16 %v1480
      %v2256 = vunpack.c.l.b16 %v1481
      %v2257 = vunpack.c.h.b16 %v1481
      %v2258 = vunpack.c.l.b16 %v1482
      %v2259 = vunpack.c.h.b16 %v1482
      %v2260 = vunpack.c.l.b16 %v1483
      %v2261 = vunpack.c.h.b16 %v1483
      %v2262 = vunpack.c.l.b16 %v1484
      %v2263 = vunpack.c.h.b16 %v1484
      %v2264 = vunpack.c.l.b16 %v1485
      %v2265 = vunpack.c.h.b16 %v1485
      %v2266 = vunpack.c.l.b16 %v1486
      %v2267 = vunpack.c.h.b16 %v1486
      %v2268 = vunpack.c.l.b16 %v1487
      %v2269 = vunpack.c.h.b16 %v1487
      %v2270 = vunpack.c.l.b16 %v1488
      %v2271 = vunpack.c.h.b16 %v1488
      %v2272 = vunpack.c.l.b16 %v1489
      %v2273 = vunpack.c.h.b16 %v1489
      %v2274 = vunpack.c.l.b16 %v1490
      %v2275 = vunpack.c.h.b16 %v1490
      %v2276 = vunpack.c.l.b16 %v1491
      %v2277 = vunpack.c.h.b16 %v1491
      %v2278 = vunpack.c.l.b16 %v1492
      %v2279 = vunpack.c.h.b16 %v1492
      %v2280 = vunpack.c.l.b16 %v1493
      %v2281 = vunpack.c.h.b16 %v1493
      %v2282 = vunpack.c.l.b16 %v1494
      %v2283 = vunpack.c.h.b16 %v1494
      %v2284 = vunpack.c.l.b16 %v1495
      %v2285 = vunpack.c.h.b16 %v1495
      %v2286 = vunpack.c.l.b16 %v1496
      %v2287 = vunpack.c.h.b16 %v1496
      %v2288 = vunpack.c.l.b16 %v1497
      %v2289 = vunpack.c.h.b16 %v1497
      %v2290 = vunpack.c.l.b16 %v1498
      %v2291 = vunpack.c.h.b16 %v1498
      %v2292 = vunpack.c.l.b16 %v1499
      %v2293 = vunpack.c.h.b16 %v1499
      %v2294 = vunpack.c.l.b16 %v1500
      %v2295 = vunpack.c.h.b16 %v1500
      %v2296 = vunpack.c.l.b16 %v1501
      %v2297 = vunpack.c.h.b16 %v1501
      %v2298 = vunpack.c.l.b16 %v1502
      %v2299 = vunpack.c.h.b16 %v1502
      %v2300 = vunpack.c.l.b16 %v1503
      %v2301 = vunpack.c.h.b16 %v1503
      %v2302 = vunpack.c.l.b16 %v1504
      %v2303 = vunpack.c.h.b16 %v1504
      %v2304 = vunpack.c.l.b16 %v1505
      %v2305 = vunpack.c.h.b16 %v1505
      %v2306 = vunpack.c.l.b16 %v1506
      %v2307 = vunpack.c.h.b16 %v1506
      %v2308 = vunpack.c.l.b16 %v1507
      %v2309 = vunpack.c.h.b16 %v1507
      %v2310 = vunpack.c.l.b16 %v1508
      %v2311 = vunpack.c.h.b16 %v1508
      %v2312 = vunpack.c.l.b16 %v1509
      %v2313 = vunpack.c.h.b16 %v1509
      %v2314 = vunpack.c.l.b16 %v1510
      %v2315 = vunpack.c.h.b16 %v1510
      %v2316 = vunpack.c.l.b16 %v1511
      %v2317 = vunpack.c.h.b16 %v1511
      %v2318 = vunpack.c.l.b16 %v1512
      %v2319 = vunpack.c.h.b16 %v1512
      %v2320 = vunpack.c.l.b16 %v1513
      %v2321 = vunpack.c.h.b16 %v1513
      %v2322 = vunpack.c.l.b16 %v1514
      %v2323 = vunpack.c.h.b16 %v1514
      %v2324 = vunpack.c.l.b16 %v1515
      %v2325 = vunpack.c.h.b16 %v1515
      %v2326 = vunpack.c.l.b16 %v1516
      %v2327 = vunpack.c.h.b16 %v1516
      %v2328 = vunpack.c.l.b16 %v1517
      %v2329 = vunpack.c.h.b16 %v1517
      %v2330 = vunpack.c.l.b16 %v1518
      %v2331 = vunpack.c.h.b16 %v1518
      %v2332 = vunpack.c.l.b16 %v1519
      %v2333 = vunpack.c.h.b16 %v1519
      %v2334 = vunpack.c.l.b16 %v1520
      %v2335 = vunpack.c.h.b16 %v1520
      %v2336 = vunpack.c.l.b16 %v1521
      %v2337 = vunpack.c.h.b16 %v1521
      %v2338 = vunpack.c.l.b16 %v1522
      %v2339 = vunpack.c.h.b16 %v1522
      %v2340 = vunpack.c.l.b16 %v1523
      %v2341 = vunpack.c.h.b16 %v1523
      %v2342 = vunpack.c.l.b16 %v1524
      %v2343 = vunpack.c.h.b16 %v1524
      %v2344 = vunpack.c.l.b16 %v1525
      %v2345 = vunpack.c.h.b16 %v1525
      %v2346 = vunpack.c.l.b16 %v1526
      %v2347 = vunpack.c.h.b16 %v1526
      %v2348 = vunpack.c.l.b16 %v1527
      %v2349 = vunpack.c.h.b16 %v1527
      %v2350 = vunpack.c.l.b16 %v1528
      %v2351 = vunpack.c.h.b16 %v1528
      %v2352 = vunpack.c.l.b16 %v1529
      %v2353 = vunpack.c.h.b16 %v1529
      %v2354 = vunpack.c.l.b16 %v1530
      %v2355 = vunpack.c.h.b16 %v1530
      %v2356 = vunpack.c.l.b16 %v1531
      %v2357 = vunpack.c.h.b16 %v1531
      %v2358 = vunpack.c.l.b16 %v1532
      %v2359 = vunpack.c.h.b16 %v1532
      %v2360 = vunpack.c.l.b16 %v1533
      %v2361 = vunpack.c.h.b16 %v1533
      %v2362 = vunpack.c.l.b16 %v1534
      %v2363 = vunpack.c.h.b16 %v1534
      %v2364 = vunpack.c.l.b16 %v1535
      %v2365 = vunpack.c.h.b16 %v1535
      %v2366 = vunpack.c.l.b16 %v1536
      %v2367 = vunpack.c.h.b16 %v1536
      %v2368 = vunpack.c.l.b16 %v1537
      %v2369 = vunpack.c.h.b16 %v1537
      %v2370 = vunpack.c.l.b16 %v1538
      %v2371 = vunpack.c.h.b16 %v1538
      %v2372 = vunpack.c.l.b16 %v1539
      %v2373 = vunpack.c.h.b16 %v1539
      %v2374 = vunpack.c.l.b16 %v1540
      %v2375 = vunpack.c.h.b16 %v1540
      %v2376 = vunpack.c.l.b16 %v1541
      %v2377 = vunpack.c.h.b16 %v1541
      %v2378 = vunpack.c.l.b16 %v1542
      %v2379 = vunpack.c.h.b16 %v1542
      %v2380 = vunpack.c.l.b16 %v1543
      %v2381 = vunpack.c.h.b16 %v1543
      %v2382 = vunpack.c.l.b16 %v1544
      %v2383 = vunpack.c.h.b16 %v1544
      %v2384 = vunpack.c.l.b16 %v1545
      %v2385 = vunpack.c.h.b16 %v1545
      %v2386 = vunpack.c.l.b16 %v1546
      %v2387 = vunpack.c.h.b16 %v1546
      %v2388 = vunpack.c.l.b16 %v1547
      %v2389 = vunpack.c.h.b16 %v1547
      %v2390 = vunpack.c.l.b16 %v1548
      %v2391 = vunpack.c.h.b16 %v1548
      %v2392 = vunpack.c.l.b16 %v1549
      %v2393 = vunpack.c.h.b16 %v1549
      %v2394 = vunpack.c.l.b16 %v1550
      %v2395 = vunpack.c.h.b16 %v1550
      %v2396 = vunpack.c.l.b16 %v1551
      %v2397 = vunpack.c.h.b16 %v1551
      %v2398 = vunpack.c.l.b16 %v1552
      %v2399 = vunpack.c.h.b16 %v1552
      %v2400 = vunpack.c.l.b16 %v1553
      %v2401 = vunpack.c.h.b16 %v1553
      %v2402 = vunpack.c.l.b16 %v1554
      %v2403 = vunpack.c.h.b16 %v1554
      %v2404 = vunpack.c.l.b16 %v1555
      %v2405 = vunpack.c.h.b16 %v1555
      %v2406 = vunpack.c.l.b16 %v1556
      %v2407 = vunpack.c.h.b16 %v1556
      %v2408 = vunpack.c.l.b16 %v1557
      %v2409 = vunpack.c.h.b16 %v1557
      %v2410 = vunpack.c.l.b16 %v1558
      %v2411 = vunpack.c.h.b16 %v1558
      %v2412 = vunpack.c.l.b16 %v1559
      %v2413 = vunpack.c.h.b16 %v1559
      %v2414 = vunpack.c.l.b16 %v1560
      %v2415 = vunpack.c.h.b16 %v1560
      %v2416 = vunpack.c.l.b16 %v1561
      %v2417 = vunpack.c.h.b16 %v1561
      %v2418 = vunpack.c.l.b16 %v1562
      %v2419 = vunpack.c.h.b16 %v1562
      %v2420 = vunpack.c.l.b16 %v1563
      %v2421 = vunpack.c.h.b16 %v1563
      %v2422 = vunpack.c.l.b16 %v1564
      %v2423 = vunpack.c.h.b16 %v1564
      %v2424 = vunpack.c.l.b16 %v1565
      %v2425 = vunpack.c.h.b16 %v1565
      %v2426 = vunpack.c.l.b16 %v1566
      %v2427 = vunpack.c.h.b16 %v1566
      %v2428 = vunpack.c.l.b16 %v1567
      %v2429 = vunpack.c.h.b16 %v1567
      %v2430 = vunpack.c.l.b16 %v1568
      %v2431 = vunpack.c.h.b16 %v1568
      %v2432 = vunpack.c.l.b16 %v1569
      %v2433 = vunpack.c.h.b16 %v1569
      %v2434 = vunpack.c.l.b16 %v1570
      %v2435 = vunpack.c.h.b16 %v1570
      %v2436 = vunpack.c.l.b16 %v1571
      %v2437 = vunpack.c.h.b16 %v1571
      %v2438 = vunpack.c.l.b16 %v1572
      %v2439 = vunpack.c.h.b16 %v1572
      %v2440 = vunpack.c.l.b16 %v1573
      %v2441 = vunpack.c.h.b16 %v1573
      %v2442 = vunpack.c.l.b16 %v1574
      %v2443 = vunpack.c.h.b16 %v1574
      %v2444 = vunpack.c.l.b16 %v1575
      %v2445 = vunpack.c.h.b16 %v1575
      %v2446 = vunpack.c.l.b16 %v1576
      %v2447 = vunpack.c.h.b16 %v1576
      %v2448 = vunpack.c.l.b16 %v1577
      %v2449 = vunpack.c.h.b16 %v1577
      %v2450 = vunpack.c.l.b16 %v1578
      %v2451 = vunpack.c.h.b16 %v1578
      %v2452 = vunpack.c.l.b16 %v1579
      %v2453 = vunpack.c.h.b16 %v1579
      %v2454 = vunpack.c.l.b16 %v1580
      %v2455 = vunpack.c.h.b16 %v1580
      %v2456 = vunpack.c.l.b16 %v1581
      %v2457 = vunpack.c.h.b16 %v1581
      %v2458 = vpack.c.b16 %v1884, %v1882
      %v2459 = vpack.c.b16 %v1885, %v1883
      %v2460 = vpack.c.b16 %v1888, %v1886
      %v2461 = vpack.c.b16 %v1889, %v1887
      %v2462 = vpack.c.b16 %v1892, %v1890
      %v2463 = vpack.c.b16 %v1893, %v1891
      %v2464 = vpack.c.b16 %v1896, %v1894
      %v2465 = vpack.c.b16 %v1897, %v1895
      %v2466 = vpack.c.b16 %v1900, %v1898
      %v2467 = vpack.c.b16 %v1901, %v1899
      %v2468 = vpack.c.b16 %v1904, %v1902
      %v2469 = vpack.c.b16 %v1905, %v1903
      %v2470 = vpack.c.b16 %v1908, %v1906
      %v2471 = vpack.c.b16 %v1909, %v1907
      %v2472 = vpack.c.b16 %v1912, %v1910
      %v2473 = vpack.c.b16 %v1913, %v1911
      %v2474 = vpack.c.b16 %v1916, %v1914
      %v2475 = vpack.c.b16 %v1917, %v1915
      %v2476 = vpack.c.b16 %v1920, %v1918
      %v2477 = vpack.c.b16 %v1921, %v1919
      %v2478 = vpack.c.b16 %v1924, %v1922
      %v2479 = vpack.c.b16 %v1925, %v1923
      %v2480 = vpack.c.b16 %v1928, %v1926
      %v2481 = vpack.c.b16 %v1929, %v1927
      %v2482 = vpack.c.b16 %v1932, %v1930
      %v2483 = vpack.c.b16 %v1933, %v1931
      %v2484 = vpack.c.b16 %v1936, %v1934
      %v2485 = vpack.c.b16 %v1937, %v1935
      %v2486 = vpack.c.b16 %v1940, %v1938
      %v2487 = vpack.c.b16 %v1941, %v1939
      %v2488 = vpack.c.b16 %v1944, %v1942
      %v2489 = vpack.c.b16 %v1945, %v1943
      %v2490 = vpack.c.b16 %v1948, %v1946
      %v2491 = vpack.c.b16 %v1949, %v1947
      %v2492 = vpack.c.b16 %v1952, %v1950
      %v2493 = vpack.c.b16 %v1953, %v1951
      %v2494 = vpack.c.b16 %v1956, %v1954
      %v2495 = vpack.c.b16 %v1957, %v1955
      %v2496 = vpack.c.b16 %v1960, %v1958
      %v2497 = vpack.c.b16 %v1961, %v1959
      %v2498 = vpack.c.b16 %v1964, %v1962
      %v2499 = vpack.c.b16 %v1965, %v1963
      %v2500 = vpack.c.b16 %v1968, %v1966
      %v2501 = vpack.c.b16 %v1969, %v1967
      %v2502 = vpack.c.b16 %v1972, %v1970
      %v2503 = vpack.c.b16 %v1973, %v1971
      %v2504 = vpack.c.b16 %v1976, %v1974
      %v2505 = vpack.c.b16 %v1977, %v1975
      %v2506 = vpack.c.b16 %v1980, %v1978
      %v2507 = vpack.c.b16 %v1981, %v1979
      %v2508 = vpack.c.b16 %v1984, %v1982
      %v2509 = vpack.c.b16 %v1985, %v1983
      %v2510 = vpack.c.b16 %v1988, %v1986
      %v2511 = vpack.c.b16 %v1989, %v1987
      %v2512 = vpack.c.b16 %v1992, %v1990
      %v2513 = vpack.c.b16 %v1993, %v1991
      %v2514 = vpack.c.b16 %v1996, %v1994
      %v2515 = vpack.c.b16 %v1997, %v1995
      %v2516 = vpack.c.b16 %v2000, %v1998
      %v2517 = vpack.c.b16 %v2001, %v1999
      %v2518 = vpack.c.b16 %v2004, %v2002
      %v2519 = vpack.c.b16 %v2005, %v2003
      %v2520 = vpack.c.b16 %v2008, %v2006
      %v2521 = vpack.c.b16 %v2009, %v2007
      %v2522 = vpack.c.b16 %v2012, %v2010
      %v2523 = vpack.c.b16 %v2013, %v2011
      %v2524 = vpack.c.b16 %v2016, %v2014
      %v2525 = vpack.c.b16 %v2017, %v2015
      %v2526 = vpack.c.b16 %v2020, %v2018
      %v2527 = vpack.c.b16 %v2021, %v2019
      %v2528 = vpack.c.b16 %v2024, %v2022
      %v2529 = vpack.c.b16 %v2025, %v2023
      %v2530 = vpack.c.b16 %v2028, %v2026
      %v2531 = vpack.c.b16 %v2029, %v2027
      %v2532 = vpack.c.b16 %v2032, %v2030
      %v2533 = vpack.c.b16 %v2033, %v2031
      %v2534 = vpack.c.b16 %v2036, %v2034
      %v2535 = vpack.c.b16 %v2037, %v2035
      %v2536 = vpack.c.b16 %v2040, %v2038
      %v2537 = vpack.c.b16 %v2041, %v2039
      %v2538 = vpack.c.b16 %v2044, %v2042
      %v2539 = vpack.c.b16 %v2045, %v2043
      %v2540 = vpack.c.b16 %v2048, %v2046
      %v2541 = vpack.c.b16 %v2049, %v2047
      %v2542 = vpack.c.b16 %v2052, %v2050
      %v2543 = vpack.c.b16 %v2053, %v2051
      %v2544 = vpack.c.b16 %v2056, %v2054
      %v2545 = vpack.c.b16 %v2057, %v2055
      %v2546 = vpack.c.b16 %v2060, %v2058
      %v2547 = vpack.c.b16 %v2061, %v2059
      %v2548 = vpack.c.b16 %v2064, %v2062
      %v2549 = vpack.c.b16 %v2065, %v2063
      %v2550 = vpack.c.b16 %v2068, %v2066
      %v2551 = vpack.c.b16 %v2069, %v2067
      %v2552 = vpack.c.b16 %v2072, %v2070
      %v2553 = vpack.c.b16 %v2073, %v2071
      %v2554 = vpack.c.b16 %v2076, %v2074
      %v2555 = vpack.c.b16 %v2077, %v2075
      %v2556 = vpack.c.b16 %v2080, %v2078
      %v2557 = vpack.c.b16 %v2081, %v2079
      %v2558 = vpack.c.b16 %v2084, %v2082
      %v2559 = vpack.c.b16 %v2085, %v2083
      %v2560 = vpack.c.b16 %v2088, %v2086
      %v2561 = vpack.c.b16 %v2089, %v2087
      %v2562 = vpack.c.b16 %v2092, %v2090
      %v2563 = vpack.c.b16 %v2093, %v2091
      %v2564 = vpack.c.b16 %v2096, %v2094
      %v2565 = vpack.c.b16 %v2097, %v2095
      %v2566 = vpack.c.b16 %v2100, %v2098
      %v2567 = vpack.c.b16 %v2101, %v2099
      %v2568 = vpack.c.b16 %v2104, %v2102
      %v2569 = vpack.c.b16 %v2105, %v2103
      %v2570 = vpack.c.b16 %v2108, %v2106
      %v2571 = vpack.c.b16 %v2109, %v2107
      %v2572 = vpack.c.b16 %v2112, %v2110
      %v2573 = vpack.c.b16 %v2113, %v2111
      %v2574 = vpack.c.b16 %v2116, %v2114
      %v2575 = vpack.c.b16 %v2117, %v2115
      %v2576 = vpack.c.b16 %v2120, %v2118
      %v2577 = vpack.c.b16 %v2121, %v2119
      %v2578 = vpack.c.b16 %v2124, %v2122
      %v2579 = vpack.c.b16 %v2125, %v2123
      %v2580 = vpack.c.b16 %v2128, %v2126
      %v2581 = vpack.c.b16 %v2129, %v2127
      %v2582 = vpack.c.b16 %v2132, %v2130
      %v2583 = vpack.c.b16 %v2133, %v2131
      %v2584 = vpack.c.b16 %v2136, %v2134
      %v2585 = vpack.c.b16 %v2137, %v2135
      %v2586 = vpack.c.b16 %v2140, %v2138
      %v2587 = vpack.c.b16 %v2141, %v2139
      %v2588 = vpack.c.b16 %v2144, %v2142
      %v2589 = vpack.c.b16 %v2145, %v2143
      %v2590 = vpack.c.b16 %v2148, %v2146
      %v2591 = vpack.c.b16 %v2149, %v2147
      %v2592 = vpack.c.b16 %v2152, %v2150
      %v2593 = vpack.c.b16 %v2153, %v2151
      %v2594 = vpack.c.b16 %v2156, %v2154
      %v2595 = vpack.c.b16 %v2157, %v2155
      %v2596 = vpack.c.b16 %v2160, %v2158
      %v2597 = vpack.c.b16 %v2161, %v2159
      %v2598 = vpack.c.b16 %v2164, %v2162
      %v2599 = vpack.c.b16 %v2165, %v2163
      %v2600 = vpack.c.b16 %v2168, %v2166
      %v2601 = vpack.c.b16 %v2169, %v2167
      %v2602 = vpack.c.b16 %v2172, %v2170
      %v2603 = vpack.c.b16 %v2173, %v2171
      %v2604 = vpack.c.b16 %v2176, %v2174
      %v2605 = vpack.c.b16 %v2177, %v2175
      %v2606 = vpack.c.b16 %v2180, %v2178
      %v2607 = vpack.c.b16 %v2181, %v2179
      %v2608 = vpack.c.b16 %v2184, %v2182
      %v2609 = vpack.c.b16 %v2185, %v2183
      %v2610 = vpack.c.b16 %v2188, %v2186
      %v2611 = vpack.c.b16 %v2189, %v2187
      %v2612 = vpack.c.b16 %v2192, %v2190
      %v2613 = vpack.c.b16 %v2193, %v2191
      %v2614 = vpack.c.b16 %v2196, %v2194
      %v2615 = vpack.c.b16 %v2197, %v2195
      %v2616 = vpack.c.b16 %v2200, %v2198
      %v2617 = vpack.c.b16 %v2201, %v2199
      %v2618 = vpack.c.b16 %v2204, %v2202
      %v2619 = vpack.c.b16 %v2205, %v2203
      %v2620 = vpack.c.b16 %v2208, %v2206
      %v2621 = vpack.c.b16 %v2209, %v2207
      %v2622 = vpack.c.b16 %v2212, %v2210
      %v2623 = vpack.c.b16 %v2213, %v2211
      %v2624 = vpack.c.b16 %v2216, %v2214
      %v2625 = vpack.c.b16 %v2217, %v2215
      %v2626 = vpack.c.b16 %v2220, %v2218
      %v2627 = vpack.c.b16 %v2221, %v2219
      %v2628 = vpack.c.b16 %v2224, %v2222
      %v2629 = vpack.c.b16 %v2225, %v2223
      %v2630 = vpack.c.b16 %v2228, %v2226
      %v2631 = vpack.c.b16 %v2229, %v2227
      %v2632 = vpack.c.b16 %v2232, %v2230
      %v2633 = vpack.c.b16 %v2233, %v2231
      %v2634 = vpack.c.b16 %v2236, %v2234
      %v2635 = vpack.c.b16 %v2237, %v2235
      %v2636 = vpack.c.b16 %v2240, %v2238
      %v2637 = vpack.c.b16 %v2241, %v2239
      %v2638 = vpack.c.b16 %v2244, %v2242
      %v2639 = vpack.c.b16 %v2245, %v2243
      %v2640 = vpack.c.b16 %v2248, %v2246
      %v2641 = vpack.c.b16 %v2249, %v2247
      %v2642 = vpack.c.b16 %v2252, %v2250
      %v2643 = vpack.c.b16 %v2253, %v2251
      %v2644 = vpack.c.b16 %v2256, %v2254
      %v2645 = vpack.c.b16 %v2257, %v2255
      %v2646 = vpack.c.b16 %v2260, %v2258
      %v2647 = vpack.c.b16 %v2261, %v2259
      %v2648 = vpack.c.b16 %v2264, %v2262
      %v2649 = vpack.c.b16 %v2265, %v2263
      %v2650 = vpack.c.b16 %v2268, %v2266
      %v2651 = vpack.c.b16 %v2269, %v2267
      %v2652 = vpack.c.b16 %v2272, %v2270
      %v2653 = vpack.c.b16 %v2273, %v2271
      %v2654 = vpack.c.b16 %v2276, %v2274
      %v2655 = vpack.c.b16 %v2277, %v2275
      %v2656 = vpack.c.b16 %v2280, %v2278
      %v2657 = vpack.c.b16 %v2281, %v2279
      %v2658 = vpack.c.b16 %v2284, %v2282
      %v2659 = vpack.c.b16 %v2285, %v2283
      %v2660 = vpack.c.b16 %v2288, %v2286
      %v2661 = vpack.c.b16 %v2289, %v2287
      %v2662 = vpack.c.b16 %v2292, %v2290
      %v2663 = vpack.c.b16 %v2293, %v2291
      %v2664 = vpack.c.b16 %v2296, %v2294
      %v2665 = vpack.c.b16 %v2297, %v2295
      %v2666 = vpack.c.b16 %v2300, %v2298
      %v2667 = vpack.c.b16 %v2301, %v2299
      %v2668 = vpack.c.b16 %v2304, %v2302
      %v2669 = vpack.c.b16 %v2305, %v2303
      %v2670 = vpack.c.b16 %v2308, %v2306
      %v2671 = vpack.c.b16 %v2309, %v2307
      %v2672 = vpack.c.b16 %v2312, %v2310
      %v2673 = vpack.c.b16 %v2313, %v2311
      %v2674 = vpack.c.b16 %v2316, %v2314
      %v2675 = vpack.c.b16 %v2317, %v2315
      %v2676 = vpack.c.b16 %v2320, %v2318
      %v2677 = vpack.c.b16 %v2321, %v2319
      %v2678 = vpack.c.b16 %v2324, %v2322
      %v2679 = vpack.c.b16 %v2325, %v2323
      %v2680 = vpack.c.b16 %v2328, %v2326
      %v2681 = vpack.c.b16 %v2329, %v2327
      %v2682 = vpack.c.b16 %v2332, %v2330
      %v2683 = vpack.c.b16 %v2333, %v2331
      %v2684 = vpack.c.b16 %v2336, %v2334
      %v2685 = vpack.c.b16 %v2337, %v2335
      %v2686 = vpack.c.b16 %v2340, %v2338
      %v2687 = vpack.c.b16 %v2341, %v2339
      %v2688 = vpack.c.b16 %v2344, %v2342
      %v2689 = vpack.c.b16 %v2345, %v2343
      %v2690 = vpack.c.b16 %v2348, %v2346
      %v2691 = vpack.c.b16 %v2349, %v2347
      %v2692 = vpack.c.b16 %v2352, %v2350
      %v2693 = vpack.c.b16 %v2353, %v2351
      %v2694 = vpack.c.b16 %v2356, %v2354
      %v2695 = vpack.c.b16 %v2357, %v2355
      %v2696 = vpack.c.b16 %v2360, %v2358
      %v2697 = vpack.c.b16 %v2361, %v2359
      %v2698 = vpack.c.b16 %v2364, %v2362
      %v2699 = vpack.c.b16 %v2365, %v2363
      %v2700 = vpack.c.b16 %v2368, %v2366
      %v2701 = vpack.c.b16 %v2369, %v2367
      %v2702 = vpack.c.b16 %v2372, %v2370
      %v2703 = vpack.c.b16 %v2373, %v2371
      %v2704 = vpack.c.b16 %v2376, %v2374
      %v2705 = vpack.c.b16 %v2377, %v2375
      %v2706 = vpack.c.b16 %v2380, %v2378
      %v2707 = vpack.c.b16 %v2381, %v2379
      %v2708 = vpack.c.b16 %v2384, %v2382
      %v2709 = vpack.c.b16 %v2385, %v2383
      %v2710 = vpack.c.b16 %v2388, %v2386
      %v2711 = vpack.c.b16 %v2389, %v2387
      %v2712 = vpack.c.b16 %v2392, %v2390
      %v2713 = vpack.c.b16 %v2393, %v2391
      %v2714 = vpack.c.b16 %v2396, %v2394
      %v2715 = vpack.c.b16 %v2397, %v2395
      %v2716 = vpack.c.b16 %v2400, %v2398
      %v2717 = vpack.c.b16 %v2401, %v2399
      %v2718 = vpack.c.b16 %v2404, %v2402
      %v2719 = vpack.c.b16 %v2405, %v2403
      %v2720 = vpack.c.b16 %v2408, %v2406
      %v2721 = vpack.c.b16 %v2409, %v2407
      %v2722 = vpack.c.b16 %v2412, %v2410
      %v2723 = vpack.c.b16 %v2413, %v2411
      %v2724 = vpack.c.b16 %v2416, %v2414
      %v2725 = vpack.c.b16 %v2417, %v2415
      %v2726 = vpack.c.b16 %v2420, %v2418
      %v2727 = vpack.c.b16 %v2421, %v2419
      %v2728 = vpack.c.b16 %v2424, %v2422
      %v2729 = vpack.c.b16 %v2425, %v2423
      %v2730 = vpack.c.b16 %v2428, %v2426
      %v2731 = vpack.c.b16 %v2429, %v2427
      %v2732 = vpack.c.b16 %v2432, %v2430
      %v2733 = vpack.c.b16 %v2433, %v2431
      %v2734 = vpack.c.b16 %v2436, %v2434
      %v2735 = vpack.c.b16 %v2437, %v2435
      %v2736 = vpack.c.b16 %v2440, %v2438
      %v2737 = vpack.c.b16 %v2441, %v2439
      %v2738 = vpack.c.b16 %v2444, %v2442
      %v2739 = vpack.c.b16 %v2445, %v2443
      %v2740 = vpack.c.b16 %v2448, %v2446
      %v2741 = vpack.c.b16 %v2449, %v2447
      %v2742 = vpack.c.b16 %v2452, %v2450
      %v2743 = vpack.c.b16 %v2453, %v2451
      %v2744 = vpack.c.b16 %v2456, %v2454
      %v2745 = vpack.c.b16 %v2457, %v2455
      %3034 = vmatprep.subr.bf16.mxu0 %v2473
      %3035 = vmatpush1.bf16.msra.mxu0 %v2472
      %3036 = vmatprep.subr.bf16.mxu0 %v2471
      %3037 = vmatpush1.bf16.msra.mxu0 %v2470
      %3038 = vmatprep.subr.bf16.mxu0 %v2469
      %3039 = vmatpush1.bf16.msra.mxu0 %v2468
      %3040 = vmatprep.subr.bf16.mxu0 %v2467
      %3041 = vmatpush1.bf16.msra.mxu0 %v2466
      %3042 = vmatprep.subr.bf16.mxu0 %v2465
      %3043 = vmatpush1.bf16.msra.mxu0 %v2464
      %3044 = vmatprep.subr.bf16.mxu0 %v2463
      %3045 = vmatpush1.bf16.msra.mxu0 %v2462
      %3046 = vmatprep.subr.bf16.mxu0 %v2461
      %3047 = vmatpush1.bf16.msra.mxu0 %v2460
      %3048 = vmatprep.subr.bf16.mxu0 %v2459
      %3049 = vmatpush1.bf16.msra.mxu0 %v2458
      %3050 = vmatprep.subr.bf16.mxu0 %v2489
      %3051 = vmatpush2.bf16.msra.mxu0 %v2488
      %3052 = vmatprep.subr.bf16.mxu0 %v2487
      %3053 = vmatpush2.bf16.msra.mxu0 %v2486
      %3054 = vmatprep.subr.bf16.mxu0 %v2485
      %3055 = vmatpush2.bf16.msra.mxu0 %v2484
      %3056 = vmatprep.subr.bf16.mxu0 %v2483
      %3057 = vmatpush2.bf16.msra.mxu0 %v2482
      %3058 = vmatprep.subr.bf16.mxu0 %v2481
      %3059 = vmatpush2.bf16.msra.mxu0 %v2480
      %3060 = vmatprep.subr.bf16.mxu0 %v2479
      %3061 = vmatpush2.bf16.msra.mxu0 %v2478
      %3062 = vmatprep.subr.bf16.mxu0 %v2477
      %3063 = vmatpush2.bf16.msra.mxu0 %v2476
      %3064 = vmatprep.subr.bf16.mxu0 %v2475
      %3065 = vmatpush2.bf16.msra.mxu0 %v2474
      %3066 = vmatprep.mubr.bf16.mxu0 %v1223
      %3067 = vmatmul.mubr.bf16.gmra.mxu0 %v1222
      %v3068 = vpop.f32.mrf.mxu0
      %v3069 = vadd.f32 %v1587, %v3068
      %v3070 = vpop.f32.mrf.mxu0
      %v3071 = vadd.f32 %v1591, %v3070
      %v3072 = vpop.f32.mrf.mxu0
      %v3073 = vadd.f32 %v1587, %v3072
      %v3074 = vpop.f32.mrf.mxu0
      %v3075 = vadd.f32 %v1591, %v3074
      %3076 = vmatprep.mubr.bf16.mxu0 %v1241
      %3077 = vmatmul.mubr.bf16.gmra.mxu0 %v1240
      %v3078 = vpop.f32.mrf.mxu0
      %v3079 = vadd.f32 %v1587, %v3078
      %v3080 = vpop.f32.mrf.mxu0
      %v3081 = vadd.f32 %v1591, %v3080
      %v3082 = vpop.f32.mrf.mxu0
      %v3083 = vadd.f32 %v1587, %v3082
      %v3084 = vpop.f32.mrf.mxu0
      %v3085 = vadd.f32 %v1591, %v3084
      %3086 = vmatprep.mubr.bf16.mxu0 %v1259
      %3087 = vmatmul.mubr.bf16.gmra.mxu0 %v1258
      %v3088 = vpop.f32.mrf.mxu0
      %v3089 = vadd.f32 %v1587, %v3088
      %v3090 = vpop.f32.mrf.mxu0
      %v3091 = vadd.f32 %v1591, %v3090
      %v3092 = vpop.f32.mrf.mxu0
      %v3093 = vadd.f32 %v1587, %v3092
      %v3094 = vpop.f32.mrf.mxu0
      %v3095 = vadd.f32 %v1591, %v3094
      %3096 = vmatprep.mubr.bf16.mxu0 %v1277
      %3097 = vmatmul.mubr.bf16.gmra.mxu0 %v1276
      %v3098 = vpop.f32.mrf.mxu0
      %v3099 = vadd.f32 %v1587, %v3098
      %v3100 = vpop.f32.mrf.mxu0
      %v3101 = vadd.f32 %v1591, %v3100
      %v3102 = vpop.f32.mrf.mxu0
      %v3103 = vadd.f32 %v1587, %v3102
      %v3104 = vpop.f32.mrf.mxu0
      %v3105 = vadd.f32 %v1591, %v3104
      %3106 = vdwg.mxu0
      %3107 = vmatprep.subr.bf16.mxu0 %v2505
      %3108 = vmatpush1.bf16.msra.mxu0 %v2504
      %3109 = vmatprep.subr.bf16.mxu0 %v2503
      %3110 = vmatpush1.bf16.msra.mxu0 %v2502
      %3111 = vmatprep.subr.bf16.mxu0 %v2501
      %3112 = vmatpush1.bf16.msra.mxu0 %v2500
      %3113 = vmatprep.subr.bf16.mxu0 %v2499
      %3114 = vmatpush1.bf16.msra.mxu0 %v2498
      %3115 = vmatprep.subr.bf16.mxu0 %v2497
      %3116 = vmatpush1.bf16.msra.mxu0 %v2496
      %3117 = vmatprep.subr.bf16.mxu0 %v2495
      %3118 = vmatpush1.bf16.msra.mxu0 %v2494
      %3119 = vmatprep.subr.bf16.mxu0 %v2493
      %3120 = vmatpush1.bf16.msra.mxu0 %v2492
      %3121 = vmatprep.subr.bf16.mxu0 %v2491
      %3122 = vmatpush1.bf16.msra.mxu0 %v2490
      %3123 = vmatprep.subr.bf16.mxu0 %v2521
      %3124 = vmatpush2.bf16.msra.mxu0 %v2520
      %3125 = vmatprep.subr.bf16.mxu0 %v2519
      %3126 = vmatpush2.bf16.msra.mxu0 %v2518
      %3127 = vmatprep.subr.bf16.mxu0 %v2517
      %3128 = vmatpush2.bf16.msra.mxu0 %v2516
      %3129 = vmatprep.subr.bf16.mxu0 %v2515
      %3130 = vmatpush2.bf16.msra.mxu0 %v2514
      %3131 = vmatprep.subr.bf16.mxu0 %v2513
      %3132 = vmatpush2.bf16.msra.mxu0 %v2512
      %3133 = vmatprep.subr.bf16.mxu0 %v2511
      %3134 = vmatpush2.bf16.msra.mxu0 %v2510
      %3135 = vmatprep.subr.bf16.mxu0 %v2509
      %3136 = vmatpush2.bf16.msra.mxu0 %v2508
      %3137 = vmatprep.subr.bf16.mxu0 %v2507
      %3138 = vmatpush2.bf16.msra.mxu0 %v2506
      %3139 = vmatprep.mubr.bf16.mxu0 %v1225
      %3140 = vmatmul.mubr.bf16.gmra.mxu0 %v1224
      %v3141 = vpop.f32.mrf.mxu0
      %v3142 = vadd.f32 %v3069, %v3141
      %v3143 = vpop.f32.mrf.mxu0
      %v3144 = vadd.f32 %v3071, %v3143
      %v3145 = vpop.f32.mrf.mxu0
      %v3146 = vadd.f32 %v3073, %v3145
      %v3147 = vpop.f32.mrf.mxu0
      %v3148 = vadd.f32 %v3075, %v3147
      %3149 = vmatprep.mubr.bf16.mxu0 %v1243
      %3150 = vmatmul.mubr.bf16.gmra.mxu0 %v1242
      %v3151 = vpop.f32.mrf.mxu0
      %v3152 = vadd.f32 %v3079, %v3151
      %v3153 = vpop.f32.mrf.mxu0
      %v3154 = vadd.f32 %v3081, %v3153
      %v3155 = vpop.f32.mrf.mxu0
      %v3156 = vadd.f32 %v3083, %v3155
      %v3157 = vpop.f32.mrf.mxu0
      %v3158 = vadd.f32 %v3085, %v3157
      %3159 = vmatprep.mubr.bf16.mxu0 %v1261
      %3160 = vmatmul.mubr.bf16.gmra.mxu0 %v1260
      %v3161 = vpop.f32.mrf.mxu0
      %v3162 = vadd.f32 %v3089, %v3161
      %v3163 = vpop.f32.mrf.mxu0
      %v3164 = vadd.f32 %v3091, %v3163
      %v3165 = vpop.f32.mrf.mxu0
      %v3166 = vadd.f32 %v3093, %v3165
      %v3167 = vpop.f32.mrf.mxu0
      %v3168 = vadd.f32 %v3095, %v3167
      %3169 = vmatprep.mubr.bf16.mxu0 %v1279
      %3170 = vmatmul.mubr.bf16.gmra.mxu0 %v1278
      %v3171 = vpop.f32.mrf.mxu0
      %v3172 = vadd.f32 %v3099, %v3171
      %v3173 = vpop.f32.mrf.mxu0
      %v3174 = vadd.f32 %v3101, %v3173
      %v3175 = vpop.f32.mrf.mxu0
      %v3176 = vadd.f32 %v3103, %v3175
      %v3177 = vpop.f32.mrf.mxu0
      %v3178 = vadd.f32 %v3105, %v3177
      %3179 = vdwg.mxu0
      %3180 = vmatprep.subr.bf16.mxu0 %v2537
      %3181 = vmatpush1.bf16.msra.mxu0 %v2536
      %3182 = vmatprep.subr.bf16.mxu0 %v2535
      %3183 = vmatpush1.bf16.msra.mxu0 %v2534
      %3184 = vmatprep.subr.bf16.mxu0 %v2533
      %3185 = vmatpush1.bf16.msra.mxu0 %v2532
      %3186 = vmatprep.subr.bf16.mxu0 %v2531
      %3187 = vmatpush1.bf16.msra.mxu0 %v2530
      %3188 = vmatprep.subr.bf16.mxu0 %v2529
      %3189 = vmatpush1.bf16.msra.mxu0 %v2528
      %3190 = vmatprep.subr.bf16.mxu0 %v2527
      %3191 = vmatpush1.bf16.msra.mxu0 %v2526
      %3192 = vmatprep.subr.bf16.mxu0 %v2525
      %3193 = vmatpush1.bf16.msra.mxu0 %v2524
      %3194 = vmatprep.subr.bf16.mxu0 %v2523
      %3195 = vmatpush1.bf16.msra.mxu0 %v2522
      %3196 = vmatprep.subr.bf16.mxu0 %v2553
      %3197 = vmatpush2.bf16.msra.mxu0 %v2552
      %3198 = vmatprep.subr.bf16.mxu0 %v2551
      %3199 = vmatpush2.bf16.msra.mxu0 %v2550
      %3200 = vmatprep.subr.bf16.mxu0 %v2549
      %3201 = vmatpush2.bf16.msra.mxu0 %v2548
      %3202 = vmatprep.subr.bf16.mxu0 %v2547
      %3203 = vmatpush2.bf16.msra.mxu0 %v2546
      %3204 = vmatprep.subr.bf16.mxu0 %v2545
      %3205 = vmatpush2.bf16.msra.mxu0 %v2544
      %3206 = vmatprep.subr.bf16.mxu0 %v2543
      %3207 = vmatpush2.bf16.msra.mxu0 %v2542
      %3208 = vmatprep.subr.bf16.mxu0 %v2541
      %3209 = vmatpush2.bf16.msra.mxu0 %v2540
      %3210 = vmatprep.subr.bf16.mxu0 %v2539
      %3211 = vmatpush2.bf16.msra.mxu0 %v2538
      %3212 = vmatprep.mubr.bf16.mxu0 %v1227
      %3213 = vmatmul.mubr.bf16.gmra.mxu0 %v1226
      %v3214 = vpop.f32.mrf.mxu0
      %v3215 = vadd.f32 %v3142, %v3214
      %v3216 = vpop.f32.mrf.mxu0
      %v3217 = vadd.f32 %v3144, %v3216
      %v3218 = vpop.f32.mrf.mxu0
      %v3219 = vadd.f32 %v3146, %v3218
      %v3220 = vpop.f32.mrf.mxu0
      %v3221 = vadd.f32 %v3148, %v3220
      %3222 = vmatprep.mubr.bf16.mxu0 %v1245
      %3223 = vmatmul.mubr.bf16.gmra.mxu0 %v1244
      %v3224 = vpop.f32.mrf.mxu0
      %v3225 = vadd.f32 %v3152, %v3224
      %v3226 = vpop.f32.mrf.mxu0
      %v3227 = vadd.f32 %v3154, %v3226
      %v3228 = vpop.f32.mrf.mxu0
      %v3229 = vadd.f32 %v3156, %v3228
      %v3230 = vpop.f32.mrf.mxu0
      %v3231 = vadd.f32 %v3158, %v3230
      %3232 = vmatprep.mubr.bf16.mxu0 %v1263
      %3233 = vmatmul.mubr.bf16.gmra.mxu0 %v1262
      %v3234 = vpop.f32.mrf.mxu0
      %v3235 = vadd.f32 %v3162, %v3234
      %v3236 = vpop.f32.mrf.mxu0
      %v3237 = vadd.f32 %v3164, %v3236
      %v3238 = vpop.f32.mrf.mxu0
      %v3239 = vadd.f32 %v3166, %v3238
      %v3240 = vpop.f32.mrf.mxu0
      %v3241 = vadd.f32 %v3168, %v3240
      %3242 = vmatprep.mubr.bf16.mxu0 %v1281
      %3243 = vmatmul.mubr.bf16.gmra.mxu0 %v1280
      %v3244 = vpop.f32.mrf.mxu0
      %v3245 = vadd.f32 %v3172, %v3244
      %v3246 = vpop.f32.mrf.mxu0
      %v3247 = vadd.f32 %v3174, %v3246
      %v3248 = vpop.f32.mrf.mxu0
      %v3249 = vadd.f32 %v3176, %v3248
      %v3250 = vpop.f32.mrf.mxu0
      %v3251 = vadd.f32 %v3178, %v3250
      %3252 = vdwg.mxu0
      %3253 = vmatprep.subr.bf16.mxu0 %v2569
      %3254 = vmatpush1.bf16.msra.mxu0 %v2568
      %3255 = vmatprep.subr.bf16.mxu0 %v2567
      %3256 = vmatpush1.bf16.msra.mxu0 %v2566
      %3257 = vmatprep.subr.bf16.mxu0 %v2565
      %3258 = vmatpush1.bf16.msra.mxu0 %v2564
      %3259 = vmatprep.subr.bf16.mxu0 %v2563
      %3260 = vmatpush1.bf16.msra.mxu0 %v2562
      %3261 = vmatprep.subr.bf16.mxu0 %v2561
      %3262 = vmatpush1.bf16.msra.mxu0 %v2560
      %3263 = vmatprep.subr.bf16.mxu0 %v2559
      %3264 = vmatpush1.bf16.msra.mxu0 %v2558
      %3265 = vmatprep.subr.bf16.mxu0 %v2557
      %3266 = vmatpush1.bf16.msra.mxu0 %v2556
      %3267 = vmatprep.subr.bf16.mxu0 %v2555
      %3268 = vmatpush1.bf16.msra.mxu0 %v2554
      %3269 = vmatprep.subr.bf16.mxu0 %v2585
      %3270 = vmatpush2.bf16.msra.mxu0 %v2584
      %3271 = vmatprep.subr.bf16.mxu0 %v2583
      %3272 = vmatpush2.bf16.msra.mxu0 %v2582
      %3273 = vmatprep.subr.bf16.mxu0 %v2581
      %3274 = vmatpush2.bf16.msra.mxu0 %v2580
      %3275 = vmatprep.subr.bf16.mxu0 %v2579
      %3276 = vmatpush2.bf16.msra.mxu0 %v2578
      %3277 = vmatprep.subr.bf16.mxu0 %v2577
      %3278 = vmatpush2.bf16.msra.mxu0 %v2576
      %3279 = vmatprep.subr.bf16.mxu0 %v2575
      %3280 = vmatpush2.bf16.msra.mxu0 %v2574
      %3281 = vmatprep.subr.bf16.mxu0 %v2573
      %3282 = vmatpush2.bf16.msra.mxu0 %v2572
      %3283 = vmatprep.subr.bf16.mxu0 %v2571
      %3284 = vmatpush2.bf16.msra.mxu0 %v2570
      %3285 = vmatprep.mubr.bf16.mxu0 %v1229
      %3286 = vmatmul.mubr.bf16.gmra.mxu0 %v1228
      %v3287 = vpop.f32.mrf.mxu0
      %v3288 = vadd.f32 %v3215, %v3287
      %v3289 = vpop.f32.mrf.mxu0
      %v3290 = vadd.f32 %v3217, %v3289
      %v3291 = vpop.f32.mrf.mxu0
      %v3292 = vadd.f32 %v3219, %v3291
      %v3293 = vpop.f32.mrf.mxu0
      %v3294 = vadd.f32 %v3221, %v3293
      %3295 = vmatprep.mubr.bf16.mxu0 %v1247
      %3296 = vmatmul.mubr.bf16.gmra.mxu0 %v1246
      %v3297 = vpop.f32.mrf.mxu0
      %v3298 = vadd.f32 %v3225, %v3297
      %v3299 = vpop.f32.mrf.mxu0
      %v3300 = vadd.f32 %v3227, %v3299
      %v3301 = vpop.f32.mrf.mxu0
      %v3302 = vadd.f32 %v3229, %v3301
      %v3303 = vpop.f32.mrf.mxu0
      %v3304 = vadd.f32 %v3231, %v3303
      %3305 = vmatprep.mubr.bf16.mxu0 %v1265
      %3306 = vmatmul.mubr.bf16.gmra.mxu0 %v1264
      %v3307 = vpop.f32.mrf.mxu0
      %v3308 = vadd.f32 %v3235, %v3307
      %v3309 = vpop.f32.mrf.mxu0
      %v3310 = vadd.f32 %v3237, %v3309
      %v3311 = vpop.f32.mrf.mxu0
      %v3312 = vadd.f32 %v3239, %v3311
      %v3313 = vpop.f32.mrf.mxu0
      %v3314 = vadd.f32 %v3241, %v3313
      %3315 = vmatprep.mubr.bf16.mxu0 %v1283
      %3316 = vmatmul.mubr.bf16.gmra.mxu0 %v1282
      %v3317 = vpop.f32.mrf.mxu0
      %v3318 = vadd.f32 %v3245, %v3317
      %v3319 = vpop.f32.mrf.mxu0
      %v3320 = vadd.f32 %v3247, %v3319
      %v3321 = vpop.f32.mrf.mxu0
      %v3322 = vadd.f32 %v3249, %v3321
      %v3323 = vpop.f32.mrf.mxu0
      %v3324 = vadd.f32 %v3251, %v3323
      %3325 = vdwg.mxu0
      %3326 = vmatprep.subr.bf16.mxu0 %v2601
      %3327 = vmatpush1.bf16.msra.mxu0 %v2600
      %3328 = vmatprep.subr.bf16.mxu0 %v2599
      %3329 = vmatpush1.bf16.msra.mxu0 %v2598
      %3330 = vmatprep.subr.bf16.mxu0 %v2597
      %3331 = vmatpush1.bf16.msra.mxu0 %v2596
      %3332 = vmatprep.subr.bf16.mxu0 %v2595
      %3333 = vmatpush1.bf16.msra.mxu0 %v2594
      %3334 = vmatprep.subr.bf16.mxu0 %v2593
      %3335 = vmatpush1.bf16.msra.mxu0 %v2592
      %3336 = vmatprep.subr.bf16.mxu0 %v2591
      %3337 = vmatpush1.bf16.msra.mxu0 %v2590
      %3338 = vmatprep.subr.bf16.mxu0 %v2589
      %3339 = vmatpush1.bf16.msra.mxu0 %v2588
      %3340 = vmatprep.subr.bf16.mxu0 %v2587
      %3341 = vmatpush1.bf16.msra.mxu0 %v2586
      %3342 = vmatprep.subr.bf16.mxu0 %v2617
      %3343 = vmatpush2.bf16.msra.mxu0 %v2616
      %3344 = vmatprep.subr.bf16.mxu0 %v2615
      %3345 = vmatpush2.bf16.msra.mxu0 %v2614
      %3346 = vmatprep.subr.bf16.mxu0 %v2613
      %3347 = vmatpush2.bf16.msra.mxu0 %v2612
      %3348 = vmatprep.subr.bf16.mxu0 %v2611
      %3349 = vmatpush2.bf16.msra.mxu0 %v2610
      %3350 = vmatprep.subr.bf16.mxu0 %v2609
      %3351 = vmatpush2.bf16.msra.mxu0 %v2608
      %3352 = vmatprep.subr.bf16.mxu0 %v2607
      %3353 = vmatpush2.bf16.msra.mxu0 %v2606
      %3354 = vmatprep.subr.bf16.mxu0 %v2605
      %3355 = vmatpush2.bf16.msra.mxu0 %v2604
      %3356 = vmatprep.subr.bf16.mxu0 %v2603
      %3357 = vmatpush2.bf16.msra.mxu0 %v2602
      %3358 = vmatprep.mubr.bf16.mxu0 %v1231
      %3359 = vmatmul.mubr.bf16.gmra.mxu0 %v1230
      %v3360 = vpop.f32.mrf.mxu0
      %v3361 = vadd.f32 %v3288, %v3360
      %v3362 = vpop.f32.mrf.mxu0
      %v3363 = vadd.f32 %v3290, %v3362
      %v3364 = vpop.f32.mrf.mxu0
      %v3365 = vadd.f32 %v3292, %v3364
      %v3366 = vpop.f32.mrf.mxu0
      %v3367 = vadd.f32 %v3294, %v3366
      %3368 = vmatprep.mubr.bf16.mxu0 %v1249
      %3369 = vmatmul.mubr.bf16.gmra.mxu0 %v1248
      %v3370 = vpop.f32.mrf.mxu0
      %v3371 = vadd.f32 %v3298, %v3370
      %v3372 = vpop.f32.mrf.mxu0
      %v3373 = vadd.f32 %v3300, %v3372
      %v3374 = vpop.f32.mrf.mxu0
      %v3375 = vadd.f32 %v3302, %v3374
      %v3376 = vpop.f32.mrf.mxu0
      %v3377 = vadd.f32 %v3304, %v3376
      %3378 = vmatprep.mubr.bf16.mxu0 %v1267
      %3379 = vmatmul.mubr.bf16.gmra.mxu0 %v1266
      %v3380 = vpop.f32.mrf.mxu0
      %v3381 = vadd.f32 %v3308, %v3380
      %v3382 = vpop.f32.mrf.mxu0
      %v3383 = vadd.f32 %v3310, %v3382
      %v3384 = vpop.f32.mrf.mxu0
      %v3385 = vadd.f32 %v3312, %v3384
      %v3386 = vpop.f32.mrf.mxu0
      %v3387 = vadd.f32 %v3314, %v3386
      %3388 = vmatprep.mubr.bf16.mxu0 %v1285
      %3389 = vmatmul.mubr.bf16.gmra.mxu0 %v1284
      %v3390 = vpop.f32.mrf.mxu0
      %v3391 = vadd.f32 %v3318, %v3390
      %v3392 = vpop.f32.mrf.mxu0
      %v3393 = vadd.f32 %v3320, %v3392
      %v3394 = vpop.f32.mrf.mxu0
      %v3395 = vadd.f32 %v3322, %v3394
      %v3396 = vpop.f32.mrf.mxu0
      %v3397 = vadd.f32 %v3324, %v3396
      %3398 = vdwg.mxu0
      %3399 = vmatprep.subr.bf16.mxu0 %v2633
      %3400 = vmatpush1.bf16.msra.mxu0 %v2632
      %3401 = vmatprep.subr.bf16.mxu0 %v2631
      %3402 = vmatpush1.bf16.msra.mxu0 %v2630
      %3403 = vmatprep.subr.bf16.mxu0 %v2629
      %3404 = vmatpush1.bf16.msra.mxu0 %v2628
      %3405 = vmatprep.subr.bf16.mxu0 %v2627
      %3406 = vmatpush1.bf16.msra.mxu0 %v2626
      %3407 = vmatprep.subr.bf16.mxu0 %v2625
      %3408 = vmatpush1.bf16.msra.mxu0 %v2624
      %3409 = vmatprep.subr.bf16.mxu0 %v2623
      %3410 = vmatpush1.bf16.msra.mxu0 %v2622
      %3411 = vmatprep.subr.bf16.mxu0 %v2621
      %3412 = vmatpush1.bf16.msra.mxu0 %v2620
      %3413 = vmatprep.subr.bf16.mxu0 %v2619
      %3414 = vmatpush1.bf16.msra.mxu0 %v2618
      %3415 = vmatprep.subr.bf16.mxu0 %v2649
      %3416 = vmatpush2.bf16.msra.mxu0 %v2648
      %3417 = vmatprep.subr.bf16.mxu0 %v2647
      %3418 = vmatpush2.bf16.msra.mxu0 %v2646
      %3419 = vmatprep.subr.bf16.mxu0 %v2645
      %3420 = vmatpush2.bf16.msra.mxu0 %v2644
      %3421 = vmatprep.subr.bf16.mxu0 %v2643
      %3422 = vmatpush2.bf16.msra.mxu0 %v2642
      %3423 = vmatprep.subr.bf16.mxu0 %v2641
      %3424 = vmatpush2.bf16.msra.mxu0 %v2640
      %3425 = vmatprep.subr.bf16.mxu0 %v2639
      %3426 = vmatpush2.bf16.msra.mxu0 %v2638
      %3427 = vmatprep.subr.bf16.mxu0 %v2637
      %3428 = vmatpush2.bf16.msra.mxu0 %v2636
      %3429 = vmatprep.subr.bf16.mxu0 %v2635
      %3430 = vmatpush2.bf16.msra.mxu0 %v2634
      %3431 = vmatprep.mubr.bf16.mxu0 %v1233
      %3432 = vmatmul.mubr.bf16.gmra.mxu0 %v1232
      %v3433 = vpop.f32.mrf.mxu0
      %v3434 = vadd.f32 %v3361, %v3433
      %v3435 = vpop.f32.mrf.mxu0
      %v3436 = vadd.f32 %v3363, %v3435
      %v3437 = vpop.f32.mrf.mxu0
      %v3438 = vadd.f32 %v3365, %v3437
      %v3439 = vpop.f32.mrf.mxu0
      %v3440 = vadd.f32 %v3367, %v3439
      %3441 = vmatprep.mubr.bf16.mxu0 %v1251
      %3442 = vmatmul.mubr.bf16.gmra.mxu0 %v1250
      %v3443 = vpop.f32.mrf.mxu0
      %v3444 = vadd.f32 %v3371, %v3443
      %v3445 = vpop.f32.mrf.mxu0
      %v3446 = vadd.f32 %v3373, %v3445
      %v3447 = vpop.f32.mrf.mxu0
      %v3448 = vadd.f32 %v3375, %v3447
      %v3449 = vpop.f32.mrf.mxu0
      %v3450 = vadd.f32 %v3377, %v3449
      %3451 = vmatprep.mubr.bf16.mxu0 %v1269
      %3452 = vmatmul.mubr.bf16.gmra.mxu0 %v1268
      %v3453 = vpop.f32.mrf.mxu0
      %v3454 = vadd.f32 %v3381, %v3453
      %v3455 = vpop.f32.mrf.mxu0
      %v3456 = vadd.f32 %v3383, %v3455
      %v3457 = vpop.f32.mrf.mxu0
      %v3458 = vadd.f32 %v3385, %v3457
      %v3459 = vpop.f32.mrf.mxu0
      %v3460 = vadd.f32 %v3387, %v3459
      %3461 = vmatprep.mubr.bf16.mxu0 %v1287
      %3462 = vmatmul.mubr.bf16.gmra.mxu0 %v1286
      %v3463 = vpop.f32.mrf.mxu0
      %v3464 = vadd.f32 %v3391, %v3463
      %v3465 = vpop.f32.mrf.mxu0
      %v3466 = vadd.f32 %v3393, %v3465
      %v3467 = vpop.f32.mrf.mxu0
      %v3468 = vadd.f32 %v3395, %v3467
      %v3469 = vpop.f32.mrf.mxu0
      %v3470 = vadd.f32 %v3397, %v3469
      %3471 = vdwg.mxu0
      %3472 = vmatprep.subr.bf16.mxu0 %v2665
      %3473 = vmatpush1.bf16.msra.mxu0 %v2664
      %3474 = vmatprep.subr.bf16.mxu0 %v2663
      %3475 = vmatpush1.bf16.msra.mxu0 %v2662
      %3476 = vmatprep.subr.bf16.mxu0 %v2661
      %3477 = vmatpush1.bf16.msra.mxu0 %v2660
      %3478 = vmatprep.subr.bf16.mxu0 %v2659
      %3479 = vmatpush1.bf16.msra.mxu0 %v2658
      %3480 = vmatprep.subr.bf16.mxu0 %v2657
      %3481 = vmatpush1.bf16.msra.mxu0 %v2656
      %3482 = vmatprep.subr.bf16.mxu0 %v2655
      %3483 = vmatpush1.bf16.msra.mxu0 %v2654
      %3484 = vmatprep.subr.bf16.mxu0 %v2653
      %3485 = vmatpush1.bf16.msra.mxu0 %v2652
      %3486 = vmatprep.subr.bf16.mxu0 %v2651
      %3487 = vmatpush1.bf16.msra.mxu0 %v2650
      %3488 = vmatprep.subr.bf16.mxu0 %v2681
      %3489 = vmatpush2.bf16.msra.mxu0 %v2680
      %3490 = vmatprep.subr.bf16.mxu0 %v2679
      %3491 = vmatpush2.bf16.msra.mxu0 %v2678
      %3492 = vmatprep.subr.bf16.mxu0 %v2677
      %3493 = vmatpush2.bf16.msra.mxu0 %v2676
      %3494 = vmatprep.subr.bf16.mxu0 %v2675
      %3495 = vmatpush2.bf16.msra.mxu0 %v2674
      %3496 = vmatprep.subr.bf16.mxu0 %v2673
      %3497 = vmatpush2.bf16.msra.mxu0 %v2672
      %3498 = vmatprep.subr.bf16.mxu0 %v2671
      %3499 = vmatpush2.bf16.msra.mxu0 %v2670
      %3500 = vmatprep.subr.bf16.mxu0 %v2669
      %3501 = vmatpush2.bf16.msra.mxu0 %v2668
      %3502 = vmatprep.subr.bf16.mxu0 %v2667
      %3503 = vmatpush2.bf16.msra.mxu0 %v2666
      %3504 = vmatprep.mubr.bf16.mxu0 %v1235
      %3505 = vmatmul.mubr.bf16.gmra.mxu0 %v1234
      %v3506 = vpop.f32.mrf.mxu0
      %v3507 = vadd.f32 %v3434, %v3506
      %v3508 = vpop.f32.mrf.mxu0
      %v3509 = vadd.f32 %v3436, %v3508
      %v3510 = vpop.f32.mrf.mxu0
      %v3511 = vadd.f32 %v3438, %v3510
      %v3512 = vpop.f32.mrf.mxu0
      %v3513 = vadd.f32 %v3440, %v3512
      %3514 = vmatprep.mubr.bf16.mxu0 %v1253
      %3515 = vmatmul.mubr.bf16.gmra.mxu0 %v1252
      %v3516 = vpop.f32.mrf.mxu0
      %v3517 = vadd.f32 %v3444, %v3516
      %v3518 = vpop.f32.mrf.mxu0
      %v3519 = vadd.f32 %v3446, %v3518
      %v3520 = vpop.f32.mrf.mxu0
      %v3521 = vadd.f32 %v3448, %v3520
      %v3522 = vpop.f32.mrf.mxu0
      %v3523 = vadd.f32 %v3450, %v3522
      %3524 = vmatprep.mubr.bf16.mxu0 %v1271
      %3525 = vmatmul.mubr.bf16.gmra.mxu0 %v1270
      %v3526 = vpop.f32.mrf.mxu0
      %v3527 = vadd.f32 %v3454, %v3526
      %v3528 = vpop.f32.mrf.mxu0
      %v3529 = vadd.f32 %v3456, %v3528
      %v3530 = vpop.f32.mrf.mxu0
      %v3531 = vadd.f32 %v3458, %v3530
      %v3532 = vpop.f32.mrf.mxu0
      %v3533 = vadd.f32 %v3460, %v3532
      %3534 = vmatprep.mubr.bf16.mxu0 %v1289
      %3535 = vmatmul.mubr.bf16.gmra.mxu0 %v1288
      %v3536 = vpop.f32.mrf.mxu0
      %v3537 = vadd.f32 %v3464, %v3536
      %v3538 = vpop.f32.mrf.mxu0
      %v3539 = vadd.f32 %v3466, %v3538
      %v3540 = vpop.f32.mrf.mxu0
      %v3541 = vadd.f32 %v3468, %v3540
      %v3542 = vpop.f32.mrf.mxu0
      %v3543 = vadd.f32 %v3470, %v3542
      %3544 = vdwg.mxu0
      %3545 = vmatprep.subr.bf16.mxu0 %v2697
      %3546 = vmatpush1.bf16.msra.mxu0 %v2696
      %3547 = vmatprep.subr.bf16.mxu0 %v2695
      %3548 = vmatpush1.bf16.msra.mxu0 %v2694
      %3549 = vmatprep.subr.bf16.mxu0 %v2693
      %3550 = vmatpush1.bf16.msra.mxu0 %v2692
      %3551 = vmatprep.subr.bf16.mxu0 %v2691
      %3552 = vmatpush1.bf16.msra.mxu0 %v2690
      %3553 = vmatprep.subr.bf16.mxu0 %v2689
      %3554 = vmatpush1.bf16.msra.mxu0 %v2688
      %3555 = vmatprep.subr.bf16.mxu0 %v2687
      %3556 = vmatpush1.bf16.msra.mxu0 %v2686
      %3557 = vmatprep.subr.bf16.mxu0 %v2685
      %3558 = vmatpush1.bf16.msra.mxu0 %v2684
      %3559 = vmatprep.subr.bf16.mxu0 %v2683
      %3560 = vmatpush1.bf16.msra.mxu0 %v2682
      %3561 = vmatprep.subr.bf16.mxu0 %v2713
      %3562 = vmatpush2.bf16.msra.mxu0 %v2712
      %3563 = vmatprep.subr.bf16.mxu0 %v2711
      %3564 = vmatpush2.bf16.msra.mxu0 %v2710
      %3565 = vmatprep.subr.bf16.mxu0 %v2709
      %3566 = vmatpush2.bf16.msra.mxu0 %v2708
      %3567 = vmatprep.subr.bf16.mxu0 %v2707
      %3568 = vmatpush2.bf16.msra.mxu0 %v2706
      %3569 = vmatprep.subr.bf16.mxu0 %v2705
      %3570 = vmatpush2.bf16.msra.mxu0 %v2704
      %3571 = vmatprep.subr.bf16.mxu0 %v2703
      %3572 = vmatpush2.bf16.msra.mxu0 %v2702
      %3573 = vmatprep.subr.bf16.mxu0 %v2701
      %3574 = vmatpush2.bf16.msra.mxu0 %v2700
      %3575 = vmatprep.subr.bf16.mxu0 %v2699
      %3576 = vmatpush2.bf16.msra.mxu0 %v2698
      %3577 = vmatprep.mubr.bf16.mxu0 %v1237
      %3578 = vmatmul.mubr.bf16.gmra.mxu0 %v1236
      %v3579 = vpop.f32.mrf.mxu0
      %v3580 = vadd.f32 %v3507, %v3579
      %v3581 = vpop.f32.mrf.mxu0
      %v3582 = vadd.f32 %v3509, %v3581
      %v3583 = vpop.f32.mrf.mxu0
      %v3584 = vadd.f32 %v3511, %v3583
      %v3585 = vpop.f32.mrf.mxu0
      %v3586 = vadd.f32 %v3513, %v3585
      %3587 = vmatprep.mubr.bf16.mxu0 %v1255
      %3588 = vmatmul.mubr.bf16.gmra.mxu0 %v1254
      %v3589 = vpop.f32.mrf.mxu0
      %v3590 = vadd.f32 %v3517, %v3589
      %v3591 = vpop.f32.mrf.mxu0
      %v3592 = vadd.f32 %v3519, %v3591
      %v3593 = vpop.f32.mrf.mxu0
      %v3594 = vadd.f32 %v3521, %v3593
      %v3595 = vpop.f32.mrf.mxu0
      %v3596 = vadd.f32 %v3523, %v3595
      %3597 = vmatprep.mubr.bf16.mxu0 %v1273
      %3598 = vmatmul.mubr.bf16.gmra.mxu0 %v1272
      %v3599 = vpop.f32.mrf.mxu0
      %v3600 = vadd.f32 %v3527, %v3599
      %v3601 = vpop.f32.mrf.mxu0
      %v3602 = vadd.f32 %v3529, %v3601
      %v3603 = vpop.f32.mrf.mxu0
      %v3604 = vadd.f32 %v3531, %v3603
      %v3605 = vpop.f32.mrf.mxu0
      %v3606 = vadd.f32 %v3533, %v3605
      %3607 = vmatprep.mubr.bf16.mxu0 %v1291
      %3608 = vmatmul.mubr.bf16.gmra.mxu0 %v1290
      %v3609 = vpop.f32.mrf.mxu0
      %v3610 = vadd.f32 %v3537, %v3609
      %v3611 = vpop.f32.mrf.mxu0
      %v3612 = vadd.f32 %v3539, %v3611
      %v3613 = vpop.f32.mrf.mxu0
      %v3614 = vadd.f32 %v3541, %v3613
      %v3615 = vpop.f32.mrf.mxu0
      %v3616 = vadd.f32 %v3543, %v3615
      %3617 = vdwg.mxu0
      %3618 = vmatprep.subr.bf16.mxu0 %v2729
      %3619 = vmatpush1.bf16.msra.mxu0 %v2728
      %3620 = vmatprep.subr.bf16.mxu0 %v2727
      %3621 = vmatpush1.bf16.msra.mxu0 %v2726
      %3622 = vmatprep.subr.bf16.mxu0 %v2725
      %3623 = vmatpush1.bf16.msra.mxu0 %v2724
      %3624 = vmatprep.subr.bf16.mxu0 %v2723
      %3625 = vmatpush1.bf16.msra.mxu0 %v2722
      %3626 = vmatprep.subr.bf16.mxu0 %v2721
      %3627 = vmatpush1.bf16.msra.mxu0 %v2720
      %3628 = vmatprep.subr.bf16.mxu0 %v2719
      %3629 = vmatpush1.bf16.msra.mxu0 %v2718
      %3630 = vmatprep.subr.bf16.mxu0 %v2717
      %3631 = vmatpush1.bf16.msra.mxu0 %v2716
      %3632 = vmatprep.subr.bf16.mxu0 %v2715
      %3633 = vmatpush1.bf16.msra.mxu0 %v2714
      %3634 = vmatprep.subr.bf16.mxu0 %v2745
      %3635 = vmatpush2.bf16.msra.mxu0 %v2744
      %3636 = vmatprep.subr.bf16.mxu0 %v2743
      %3637 = vmatpush2.bf16.msra.mxu0 %v2742
      %3638 = vmatprep.subr.bf16.mxu0 %v2741
      %3639 = vmatpush2.bf16.msra.mxu0 %v2740
      %3640 = vmatprep.subr.bf16.mxu0 %v2739
      %3641 = vmatpush2.bf16.msra.mxu0 %v2738
      %3642 = vmatprep.subr.bf16.mxu0 %v2737
      %3643 = vmatpush2.bf16.msra.mxu0 %v2736
      %3644 = vmatprep.subr.bf16.mxu0 %v2735
      %3645 = vmatpush2.bf16.msra.mxu0 %v2734
      %3646 = vmatprep.subr.bf16.mxu0 %v2733
      %3647 = vmatpush2.bf16.msra.mxu0 %v2732
      %3648 = vmatprep.subr.bf16.mxu0 %v2731
      %3649 = vmatpush2.bf16.msra.mxu0 %v2730
      %3650 = vmatprep.mubr.bf16.mxu0 %v1239
      %3651 = vmatmul.mubr.bf16.gmra.mxu0 %v1238
      %v3652 = vpop.f32.mrf.mxu0
      %v3653 = vadd.f32 %v3580, %v3652
      %v3654 = vpop.f32.mrf.mxu0
      %v3655 = vadd.f32 %v3582, %v3654
      %v3656 = vpop.f32.mrf.mxu0
      %v3657 = vadd.f32 %v3584, %v3656
      %v3658 = vpop.f32.mrf.mxu0
      %v3659 = vadd.f32 %v3586, %v3658
      %3660 = vmatprep.mubr.bf16.mxu0 %v1257
      %3661 = vmatmul.mubr.bf16.gmra.mxu0 %v1256
      %v3662 = vpop.f32.mrf.mxu0
      %v3663 = vadd.f32 %v3590, %v3662
      %v3664 = vpop.f32.mrf.mxu0
      %v3665 = vadd.f32 %v3592, %v3664
      %v3666 = vpop.f32.mrf.mxu0
      %v3667 = vadd.f32 %v3594, %v3666
      %v3668 = vpop.f32.mrf.mxu0
      %v3669 = vadd.f32 %v3596, %v3668
      %3670 = vmatprep.mubr.bf16.mxu0 %v1275
      %3671 = vmatmul.mubr.bf16.gmra.mxu0 %v1274
      %v3672 = vpop.f32.mrf.mxu0
      %v3673 = vadd.f32 %v3600, %v3672
      %v3674 = vpop.f32.mrf.mxu0
      %v3675 = vadd.f32 %v3602, %v3674
      %v3676 = vpop.f32.mrf.mxu0
      %v3677 = vadd.f32 %v3604, %v3676
      %v3678 = vpop.f32.mrf.mxu0
      %v3679 = vadd.f32 %v3606, %v3678
      %3680 = vmatprep.mubr.bf16.mxu0 %v1293
      %3681 = vmatmul.mubr.bf16.gmra.mxu0 %v1292
      %v3682 = vpop.f32.mrf.mxu0
      %v3683 = vadd.f32 %v3610, %v3682
      %v3684 = vpop.f32.mrf.mxu0
      %v3685 = vadd.f32 %v3612, %v3684
      %v3686 = vpop.f32.mrf.mxu0
      %v3687 = vadd.f32 %v3614, %v3686
      %v3688 = vpop.f32.mrf.mxu0
      %v3689 = vadd.f32 %v3616, %v3688
      %3690 = vdwg.mxu0
      %3691 = vst [vmem:[%s259] sm:$0xff] %v3653
      %3692 = vst [vmem:[%s259 + $0x8] sm:$0xff] %v3655
      %3693 = vst [vmem:[%s259 + $0x10] sm:$0xff] %v3657
      %3694 = vst [vmem:[%s259 + $0x18] sm:$0xff] %v3659
      %3695 = vst [vmem:[%s259 + $0x20] sm:$0xff] %v3663
      %3696 = vst [vmem:[%s259 + $0x28] sm:$0xff] %v3665
      %3697 = vst [vmem:[%s259 + $0x30] sm:$0xff] %v3667
      %3698 = vst [vmem:[%s259 + $0x38] sm:$0xff] %v3669
      %3699 = vst [vmem:[%s259 + $0x40] sm:$0xff] %v3673
      %3700 = vst [vmem:[%s259 + $0x48] sm:$0xff] %v3675
      %3701 = vst [vmem:[%s259 + $0x50] sm:$0xff] %v3677
      %3702 = vst [vmem:[%s259 + $0x58] sm:$0xff] %v3679
      %3703 = vst [vmem:[%s259 + $0x60] sm:$0xff] %v3683
      %3704 = vst [vmem:[%s259 + $0x68] sm:$0xff] %v3685
      %3705 = vst [vmem:[%s259 + $0x70] sm:$0xff] %v3687
      %3706 = vst [vmem:[%s259 + $0x78] sm:$0xff] %v3689
      %vm3707 = vcmask 523264
      %3708 = vst.msk [vmem:[#allocation3] sm:$0xff] %vm3707, 0.0
      %3709 = vst.msk [vmem:[#allocation3 + $0x8] sm:$0xff] %vm3707, 0.0
      %3710 = vst.msk [vmem:[#allocation3 + $0x10] sm:$0xff] %vm3707, 0.0
      %3711 = vst.msk [vmem:[#allocation3 + $0x18] sm:$0xff] %vm3707, 0.0
      %3712 = vst.msk [vmem:[#allocation3 + $0x20] sm:$0xff] %vm3707, 0.0
      %3713 = vst.msk [vmem:[#allocation3 + $0x28] sm:$0xff] %vm3707, 0.0
      %3714 = vst.msk [vmem:[#allocation3 + $0x30] sm:$0xff] %vm3707, 0.0
      %3715 = vst.msk [vmem:[#allocation3 + $0x38] sm:$0xff] %vm3707, 0.0
      %3716 = vst.msk [vmem:[#allocation3 + $0x40] sm:$0xff] %vm3707, 0.0
      %3717 = vst.msk [vmem:[#allocation3 + $0x48] sm:$0xff] %vm3707, 0.0
      %3718 = vst.msk [vmem:[#allocation3 + $0x50] sm:$0xff] %vm3707, 0.0
      %3719 = vst.msk [vmem:[#allocation3 + $0x58] sm:$0xff] %vm3707, 0.0
      %3720 = vst.msk [vmem:[#allocation3 + $0x60] sm:$0xff] %vm3707, 0.0
      %3721 = vst.msk [vmem:[#allocation3 + $0x68] sm:$0xff] %vm3707, 0.0
      %3722 = vst.msk [vmem:[#allocation3 + $0x70] sm:$0xff] %vm3707, 0.0
      %3723 = vst.msk [vmem:[#allocation3 + $0x78] sm:$0xff] %vm3707, 0.0
      %3724 = vst.msk [vmem:[#allocation3 + $0x80] sm:$0xff] %vm3707, 0.0
      %3725 = vst.msk [vmem:[#allocation3 + $0x88] sm:$0xff] %vm3707, 0.0
      %3726 = vst.msk [vmem:[#allocation3 + $0x90] sm:$0xff] %vm3707, 0.0
      %3727 = vst.msk [vmem:[#allocation3 + $0x98] sm:$0xff] %vm3707, 0.0
      %s3728 = scalar_lea.vmem [#allocation3], 16
      %3729 = vst.msk [vmem:[%s3728 + $0x1] sm:$0xff] %vm3707, %v3653
      %3730 = vst.msk [vmem:[%s3728 + $0x11] sm:$0xff] %vm3707, %v3657
      %3731 = vst.msk [vmem:[%s3728 + $0x21] sm:$0xff] %vm3707, %v3663
      %3732 = vst.msk [vmem:[%s3728 + $0x31] sm:$0xff] %vm3707, %v3667
      %3733 = vst.msk [vmem:[%s3728 + $0x41] sm:$0xff] %vm3707, %v3673
      %3734 = vst.msk [vmem:[%s3728 + $0x51] sm:$0xff] %vm3707, %v3677
      %3735 = vst.msk [vmem:[%s3728 + $0x61] sm:$0xff] %vm3707, %v3683
      %3736 = vst.msk [vmem:[%s3728 + $0x71] sm:$0xff] %vm3707, %v3687
      %3737 = vst.msk [vmem:[#allocation4] sm:$0xff] %vm3707, 0.0
      %3738 = vst.msk [vmem:[#allocation4 + $0x8] sm:$0xff] %vm3707, 0.0
      %3739 = vst.msk [vmem:[#allocation4 + $0x10] sm:$0xff] %vm3707, 0.0
      %3740 = vst.msk [vmem:[#allocation4 + $0x18] sm:$0xff] %vm3707, 0.0
      %3741 = vst.msk [vmem:[#allocation4 + $0x20] sm:$0xff] %vm3707, 0.0
      %3742 = vst.msk [vmem:[#allocation4 + $0x28] sm:$0xff] %vm3707, 0.0
      %3743 = vst.msk [vmem:[#allocation4 + $0x30] sm:$0xff] %vm3707, 0.0
      %3744 = vst.msk [vmem:[#allocation4 + $0x38] sm:$0xff] %vm3707, 0.0
      %3745 = vst.msk [vmem:[#allocation4 + $0x40] sm:$0xff] %vm3707, 0.0
      %3746 = vst.msk [vmem:[#allocation4 + $0x48] sm:$0xff] %vm3707, 0.0
      %3747 = vst.msk [vmem:[#allocation4 + $0x50] sm:$0xff] %vm3707, 0.0
      %3748 = vst.msk [vmem:[#allocation4 + $0x58] sm:$0xff] %vm3707, 0.0
      %3749 = vst.msk [vmem:[#allocation4 + $0x60] sm:$0xff] %vm3707, 0.0
      %3750 = vst.msk [vmem:[#allocation4 + $0x68] sm:$0xff] %vm3707, 0.0
      %3751 = vst.msk [vmem:[#allocation4 + $0x70] sm:$0xff] %vm3707, 0.0
      %3752 = vst.msk [vmem:[#allocation4 + $0x78] sm:$0xff] %vm3707, 0.0
      %3753 = vst.msk [vmem:[#allocation4 + $0x80] sm:$0xff] %vm3707, 0.0
      %3754 = vst.msk [vmem:[#allocation4 + $0x88] sm:$0xff] %vm3707, 0.0
      %3755 = vst.msk [vmem:[#allocation4 + $0x90] sm:$0xff] %vm3707, 0.0
      %3756 = vst.msk [vmem:[#allocation4 + $0x98] sm:$0xff] %vm3707, 0.0
      %3765 = vrot.lane.b32.xlu0 %v3653, 64
      %v3766 = vpop.permute.xlu0 %3765
      %3767 = vrot.lane.b32.xlu0 %v3657, 64
      %v3768 = vpop.permute.xlu0 %3767
      %3769 = vrot.lane.b32.xlu0 %v3663, 64
      %v3770 = vpop.permute.xlu0 %3769
      %3771 = vrot.lane.b32.xlu0 %v3667, 64
      %v3772 = vpop.permute.xlu0 %3771
      %3773 = vrot.lane.b32.xlu0 %v3673, 64
      %v3774 = vpop.permute.xlu0 %3773
      %3775 = vrot.lane.b32.xlu0 %v3677, 64
      %v3776 = vpop.permute.xlu0 %3775
      %3777 = vrot.lane.b32.xlu0 %v3683, 64
      %v3778 = vpop.permute.xlu0 %3777
      %3779 = vrot.lane.b32.xlu0 %v3687, 64
      %v3780 = vpop.permute.xlu0 %3779
      %s3789 = scalar_lea.vmem [#allocation4], 16
      %3790 = vst.msk [vmem:[%s3789 + $0x1] sm:$0xff] %vm3707, %v3766
      %3791 = vst.msk [vmem:[%s3789 + $0x11] sm:$0xff] %vm3707, %v3768
      %3792 = vst.msk [vmem:[%s3789 + $0x21] sm:$0xff] %vm3707, %v3770
      %3793 = vst.msk [vmem:[%s3789 + $0x31] sm:$0xff] %vm3707, %v3772
      %3794 = vst.msk [vmem:[%s3789 + $0x41] sm:$0xff] %vm3707, %v3774
      %3795 = vst.msk [vmem:[%s3789 + $0x51] sm:$0xff] %vm3707, %v3776
      %3796 = vst.msk [vmem:[%s3789 + $0x61] sm:$0xff] %vm3707, %v3778
      %3797 = vst.msk [vmem:[%s3789 + $0x71] sm:$0xff] %vm3707, %v3780
      %3798 = vst.msk [vmem:[#allocation5] sm:$0xff] %vm3707, 0.0
      %3799 = vst.msk [vmem:[#allocation5 + $0x8] sm:$0xff] %vm3707, 0.0
      %3800 = vst.msk [vmem:[#allocation5 + $0x10] sm:$0xff] %vm3707, 0.0
      %3801 = vst.msk [vmem:[#allocation5 + $0x18] sm:$0xff] %vm3707, 0.0
      %3802 = vst.msk [vmem:[#allocation5 + $0x20] sm:$0xff] %vm3707, 0.0
      %3803 = vst.msk [vmem:[#allocation5 + $0x28] sm:$0xff] %vm3707, 0.0
      %3804 = vst.msk [vmem:[#allocation5 + $0x30] sm:$0xff] %vm3707, 0.0
      %3805 = vst.msk [vmem:[#allocation5 + $0x38] sm:$0xff] %vm3707, 0.0
      %3806 = vst.msk [vmem:[#allocation5 + $0x40] sm:$0xff] %vm3707, 0.0
      %3807 = vst.msk [vmem:[#allocation5 + $0x48] sm:$0xff] %vm3707, 0.0
      %3808 = vst.msk [vmem:[#allocation5 + $0x50] sm:$0xff] %vm3707, 0.0
      %3809 = vst.msk [vmem:[#allocation5 + $0x58] sm:$0xff] %vm3707, 0.0
      %3810 = vst.msk [vmem:[#allocation5 + $0x60] sm:$0xff] %vm3707, 0.0
      %3811 = vst.msk [vmem:[#allocation5 + $0x68] sm:$0xff] %vm3707, 0.0
      %3812 = vst.msk [vmem:[#allocation5 + $0x70] sm:$0xff] %vm3707, 0.0
      %3813 = vst.msk [vmem:[#allocation5 + $0x78] sm:$0xff] %vm3707, 0.0
      %3814 = vst.msk [vmem:[#allocation5 + $0x80] sm:$0xff] %vm3707, 0.0
      %3815 = vst.msk [vmem:[#allocation5 + $0x88] sm:$0xff] %vm3707, 0.0
      %3816 = vst.msk [vmem:[#allocation5 + $0x90] sm:$0xff] %vm3707, 0.0
      %3817 = vst.msk [vmem:[#allocation5 + $0x98] sm:$0xff] %vm3707, 0.0
      %s3818 = scalar_lea.vmem [#allocation5], 16
      %3819 = vst.msk [vmem:[%s3818 + $0x1] sm:$0xff] %vm3707, %v3655
      %3820 = vst.msk [vmem:[%s3818 + $0x11] sm:$0xff] %vm3707, %v3659
      %3821 = vst.msk [vmem:[%s3818 + $0x21] sm:$0xff] %vm3707, %v3665
      %3822 = vst.msk [vmem:[%s3818 + $0x31] sm:$0xff] %vm3707, %v3669
      %3823 = vst.msk [vmem:[%s3818 + $0x41] sm:$0xff] %vm3707, %v3675
      %3824 = vst.msk [vmem:[%s3818 + $0x51] sm:$0xff] %vm3707, %v3679
      %3825 = vst.msk [vmem:[%s3818 + $0x61] sm:$0xff] %vm3707, %v3685
      %3826 = vst.msk [vmem:[%s3818 + $0x71] sm:$0xff] %vm3707, %v3689
      %3827 = vst.msk [vmem:[#allocation6] sm:$0xff] %vm3707, 0.0
      %3828 = vst.msk [vmem:[#allocation6 + $0x8] sm:$0xff] %vm3707, 0.0
      %3829 = vst.msk [vmem:[#allocation6 + $0x10] sm:$0xff] %vm3707, 0.0
      %3830 = vst.msk [vmem:[#allocation6 + $0x18] sm:$0xff] %vm3707, 0.0
      %3831 = vst.msk [vmem:[#allocation6 + $0x20] sm:$0xff] %vm3707, 0.0
      %3832 = vst.msk [vmem:[#allocation6 + $0x28] sm:$0xff] %vm3707, 0.0
      %3833 = vst.msk [vmem:[#allocation6 + $0x30] sm:$0xff] %vm3707, 0.0
      %3834 = vst.msk [vmem:[#allocation6 + $0x38] sm:$0xff] %vm3707, 0.0
      %3835 = vst.msk [vmem:[#allocation6 + $0x40] sm:$0xff] %vm3707, 0.0
      %3836 = vst.msk [vmem:[#allocation6 + $0x48] sm:$0xff] %vm3707, 0.0
      %3837 = vst.msk [vmem:[#allocation6 + $0x50] sm:$0xff] %vm3707, 0.0
      %3838 = vst.msk [vmem:[#allocation6 + $0x58] sm:$0xff] %vm3707, 0.0
      %3839 = vst.msk [vmem:[#allocation6 + $0x60] sm:$0xff] %vm3707, 0.0
      %3840 = vst.msk [vmem:[#allocation6 + $0x68] sm:$0xff] %vm3707, 0.0
      %3841 = vst.msk [vmem:[#allocation6 + $0x70] sm:$0xff] %vm3707, 0.0
      %3842 = vst.msk [vmem:[#allocation6 + $0x78] sm:$0xff] %vm3707, 0.0
      %3843 = vst.msk [vmem:[#allocation6 + $0x80] sm:$0xff] %vm3707, 0.0
      %3844 = vst.msk [vmem:[#allocation6 + $0x88] sm:$0xff] %vm3707, 0.0
      %3845 = vst.msk [vmem:[#allocation6 + $0x90] sm:$0xff] %vm3707, 0.0
      %3846 = vst.msk [vmem:[#allocation6 + $0x98] sm:$0xff] %vm3707, 0.0
      %3855 = vrot.lane.b32.xlu0 %v3655, 64
      %v3856 = vpop.permute.xlu0 %3855
      %3857 = vrot.lane.b32.xlu0 %v3659, 64
      %v3858 = vpop.permute.xlu0 %3857
      %3859 = vrot.lane.b32.xlu0 %v3665, 64
      %v3860 = vpop.permute.xlu0 %3859
      %3861 = vrot.lane.b32.xlu0 %v3669, 64
      %v3862 = vpop.permute.xlu0 %3861
      %3863 = vrot.lane.b32.xlu0 %v3675, 64
      %v3864 = vpop.permute.xlu0 %3863
      %3865 = vrot.lane.b32.xlu0 %v3679, 64
      %v3866 = vpop.permute.xlu0 %3865
      %3867 = vrot.lane.b32.xlu0 %v3685, 64
      %v3868 = vpop.permute.xlu0 %3867
      %3869 = vrot.lane.b32.xlu0 %v3689, 64
      %v3870 = vpop.permute.xlu0 %3869
      %s3879 = scalar_lea.vmem [#allocation6], 16
      %3880 = vst.msk [vmem:[%s3879 + $0x1] sm:$0xff] %vm3707, %v3856
      %3881 = vst.msk [vmem:[%s3879 + $0x11] sm:$0xff] %vm3707, %v3858
      %3882 = vst.msk [vmem:[%s3879 + $0x21] sm:$0xff] %vm3707, %v3860
      %3883 = vst.msk [vmem:[%s3879 + $0x31] sm:$0xff] %vm3707, %v3862
      %3884 = vst.msk [vmem:[%s3879 + $0x41] sm:$0xff] %vm3707, %v3864
      %3885 = vst.msk [vmem:[%s3879 + $0x51] sm:$0xff] %vm3707, %v3866
      %3886 = vst.msk [vmem:[%s3879 + $0x61] sm:$0xff] %vm3707, %v3868
      %3887 = vst.msk [vmem:[%s3879 + $0x71] sm:$0xff] %vm3707, %v3870
      %v3888 = vld [vmem:[#allocation6] sm:$0xff]
      %v3889 = vld [vmem:[#allocation6 + $0x10] sm:$0xff]
      %v3890 = vld [vmem:[#allocation6 + $0x20] sm:$0xff]
      %v3891 = vld [vmem:[#allocation6 + $0x30] sm:$0xff]
      %v3892 = vld [vmem:[#allocation6 + $0x40] sm:$0xff]
      %v3893 = vld [vmem:[#allocation6 + $0x50] sm:$0xff]
      %v3894 = vld [vmem:[#allocation6 + $0x60] sm:$0xff]
      %v3895 = vld [vmem:[#allocation6 + $0x70] sm:$0xff]
      %v3896 = vld [vmem:[#allocation5 + $0x1] sm:$0xff]
      %v3897 = vld [vmem:[#allocation5 + $0x11] sm:$0xff]
      %v3898 = vld [vmem:[#allocation5 + $0x21] sm:$0xff]
      %v3899 = vld [vmem:[#allocation5 + $0x31] sm:$0xff]
      %v3900 = vld [vmem:[#allocation5 + $0x41] sm:$0xff]
      %v3901 = vld [vmem:[#allocation5 + $0x51] sm:$0xff]
      %v3902 = vld [vmem:[#allocation5 + $0x61] sm:$0xff]
      %v3903 = vld [vmem:[#allocation5 + $0x71] sm:$0xff]
      %v3904 = vld [vmem:[#allocation6 + $0x1] sm:$0xff]
      %v3905 = vld [vmem:[#allocation6 + $0x11] sm:$0xff]
      %v3906 = vld [vmem:[#allocation6 + $0x21] sm:$0xff]
      %v3907 = vld [vmem:[#allocation6 + $0x31] sm:$0xff]
      %v3908 = vld [vmem:[#allocation6 + $0x41] sm:$0xff]
      %v3909 = vld [vmem:[#allocation6 + $0x51] sm:$0xff]
      %v3910 = vld [vmem:[#allocation6 + $0x61] sm:$0xff]
      %v3911 = vld [vmem:[#allocation6 + $0x71] sm:$0xff]
      %v3912 = vld [vmem:[%s3789] sm:$0xff]
      %v3913 = vld [vmem:[%s3789 + $0x10] sm:$0xff]
      %v3914 = vld [vmem:[%s3789 + $0x20] sm:$0xff]
      %v3915 = vld [vmem:[%s3789 + $0x30] sm:$0xff]
      %v3916 = vld [vmem:[%s3789 + $0x40] sm:$0xff]
      %v3917 = vld [vmem:[%s3789 + $0x50] sm:$0xff]
      %v3918 = vld [vmem:[%s3789 + $0x60] sm:$0xff]
      %v3919 = vld [vmem:[%s3789 + $0x70] sm:$0xff]
      %v3920 = vld [vmem:[%s3728 + $0x1] sm:$0xff]
      %v3921 = vld [vmem:[%s3728 + $0x11] sm:$0xff]
      %v3922 = vld [vmem:[%s3728 + $0x21] sm:$0xff]
      %v3923 = vld [vmem:[%s3728 + $0x31] sm:$0xff]
      %v3924 = vld [vmem:[%s3728 + $0x41] sm:$0xff]
      %v3925 = vld [vmem:[%s3728 + $0x51] sm:$0xff]
      %v3926 = vld [vmem:[%s3728 + $0x61] sm:$0xff]
      %v3927 = vld [vmem:[%s3728 + $0x71] sm:$0xff]
      %v3928 = vld [vmem:[%s3789 + $0x1] sm:$0xff]
      %v3929 = vld [vmem:[%s3789 + $0x11] sm:$0xff]
      %v3930 = vld [vmem:[%s3789 + $0x21] sm:$0xff]
      %v3931 = vld [vmem:[%s3789 + $0x31] sm:$0xff]
      %v3932 = vld [vmem:[%s3789 + $0x41] sm:$0xff]
      %v3933 = vld [vmem:[%s3789 + $0x51] sm:$0xff]
      %v3934 = vld [vmem:[%s3789 + $0x61] sm:$0xff]
      %v3935 = vld [vmem:[%s3789 + $0x71] sm:$0xff]
      %v3936 = vld [vmem:[%s3879] sm:$0xff]
      %v3937 = vld [vmem:[%s3879 + $0x10] sm:$0xff]
      %v3938 = vld [vmem:[%s3879 + $0x20] sm:$0xff]
      %v3939 = vld [vmem:[%s3879 + $0x30] sm:$0xff]
      %v3940 = vld [vmem:[%s3879 + $0x40] sm:$0xff]
      %v3941 = vld [vmem:[%s3879 + $0x50] sm:$0xff]
      %v3942 = vld [vmem:[%s3879 + $0x60] sm:$0xff]
      %v3943 = vld [vmem:[%s3879 + $0x70] sm:$0xff]
      %v3944 = vld [vmem:[%s3818 + $0x1] sm:$0xff]
      %v3945 = vld [vmem:[%s3818 + $0x11] sm:$0xff]
      %v3946 = vld [vmem:[%s3818 + $0x21] sm:$0xff]
      %v3947 = vld [vmem:[%s3818 + $0x31] sm:$0xff]
      %v3948 = vld [vmem:[%s3818 + $0x41] sm:$0xff]
      %v3949 = vld [vmem:[%s3818 + $0x51] sm:$0xff]
      %v3950 = vld [vmem:[%s3818 + $0x61] sm:$0xff]
      %v3951 = vld [vmem:[%s3818 + $0x71] sm:$0xff]
      %v3952 = vld [vmem:[%s3879 + $0x1] sm:$0xff]
      %v3953 = vld [vmem:[%s3879 + $0x11] sm:$0xff]
      %v3954 = vld [vmem:[%s3879 + $0x21] sm:$0xff]
      %v3955 = vld [vmem:[%s3879 + $0x31] sm:$0xff]
      %v3956 = vld [vmem:[%s3879 + $0x41] sm:$0xff]
      %v3957 = vld [vmem:[%s3879 + $0x51] sm:$0xff]
      %v3958 = vld [vmem:[%s3879 + $0x61] sm:$0xff]
      %v3959 = vld [vmem:[%s3879 + $0x71] sm:$0xff]
      %3968 = vrot.lane.b32.xlu0 %v3896, 64
      %v3969 = vpop.permute.xlu0 %3968
      %3970 = vrot.lane.b32.xlu0 %v3897, 64
      %v3971 = vpop.permute.xlu0 %3970
      %3972 = vrot.lane.b32.xlu0 %v3898, 64
      %v3973 = vpop.permute.xlu0 %3972
      %3974 = vrot.lane.b32.xlu0 %v3899, 64
      %v3975 = vpop.permute.xlu0 %3974
      %3976 = vrot.lane.b32.xlu0 %v3900, 64
      %v3977 = vpop.permute.xlu0 %3976
      %3978 = vrot.lane.b32.xlu0 %v3901, 64
      %v3979 = vpop.permute.xlu0 %3978
      %3980 = vrot.lane.b32.xlu0 %v3902, 64
      %v3981 = vpop.permute.xlu0 %3980
      %3982 = vrot.lane.b32.xlu0 %v3903, 64
      %v3983 = vpop.permute.xlu0 %3982
      %4000 = vrot.lane.b32.xlu0 %v3912, 64
      %v4001 = vpop.permute.xlu0 %4000
      %4002 = vrot.lane.b32.xlu0 %v3913, 64
      %v4003 = vpop.permute.xlu0 %4002
      %4004 = vrot.lane.b32.xlu0 %v3914, 64
      %v4005 = vpop.permute.xlu0 %4004
      %4006 = vrot.lane.b32.xlu0 %v3915, 64
      %v4007 = vpop.permute.xlu0 %4006
      %4008 = vrot.lane.b32.xlu0 %v3916, 64
      %v4009 = vpop.permute.xlu0 %4008
      %4010 = vrot.lane.b32.xlu0 %v3917, 64
      %v4011 = vpop.permute.xlu0 %4010
      %4012 = vrot.lane.b32.xlu0 %v3918, 64
      %v4013 = vpop.permute.xlu0 %4012
      %4014 = vrot.lane.b32.xlu0 %v3919, 64
      %v4015 = vpop.permute.xlu0 %4014
      %4032 = vrot.lane.b32.xlu0 %v3928, 64
      %v4033 = vpop.permute.xlu0 %4032
      %4034 = vrot.lane.b32.xlu0 %v3929, 64
      %v4035 = vpop.permute.xlu0 %4034
      %4036 = vrot.lane.b32.xlu0 %v3930, 64
      %v4037 = vpop.permute.xlu0 %4036
      %4038 = vrot.lane.b32.xlu0 %v3931, 64
      %v4039 = vpop.permute.xlu0 %4038
      %4040 = vrot.lane.b32.xlu0 %v3932, 64
      %v4041 = vpop.permute.xlu0 %4040
      %4042 = vrot.lane.b32.xlu0 %v3933, 64
      %v4043 = vpop.permute.xlu0 %4042
      %4044 = vrot.lane.b32.xlu0 %v3934, 64
      %v4045 = vpop.permute.xlu0 %4044
      %4046 = vrot.lane.b32.xlu0 %v3935, 64
      %v4047 = vpop.permute.xlu0 %4046
      %4064 = vrot.lane.b32.xlu0 %v3944, 64
      %v4065 = vpop.permute.xlu0 %4064
      %4066 = vrot.lane.b32.xlu0 %v3945, 64
      %v4067 = vpop.permute.xlu0 %4066
      %4068 = vrot.lane.b32.xlu0 %v3946, 64
      %v4069 = vpop.permute.xlu0 %4068
      %4070 = vrot.lane.b32.xlu0 %v3947, 64
      %v4071 = vpop.permute.xlu0 %4070
      %4072 = vrot.lane.b32.xlu0 %v3948, 64
      %v4073 = vpop.permute.xlu0 %4072
      %4074 = vrot.lane.b32.xlu0 %v3949, 64
      %v4075 = vpop.permute.xlu0 %4074
      %4076 = vrot.lane.b32.xlu0 %v3950, 64
      %v4077 = vpop.permute.xlu0 %4076
      %4078 = vrot.lane.b32.xlu0 %v3951, 64
      %v4079 = vpop.permute.xlu0 %4078
      %v4088 = vsel %vm3707, %v3888, %v3969
      %v4089 = vsel %vm3707, %v3889, %v3971
      %v4090 = vsel %vm3707, %v3890, %v3973
      %v4091 = vsel %vm3707, %v3891, %v3975
      %v4092 = vsel %vm3707, %v3892, %v3977
      %v4093 = vsel %vm3707, %v3893, %v3979
      %v4094 = vsel %vm3707, %v3894, %v3981
      %v4095 = vsel %vm3707, %v3895, %v3983
      %v4096 = vsel %vm3707, %v3904, %v4001
      %v4097 = vsel %vm3707, %v3905, %v4003
      %v4098 = vsel %vm3707, %v3906, %v4005
      %v4099 = vsel %vm3707, %v3907, %v4007
      %v4100 = vsel %vm3707, %v3908, %v4009
      %v4101 = vsel %vm3707, %v3909, %v4011
      %v4102 = vsel %vm3707, %v3910, %v4013
      %v4103 = vsel %vm3707, %v3911, %v4015
      %v4104 = vsel %vm3707, %v3920, %v4033
      %v4105 = vsel %vm3707, %v3921, %v4035
      %v4106 = vsel %vm3707, %v3922, %v4037
      %v4107 = vsel %vm3707, %v3923, %v4039
      %v4108 = vsel %vm3707, %v3924, %v4041
      %v4109 = vsel %vm3707, %v3925, %v4043
      %v4110 = vsel %vm3707, %v3926, %v4045
      %v4111 = vsel %vm3707, %v3927, %v4047
      %v4112 = vsel %vm3707, %v3936, %v4065
      %v4113 = vsel %vm3707, %v3937, %v4067
      %v4114 = vsel %vm3707, %v3938, %v4069
      %v4115 = vsel %vm3707, %v3939, %v4071
      %v4116 = vsel %vm3707, %v3940, %v4073
      %v4117 = vsel %vm3707, %v3941, %v4075
      %v4118 = vsel %vm3707, %v3942, %v4077
      %v4119 = vsel %vm3707, %v3943, %v4079
      %v4120 = vld [vmem:[#allocation5 + $0x2] sm:$0xff]
      %v4121 = vld [vmem:[#allocation5 + $0x12] sm:$0xff]
      %v4122 = vld [vmem:[#allocation5 + $0x22] sm:$0xff]
      %v4123 = vld [vmem:[#allocation5 + $0x32] sm:$0xff]
      %v4124 = vld [vmem:[#allocation5 + $0x42] sm:$0xff]
      %v4125 = vld [vmem:[#allocation5 + $0x52] sm:$0xff]
      %v4126 = vld [vmem:[#allocation5 + $0x62] sm:$0xff]
      %v4127 = vld [vmem:[#allocation5 + $0x72] sm:$0xff]
      %v4128 = vld [vmem:[%s3728 + $0x2] sm:$0xff]
      %v4129 = vld [vmem:[%s3728 + $0x12] sm:$0xff]
      %v4130 = vld [vmem:[%s3728 + $0x22] sm:$0xff]
      %v4131 = vld [vmem:[%s3728 + $0x32] sm:$0xff]
      %v4132 = vld [vmem:[%s3728 + $0x42] sm:$0xff]
      %v4133 = vld [vmem:[%s3728 + $0x52] sm:$0xff]
      %v4134 = vld [vmem:[%s3728 + $0x62] sm:$0xff]
      %v4135 = vld [vmem:[%s3728 + $0x72] sm:$0xff]
      %v4136 = vld [vmem:[%s3818 + $0x2] sm:$0xff]
      %v4137 = vld [vmem:[%s3818 + $0x12] sm:$0xff]
      %v4138 = vld [vmem:[%s3818 + $0x22] sm:$0xff]
      %v4139 = vld [vmem:[%s3818 + $0x32] sm:$0xff]
      %v4140 = vld [vmem:[%s3818 + $0x42] sm:$0xff]
      %v4141 = vld [vmem:[%s3818 + $0x52] sm:$0xff]
      %v4142 = vld [vmem:[%s3818 + $0x62] sm:$0xff]
      %v4143 = vld [vmem:[%s3818 + $0x72] sm:$0xff]
      %4152 = vrot.lane.b32.xlu0 %v3904, 64
      %v4153 = vpop.permute.xlu0 %4152
      %4154 = vrot.lane.b32.xlu0 %v3905, 64
      %v4155 = vpop.permute.xlu0 %4154
      %4156 = vrot.lane.b32.xlu0 %v3906, 64
      %v4157 = vpop.permute.xlu0 %4156
      %4158 = vrot.lane.b32.xlu0 %v3907, 64
      %v4159 = vpop.permute.xlu0 %4158
      %4160 = vrot.lane.b32.xlu0 %v3908, 64
      %v4161 = vpop.permute.xlu0 %4160
      %4162 = vrot.lane.b32.xlu0 %v3909, 64
      %v4163 = vpop.permute.xlu0 %4162
      %4164 = vrot.lane.b32.xlu0 %v3910, 64
      %v4165 = vpop.permute.xlu0 %4164
      %4166 = vrot.lane.b32.xlu0 %v3911, 64
      %v4167 = vpop.permute.xlu0 %4166
      %4184 = vrot.lane.b32.xlu0 %v3920, 64
      %v4185 = vpop.permute.xlu0 %4184
      %4186 = vrot.lane.b32.xlu0 %v3921, 64
      %v4187 = vpop.permute.xlu0 %4186
      %4188 = vrot.lane.b32.xlu0 %v3922, 64
      %v4189 = vpop.permute.xlu0 %4188
      %4190 = vrot.lane.b32.xlu0 %v3923, 64
      %v4191 = vpop.permute.xlu0 %4190
      %4192 = vrot.lane.b32.xlu0 %v3924, 64
      %v4193 = vpop.permute.xlu0 %4192
      %4194 = vrot.lane.b32.xlu0 %v3925, 64
      %v4195 = vpop.permute.xlu0 %4194
      %4196 = vrot.lane.b32.xlu0 %v3926, 64
      %v4197 = vpop.permute.xlu0 %4196
      %4198 = vrot.lane.b32.xlu0 %v3927, 64
      %v4199 = vpop.permute.xlu0 %4198
      %4216 = vrot.lane.b32.xlu0 %v4128, 64
      %v4217 = vpop.permute.xlu0 %4216
      %4218 = vrot.lane.b32.xlu0 %v4129, 64
      %v4219 = vpop.permute.xlu0 %4218
      %4220 = vrot.lane.b32.xlu0 %v4130, 64
      %v4221 = vpop.permute.xlu0 %4220
      %4222 = vrot.lane.b32.xlu0 %v4131, 64
      %v4223 = vpop.permute.xlu0 %4222
      %4224 = vrot.lane.b32.xlu0 %v4132, 64
      %v4225 = vpop.permute.xlu0 %4224
      %4226 = vrot.lane.b32.xlu0 %v4133, 64
      %v4227 = vpop.permute.xlu0 %4226
      %4228 = vrot.lane.b32.xlu0 %v4134, 64
      %v4229 = vpop.permute.xlu0 %4228
      %4230 = vrot.lane.b32.xlu0 %v4135, 64
      %v4231 = vpop.permute.xlu0 %4230
      %4248 = vrot.lane.b32.xlu0 %v3952, 64
      %v4249 = vpop.permute.xlu0 %4248
      %4250 = vrot.lane.b32.xlu0 %v3953, 64
      %v4251 = vpop.permute.xlu0 %4250
      %4252 = vrot.lane.b32.xlu0 %v3954, 64
      %v4253 = vpop.permute.xlu0 %4252
      %4254 = vrot.lane.b32.xlu0 %v3955, 64
      %v4255 = vpop.permute.xlu0 %4254
      %4256 = vrot.lane.b32.xlu0 %v3956, 64
      %v4257 = vpop.permute.xlu0 %4256
      %4258 = vrot.lane.b32.xlu0 %v3957, 64
      %v4259 = vpop.permute.xlu0 %4258
      %4260 = vrot.lane.b32.xlu0 %v3958, 64
      %v4261 = vpop.permute.xlu0 %4260
      %4262 = vrot.lane.b32.xlu0 %v3959, 64
      %v4263 = vpop.permute.xlu0 %4262
      %v4272 = vsel %vm3707, %v3896, %v4153
      %v4273 = vsel %vm3707, %v3897, %v4155
      %v4274 = vsel %vm3707, %v3898, %v4157
      %v4275 = vsel %vm3707, %v3899, %v4159
      %v4276 = vsel %vm3707, %v3900, %v4161
      %v4277 = vsel %vm3707, %v3901, %v4163
      %v4278 = vsel %vm3707, %v3902, %v4165
      %v4279 = vsel %vm3707, %v3903, %v4167
      %v4280 = vsel %vm3707, %v4120, %v4185
      %v4281 = vsel %vm3707, %v4121, %v4187
      %v4282 = vsel %vm3707, %v4122, %v4189
      %v4283 = vsel %vm3707, %v4123, %v4191
      %v4284 = vsel %vm3707, %v4124, %v4193
      %v4285 = vsel %vm3707, %v4125, %v4195
      %v4286 = vsel %vm3707, %v4126, %v4197
      %v4287 = vsel %vm3707, %v4127, %v4199
      %v4288 = vsel %vm3707, %v3928, %v4217
      %v4289 = vsel %vm3707, %v3929, %v4219
      %v4290 = vsel %vm3707, %v3930, %v4221
      %v4291 = vsel %vm3707, %v3931, %v4223
      %v4292 = vsel %vm3707, %v3932, %v4225
      %v4293 = vsel %vm3707, %v3933, %v4227
      %v4294 = vsel %vm3707, %v3934, %v4229
      %v4295 = vsel %vm3707, %v3935, %v4231
      %v4296 = vsel %vm3707, %v3944, %v4249
      %v4297 = vsel %vm3707, %v3945, %v4251
      %v4298 = vsel %vm3707, %v3946, %v4253
      %v4299 = vsel %vm3707, %v3947, %v4255
      %v4300 = vsel %vm3707, %v3948, %v4257
      %v4301 = vsel %vm3707, %v3949, %v4259
      %v4302 = vsel %vm3707, %v3950, %v4261
      %v4303 = vsel %vm3707, %v3951, %v4263
      %s4304 = scalar_lea.vmem [#allocation4], 32
      %v4305 = vld [vmem:[%s4304] sm:$0xff]
      %v4306 = vld [vmem:[%s4304 + $0x10] sm:$0xff]
      %v4307 = vld [vmem:[%s4304 + $0x20] sm:$0xff]
      %v4308 = vld [vmem:[%s4304 + $0x30] sm:$0xff]
      %v4309 = vld [vmem:[%s4304 + $0x40] sm:$0xff]
      %v4310 = vld [vmem:[%s4304 + $0x50] sm:$0xff]
      %v4311 = vld [vmem:[%s4304 + $0x60] sm:$0xff]
      %v4312 = vld [vmem:[%s4304 + $0x70] sm:$0xff]
      %s4313 = scalar_lea.vmem [#allocation3], 32
      %v4314 = vld [vmem:[%s4313 + $0x1] sm:$0xff]
      %v4315 = vld [vmem:[%s4313 + $0x11] sm:$0xff]
      %v4316 = vld [vmem:[%s4313 + $0x21] sm:$0xff]
      %v4317 = vld [vmem:[%s4313 + $0x31] sm:$0xff]
      %v4318 = vld [vmem:[%s4313 + $0x41] sm:$0xff]
      %v4319 = vld [vmem:[%s4313 + $0x51] sm:$0xff]
      %v4320 = vld [vmem:[%s4313 + $0x61] sm:$0xff]
      %v4321 = vld [vmem:[%s4313 + $0x71] sm:$0xff]
      %v4322 = vld [vmem:[%s4304 + $0x1] sm:$0xff]
      %v4323 = vld [vmem:[%s4304 + $0x11] sm:$0xff]
      %v4324 = vld [vmem:[%s4304 + $0x21] sm:$0xff]
      %v4325 = vld [vmem:[%s4304 + $0x31] sm:$0xff]
      %v4326 = vld [vmem:[%s4304 + $0x41] sm:$0xff]
      %v4327 = vld [vmem:[%s4304 + $0x51] sm:$0xff]
      %v4328 = vld [vmem:[%s4304 + $0x61] sm:$0xff]
      %v4329 = vld [vmem:[%s4304 + $0x71] sm:$0xff]
      %4338 = vrot.lane.b32.xlu0 %v3936, 64
      %v4339 = vpop.permute.xlu0 %4338
      %4340 = vrot.lane.b32.xlu0 %v3937, 64
      %v4341 = vpop.permute.xlu0 %4340
      %4342 = vrot.lane.b32.xlu0 %v3938, 64
      %v4343 = vpop.permute.xlu0 %4342
      %4344 = vrot.lane.b32.xlu0 %v3939, 64
      %v4345 = vpop.permute.xlu0 %4344
      %4346 = vrot.lane.b32.xlu0 %v3940, 64
      %v4347 = vpop.permute.xlu0 %4346
      %4348 = vrot.lane.b32.xlu0 %v3941, 64
      %v4349 = vpop.permute.xlu0 %4348
      %4350 = vrot.lane.b32.xlu0 %v3942, 64
      %v4351 = vpop.permute.xlu0 %4350
      %4352 = vrot.lane.b32.xlu0 %v3943, 64
      %v4353 = vpop.permute.xlu0 %4352
      %4370 = vrot.lane.b32.xlu0 %v4314, 64
      %v4371 = vpop.permute.xlu0 %4370
      %4372 = vrot.lane.b32.xlu0 %v4315, 64
      %v4373 = vpop.permute.xlu0 %4372
      %4374 = vrot.lane.b32.xlu0 %v4316, 64
      %v4375 = vpop.permute.xlu0 %4374
      %4376 = vrot.lane.b32.xlu0 %v4317, 64
      %v4377 = vpop.permute.xlu0 %4376
      %4378 = vrot.lane.b32.xlu0 %v4318, 64
      %v4379 = vpop.permute.xlu0 %4378
      %4380 = vrot.lane.b32.xlu0 %v4319, 64
      %v4381 = vpop.permute.xlu0 %4380
      %4382 = vrot.lane.b32.xlu0 %v4320, 64
      %v4383 = vpop.permute.xlu0 %4382
      %4384 = vrot.lane.b32.xlu0 %v4321, 64
      %v4385 = vpop.permute.xlu0 %4384
      %v4394 = vsel %vm3707, %v3912, %v4185
      %v4395 = vsel %vm3707, %v3913, %v4187
      %v4396 = vsel %vm3707, %v3914, %v4189
      %v4397 = vsel %vm3707, %v3915, %v4191
      %v4398 = vsel %vm3707, %v3916, %v4193
      %v4399 = vsel %vm3707, %v3917, %v4195
      %v4400 = vsel %vm3707, %v3918, %v4197
      %v4401 = vsel %vm3707, %v3919, %v4199
      %v4402 = vsel %vm3707, %v3928, %v4339
      %v4403 = vsel %vm3707, %v3929, %v4341
      %v4404 = vsel %vm3707, %v3930, %v4343
      %v4405 = vsel %vm3707, %v3931, %v4345
      %v4406 = vsel %vm3707, %v3932, %v4347
      %v4407 = vsel %vm3707, %v3933, %v4349
      %v4408 = vsel %vm3707, %v3934, %v4351
      %v4409 = vsel %vm3707, %v3935, %v4353
      %v4410 = vsel %vm3707, %v4305, %v4371
      %v4411 = vsel %vm3707, %v4306, %v4373
      %v4412 = vsel %vm3707, %v4307, %v4375
      %v4413 = vsel %vm3707, %v4308, %v4377
      %v4414 = vsel %vm3707, %v4309, %v4379
      %v4415 = vsel %vm3707, %v4310, %v4381
      %v4416 = vsel %vm3707, %v4311, %v4383
      %v4417 = vsel %vm3707, %v4312, %v4385
      %v4418 = vld [vmem:[%s4313 + $0x2] sm:$0xff]
      %v4419 = vld [vmem:[%s4313 + $0x12] sm:$0xff]
      %v4420 = vld [vmem:[%s4313 + $0x22] sm:$0xff]
      %v4421 = vld [vmem:[%s4313 + $0x32] sm:$0xff]
      %v4422 = vld [vmem:[%s4313 + $0x42] sm:$0xff]
      %v4423 = vld [vmem:[%s4313 + $0x52] sm:$0xff]
      %v4424 = vld [vmem:[%s4313 + $0x62] sm:$0xff]
      %v4425 = vld [vmem:[%s4313 + $0x72] sm:$0xff]
      %4434 = vrot.lane.b32.xlu0 %v4136, 64
      %v4435 = vpop.permute.xlu0 %4434
      %4436 = vrot.lane.b32.xlu0 %v4137, 64
      %v4437 = vpop.permute.xlu0 %4436
      %4438 = vrot.lane.b32.xlu0 %v4138, 64
      %v4439 = vpop.permute.xlu0 %4438
      %4440 = vrot.lane.b32.xlu0 %v4139, 64
      %v4441 = vpop.permute.xlu0 %4440
      %4442 = vrot.lane.b32.xlu0 %v4140, 64
      %v4443 = vpop.permute.xlu0 %4442
      %4444 = vrot.lane.b32.xlu0 %v4141, 64
      %v4445 = vpop.permute.xlu0 %4444
      %4446 = vrot.lane.b32.xlu0 %v4142, 64
      %v4447 = vpop.permute.xlu0 %4446
      %4448 = vrot.lane.b32.xlu0 %v4143, 64
      %v4449 = vpop.permute.xlu0 %4448
      %4466 = vrot.lane.b32.xlu0 %v4322, 64
      %v4467 = vpop.permute.xlu0 %4466
      %4468 = vrot.lane.b32.xlu0 %v4323, 64
      %v4469 = vpop.permute.xlu0 %4468
      %4470 = vrot.lane.b32.xlu0 %v4324, 64
      %v4471 = vpop.permute.xlu0 %4470
      %4472 = vrot.lane.b32.xlu0 %v4325, 64
      %v4473 = vpop.permute.xlu0 %4472
      %4474 = vrot.lane.b32.xlu0 %v4326, 64
      %v4475 = vpop.permute.xlu0 %4474
      %4476 = vrot.lane.b32.xlu0 %v4327, 64
      %v4477 = vpop.permute.xlu0 %4476
      %4478 = vrot.lane.b32.xlu0 %v4328, 64
      %v4479 = vpop.permute.xlu0 %4478
      %4480 = vrot.lane.b32.xlu0 %v4329, 64
      %v4481 = vpop.permute.xlu0 %4480
      %v4490 = vsel %vm3707, %v4128, %v4065
      %v4491 = vsel %vm3707, %v4129, %v4067
      %v4492 = vsel %vm3707, %v4130, %v4069
      %v4493 = vsel %vm3707, %v4131, %v4071
      %v4494 = vsel %vm3707, %v4132, %v4073
      %v4495 = vsel %vm3707, %v4133, %v4075
      %v4496 = vsel %vm3707, %v4134, %v4077
      %v4497 = vsel %vm3707, %v4135, %v4079
      %v4498 = vsel %vm3707, %v3952, %v4435
      %v4499 = vsel %vm3707, %v3953, %v4437
      %v4500 = vsel %vm3707, %v3954, %v4439
      %v4501 = vsel %vm3707, %v3955, %v4441
      %v4502 = vsel %vm3707, %v3956, %v4443
      %v4503 = vsel %vm3707, %v3957, %v4445
      %v4504 = vsel %vm3707, %v3958, %v4447
      %v4505 = vsel %vm3707, %v3959, %v4449
      %v4506 = vsel %vm3707, %v4314, %v4467
      %v4507 = vsel %vm3707, %v4315, %v4469
      %v4508 = vsel %vm3707, %v4316, %v4471
      %v4509 = vsel %vm3707, %v4317, %v4473
      %v4510 = vsel %vm3707, %v4318, %v4475
      %v4511 = vsel %vm3707, %v4319, %v4477
      %v4512 = vsel %vm3707, %v4320, %v4479
      %v4513 = vsel %vm3707, %v4321, %v4481
      %v4514 = vpack.c.bf16 %v4089, %v4088
      %v4515 = vpack.c.bf16 %v4097, %v4096
      %v4516 = vpack.c.bf16 %v4105, %v4104
      %v4517 = vpack.c.bf16 %v4113, %v4112
      %v4518 = vpack.c.bf16 %v3953, %v3952
      %v4519 = vpack.c.bf16 %v4091, %v4090
      %v4520 = vpack.c.bf16 %v4099, %v4098
      %v4521 = vpack.c.bf16 %v4107, %v4106
      %v4522 = vpack.c.bf16 %v4115, %v4114
      %v4523 = vpack.c.bf16 %v3955, %v3954
      %v4524 = vpack.c.bf16 %v4093, %v4092
      %v4525 = vpack.c.bf16 %v4101, %v4100
      %v4526 = vpack.c.bf16 %v4109, %v4108
      %v4527 = vpack.c.bf16 %v4117, %v4116
      %v4528 = vpack.c.bf16 %v3957, %v3956
      %v4529 = vpack.c.bf16 %v4095, %v4094
      %v4530 = vpack.c.bf16 %v4103, %v4102
      %v4531 = vpack.c.bf16 %v4111, %v4110
      %v4532 = vpack.c.bf16 %v4119, %v4118
      %v4533 = vpack.c.bf16 %v3959, %v3958
      %v4534 = vpack.c.bf16 %v4273, %v4272
      %v4535 = vpack.c.bf16 %v4281, %v4280
      %v4536 = vpack.c.bf16 %v4289, %v4288
      %v4537 = vpack.c.bf16 %v4297, %v4296
      %v4538 = vpack.c.bf16 %v4137, %v4136
      %v4539 = vpack.c.bf16 %v4275, %v4274
      %v4540 = vpack.c.bf16 %v4283, %v4282
      %v4541 = vpack.c.bf16 %v4291, %v4290
      %v4542 = vpack.c.bf16 %v4299, %v4298
      %v4543 = vpack.c.bf16 %v4139, %v4138
      %v4544 = vpack.c.bf16 %v4277, %v4276
      %v4545 = vpack.c.bf16 %v4285, %v4284
      %v4546 = vpack.c.bf16 %v4293, %v4292
      %v4547 = vpack.c.bf16 %v4301, %v4300
      %v4548 = vpack.c.bf16 %v4141, %v4140
      %v4549 = vpack.c.bf16 %v4279, %v4278
      %v4550 = vpack.c.bf16 %v4287, %v4286
      %v4551 = vpack.c.bf16 %v4295, %v4294
      %v4552 = vpack.c.bf16 %v4303, %v4302
      %v4553 = vpack.c.bf16 %v4143, %v4142
      %v4554 = vpack.c.bf16 %v4395, %v4394
      %v4555 = vpack.c.bf16 %v4403, %v4402
      %v4556 = vpack.c.bf16 %v4411, %v4410
      %v4557 = vpack.c.bf16 %v4323, %v4322
      %v4558 = vpack.c.bf16 %v4397, %v4396
      %v4559 = vpack.c.bf16 %v4405, %v4404
      %v4560 = vpack.c.bf16 %v4413, %v4412
      %v4561 = vpack.c.bf16 %v4325, %v4324
      %v4562 = vpack.c.bf16 %v4399, %v4398
      %v4563 = vpack.c.bf16 %v4407, %v4406
      %v4564 = vpack.c.bf16 %v4415, %v4414
      %v4565 = vpack.c.bf16 %v4327, %v4326
      %v4566 = vpack.c.bf16 %v4401, %v4400
      %v4567 = vpack.c.bf16 %v4409, %v4408
      %v4568 = vpack.c.bf16 %v4417, %v4416
      %v4569 = vpack.c.bf16 %v4329, %v4328
      %v4570 = vpack.c.bf16 %v4491, %v4490
      %v4571 = vpack.c.bf16 %v4499, %v4498
      %v4572 = vpack.c.bf16 %v4507, %v4506
      %v4573 = vpack.c.bf16 %v4419, %v4418
      %v4574 = vpack.c.bf16 %v4493, %v4492
      %v4575 = vpack.c.bf16 %v4501, %v4500
      %v4576 = vpack.c.bf16 %v4509, %v4508
      %v4577 = vpack.c.bf16 %v4421, %v4420
      %v4578 = vpack.c.bf16 %v4495, %v4494
      %v4579 = vpack.c.bf16 %v4503, %v4502
      %v4580 = vpack.c.bf16 %v4511, %v4510
      %v4581 = vpack.c.bf16 %v4423, %v4422
      %v4582 = vpack.c.bf16 %v4497, %v4496
      %v4583 = vpack.c.bf16 %v4505, %v4504
      %v4584 = vpack.c.bf16 %v4513, %v4512
      %v4585 = vpack.c.bf16 %v4425, %v4424
      %v4586 = vld [vmem:[%s3] sm:$0xf]
      %v4587 = vld [vmem:[%s3 + $0x4] sm:$0xf]
      %v4588 = vld [vmem:[%s3 + $0x8] sm:$0xf]
      %v4589 = vld [vmem:[%s3 + $0xc] sm:$0xf]
      %v4590 = vld [vmem:[%s3 + $0x10] sm:$0xf]
      %v4591 = vld [vmem:[%s3 + $0x14] sm:$0xf]
      %v4592 = vld [vmem:[%s3 + $0x18] sm:$0xf]
      %v4593 = vld [vmem:[%s3 + $0x1c] sm:$0xf]
      %v4594 = vld [vmem:[%s3 + $0x20] sm:$0xf]
      %v4595 = vld [vmem:[%s3 + $0x24] sm:$0xf]
      %v4596 = vld [vmem:[%s3 + $0x28] sm:$0xf]
      %v4597 = vld [vmem:[%s3 + $0x2c] sm:$0xf]
      %v4598 = vld [vmem:[%s3 + $0x30] sm:$0xf]
      %v4599 = vld [vmem:[%s3 + $0x34] sm:$0xf]
      %v4600 = vld [vmem:[%s3 + $0x38] sm:$0xf]
      %v4601 = vld [vmem:[%s3 + $0x3c] sm:$0xf]
      %v4602 = vld [vmem:[%s3 + $0x40] sm:$0xf]
      %v4603 = vld [vmem:[%s3 + $0x44] sm:$0xf]
      %v4604 = vld [vmem:[%s3 + $0x48] sm:$0xf]
      %v4605 = vld [vmem:[%s3 + $0x4c] sm:$0xf]
      %v4606 = vld [vmem:[%s3 + $0x50] sm:$0xf]
      %v4607 = vld [vmem:[%s3 + $0x54] sm:$0xf]
      %v4608 = vld [vmem:[%s3 + $0x58] sm:$0xf]
      %v4609 = vld [vmem:[%s3 + $0x5c] sm:$0xf]
      %v4610 = vld [vmem:[%s3 + $0x60] sm:$0xf]
      %v4611 = vld [vmem:[%s3 + $0x64] sm:$0xf]
      %v4612 = vld [vmem:[%s3 + $0x68] sm:$0xf]
      %v4613 = vld [vmem:[%s3 + $0x6c] sm:$0xf]
      %v4614 = vld [vmem:[%s3 + $0x70] sm:$0xf]
      %v4615 = vld [vmem:[%s3 + $0x74] sm:$0xf]
      %v4616 = vld [vmem:[%s3 + $0x78] sm:$0xf]
      %v4617 = vld [vmem:[%s3 + $0x7c] sm:$0xf]
      %v4618 = vld [vmem:[%s3 + $0x80] sm:$0xf]
      %v4619 = vld [vmem:[%s3 + $0x84] sm:$0xf]
      %v4620 = vld [vmem:[%s3 + $0x88] sm:$0xf]
      %v4621 = vld [vmem:[%s3 + $0x8c] sm:$0xf]
      %v4622 = vld [vmem:[%s3 + $0x90] sm:$0xf]
      %v4623 = vld [vmem:[%s3 + $0x94] sm:$0xf]
      %v4624 = vld [vmem:[%s3 + $0x98] sm:$0xf]
      %v4625 = vld [vmem:[%s3 + $0x9c] sm:$0xf]
      %v4626 = vld [vmem:[%s3 + $0xa0] sm:$0xf]
      %v4627 = vld [vmem:[%s3 + $0xa4] sm:$0xf]
      %v4628 = vld [vmem:[%s3 + $0xa8] sm:$0xf]
      %v4629 = vld [vmem:[%s3 + $0xac] sm:$0xf]
      %v4630 = vld [vmem:[%s3 + $0xb0] sm:$0xf]
      %v4631 = vld [vmem:[%s3 + $0xb4] sm:$0xf]
      %v4632 = vld [vmem:[%s3 + $0xb8] sm:$0xf]
      %v4633 = vld [vmem:[%s3 + $0xbc] sm:$0xf]
      %v4634 = vld [vmem:[%s3 + $0xc0] sm:$0xf]
      %v4635 = vld [vmem:[%s3 + $0xc4] sm:$0xf]
      %v4636 = vld [vmem:[%s3 + $0xc8] sm:$0xf]
      %v4637 = vld [vmem:[%s3 + $0xcc] sm:$0xf]
      %v4638 = vld [vmem:[%s3 + $0xd0] sm:$0xf]
      %v4639 = vld [vmem:[%s3 + $0xd4] sm:$0xf]
      %v4640 = vld [vmem:[%s3 + $0xd8] sm:$0xf]
      %v4641 = vld [vmem:[%s3 + $0xdc] sm:$0xf]
      %v4642 = vld [vmem:[%s3 + $0xe0] sm:$0xf]
      %v4643 = vld [vmem:[%s3 + $0xe4] sm:$0xf]
      %v4644 = vld [vmem:[%s3 + $0xe8] sm:$0xf]
      %v4645 = vld [vmem:[%s3 + $0xec] sm:$0xf]
      %v4646 = vld [vmem:[%s3 + $0xf0] sm:$0xf]
      %v4647 = vld [vmem:[%s3 + $0xf4] sm:$0xf]
      %v4648 = vld [vmem:[%s3 + $0xf8] sm:$0xf]
      %v4649 = vld [vmem:[%s3 + $0xfc] sm:$0xf]
      %v4650 = vld [vmem:[%s3 + $0x100] sm:$0xf]
      %v4651 = vld [vmem:[%s3 + $0x104] sm:$0xf]
      %v4652 = vld [vmem:[%s3 + $0x108] sm:$0xf]
      %v4653 = vld [vmem:[%s3 + $0x10c] sm:$0xf]
      %v4654 = vld [vmem:[%s3 + $0x110] sm:$0xf]
      %v4655 = vld [vmem:[%s3 + $0x114] sm:$0xf]
      %v4656 = vld [vmem:[%s3 + $0x118] sm:$0xf]
      %v4657 = vld [vmem:[%s3 + $0x11c] sm:$0xf]
      %v4658 = vld [vmem:[%s4] sm:$0x1]
      %v4660 = vlaneseq
      %v4661 = vshrl.u32 %v4660, 7
      %v4662 = vsub.s32 0, %v4661
      %v4663 = vrot.slane %v4658, %v4662
      %v4737 = vunpack.c.l.b16 %v4586
      %v4738 = vunpack.c.l.b16 %v4587
      %v4739 = vunpack.c.l.b16 %v4588
      %v4740 = vunpack.c.l.b16 %v4589
      %v4741 = vunpack.c.l.b16 %v4590
      %v4742 = vunpack.c.l.b16 %v4591
      %v4743 = vunpack.c.l.b16 %v4592
      %v4744 = vunpack.c.l.b16 %v4593
      %v4745 = vunpack.c.l.b16 %v4594
      %v4746 = vunpack.c.l.b16 %v4595
      %v4747 = vunpack.c.l.b16 %v4596
      %v4748 = vunpack.c.l.b16 %v4597
      %v4749 = vunpack.c.l.b16 %v4598
      %v4750 = vunpack.c.l.b16 %v4599
      %v4751 = vunpack.c.l.b16 %v4600
      %v4752 = vunpack.c.l.b16 %v4601
      %v4753 = vunpack.c.l.b16 %v4602
      %v4754 = vunpack.c.l.b16 %v4603
      %v4755 = vunpack.c.l.b16 %v4604
      %v4756 = vunpack.c.l.b16 %v4605
      %v4757 = vunpack.c.l.b16 %v4606
      %v4758 = vunpack.c.l.b16 %v4607
      %v4759 = vunpack.c.l.b16 %v4608
      %v4760 = vunpack.c.l.b16 %v4609
      %v4761 = vunpack.c.l.b16 %v4610
      %v4762 = vunpack.c.l.b16 %v4611
      %v4763 = vunpack.c.l.b16 %v4612
      %v4764 = vunpack.c.l.b16 %v4613
      %v4765 = vunpack.c.l.b16 %v4614
      %v4766 = vunpack.c.l.b16 %v4615
      %v4767 = vunpack.c.l.b16 %v4616
      %v4768 = vunpack.c.l.b16 %v4617
      %v4769 = vunpack.c.l.b16 %v4618
      %v4770 = vunpack.c.l.b16 %v4619
      %v4771 = vunpack.c.l.b16 %v4620
      %v4772 = vunpack.c.l.b16 %v4621
      %v4773 = vunpack.c.l.b16 %v4622
      %v4774 = vunpack.c.l.b16 %v4623
      %v4775 = vunpack.c.l.b16 %v4624
      %v4776 = vunpack.c.l.b16 %v4625
      %v4777 = vunpack.c.l.b16 %v4626
      %v4778 = vunpack.c.l.b16 %v4627
      %v4779 = vunpack.c.l.b16 %v4628
      %v4780 = vunpack.c.l.b16 %v4629
      %v4781 = vunpack.c.l.b16 %v4630
      %v4782 = vunpack.c.l.b16 %v4631
      %v4783 = vunpack.c.l.b16 %v4632
      %v4784 = vunpack.c.l.b16 %v4633
      %v4785 = vunpack.c.l.b16 %v4634
      %v4786 = vunpack.c.l.b16 %v4635
      %v4787 = vunpack.c.l.b16 %v4636
      %v4788 = vunpack.c.l.b16 %v4637
      %v4789 = vunpack.c.l.b16 %v4638
      %v4790 = vunpack.c.l.b16 %v4639
      %v4791 = vunpack.c.l.b16 %v4640
      %v4792 = vunpack.c.l.b16 %v4641
      %v4793 = vunpack.c.l.b16 %v4642
      %v4794 = vunpack.c.l.b16 %v4643
      %v4795 = vunpack.c.l.b16 %v4644
      %v4796 = vunpack.c.l.b16 %v4645
      %v4797 = vunpack.c.l.b16 %v4646
      %v4798 = vunpack.c.l.b16 %v4647
      %v4799 = vunpack.c.l.b16 %v4648
      %v4800 = vunpack.c.l.b16 %v4649
      %v4801 = vunpack.c.l.b16 %v4650
      %v4802 = vunpack.c.l.b16 %v4651
      %v4803 = vunpack.c.l.b16 %v4652
      %v4804 = vunpack.c.l.b16 %v4653
      %v4805 = vunpack.c.l.b16 %v4654
      %v4806 = vunpack.c.l.b16 %v4655
      %v4807 = vunpack.c.l.b16 %v4656
      %v4808 = vunpack.c.l.b16 %v4657
      %v4809 = vpack.c.b16 %v4738, %v4737
      %v4810 = vpack.c.b16 %v4740, %v4739
      %v4811 = vpack.c.b16 %v4742, %v4741
      %v4812 = vpack.c.b16 %v4744, %v4743
      %v4813 = vpack.c.b16 %v4746, %v4745
      %v4814 = vpack.c.b16 %v4748, %v4747
      %v4815 = vpack.c.b16 %v4750, %v4749
      %v4816 = vpack.c.b16 %v4752, %v4751
      %v4817 = vpack.c.b16 %v4754, %v4753
      %v4818 = vpack.c.b16 %v4756, %v4755
      %v4819 = vpack.c.b16 %v4758, %v4757
      %v4820 = vpack.c.b16 %v4760, %v4759
      %v4821 = vpack.c.b16 %v4762, %v4761
      %v4822 = vpack.c.b16 %v4764, %v4763
      %v4823 = vpack.c.b16 %v4766, %v4765
      %v4824 = vpack.c.b16 %v4768, %v4767
      %v4825 = vpack.c.b16 %v4770, %v4769
      %v4826 = vpack.c.b16 %v4772, %v4771
      %v4827 = vpack.c.b16 %v4774, %v4773
      %v4828 = vpack.c.b16 %v4776, %v4775
      %v4829 = vpack.c.b16 %v4778, %v4777
      %v4830 = vpack.c.b16 %v4780, %v4779
      %v4831 = vpack.c.b16 %v4782, %v4781
      %v4832 = vpack.c.b16 %v4784, %v4783
      %v4833 = vpack.c.b16 %v4786, %v4785
      %v4834 = vpack.c.b16 %v4788, %v4787
      %v4835 = vpack.c.b16 %v4790, %v4789
      %v4836 = vpack.c.b16 %v4792, %v4791
      %v4837 = vpack.c.b16 %v4794, %v4793
      %v4838 = vpack.c.b16 %v4796, %v4795
      %v4839 = vpack.c.b16 %v4798, %v4797
      %v4840 = vpack.c.b16 %v4800, %v4799
      %v4841 = vpack.c.b16 %v4802, %v4801
      %v4842 = vpack.c.b16 %v4804, %v4803
      %v4843 = vpack.c.b16 %v4806, %v4805
      %v4844 = vpack.c.b16 %v4808, %v4807
      %v4882 = vsel %vm3707, %v4518, 0
      %v4885 = vsel %vm3707, %v4523, 0
      %v4888 = vsel %vm3707, %v4528, 0
      %v4891 = vsel %vm3707, %v4533, 0
      %v4894 = vsel %vm3707, %v4538, 0
      %v4897 = vsel %vm3707, %v4543, 0
      %v4900 = vsel %vm3707, %v4548, 0
      %v4903 = vsel %vm3707, %v4553, 0
      %v4906 = vsel %vm3707, %v4557, 0
      %v4909 = vsel %vm3707, %v4561, 0
      %v4912 = vsel %vm3707, %v4565, 0
      %v4915 = vsel %vm3707, %v4569, 0
      %v4918 = vsel %vm3707, %v4573, 0
      %v4921 = vsel %vm3707, %v4577, 0
      %v4924 = vsel %vm3707, %v4581, 0
      %v4927 = vsel %vm3707, %v4585, 0
      %4929 = vmatprep.subr.bf16.mxu0 0
      %4930 = vmatpush1.bf16.msra.mxu0 %v4816
      %4931 = vmatprep.subr.bf16.mxu0 0
      %4932 = vmatpush1.bf16.msra.mxu0 %v4815
      %4933 = vmatprep.subr.bf16.mxu0 0
      %4934 = vmatpush1.bf16.msra.mxu0 %v4814
      %4935 = vmatprep.subr.bf16.mxu0 0
      %4936 = vmatpush1.bf16.msra.mxu0 %v4813
      %4937 = vmatprep.subr.bf16.mxu0 0
      %4938 = vmatpush1.bf16.msra.mxu0 %v4812
      %4939 = vmatprep.subr.bf16.mxu0 0
      %4940 = vmatpush1.bf16.msra.mxu0 %v4811
      %4941 = vmatprep.subr.bf16.mxu0 0
      %4942 = vmatpush1.bf16.msra.mxu0 %v4810
      %4943 = vmatprep.subr.bf16.mxu0 0
      %4944 = vmatpush1.bf16.msra.mxu0 %v4809
      %4945 = vmatprep.subr.bf16.mxu0 0
      %4946 = vmatpush2.bf16.msra.mxu0 %v4824
      %4947 = vmatprep.subr.bf16.mxu0 0
      %4948 = vmatpush2.bf16.msra.mxu0 %v4823
      %4949 = vmatprep.subr.bf16.mxu0 0
      %4950 = vmatpush2.bf16.msra.mxu0 %v4822
      %4951 = vmatprep.subr.bf16.mxu0 0
      %4952 = vmatpush2.bf16.msra.mxu0 %v4821
      %4953 = vmatprep.subr.bf16.mxu0 0
      %4954 = vmatpush2.bf16.msra.mxu0 %v4820
      %4955 = vmatprep.subr.bf16.mxu0 0
      %4956 = vmatpush2.bf16.msra.mxu0 %v4819
      %4957 = vmatprep.subr.bf16.mxu0 0
      %4958 = vmatpush2.bf16.msra.mxu0 %v4818
      %4959 = vmatprep.subr.bf16.mxu0 0
      %4960 = vmatpush2.bf16.msra.mxu0 %v4817
      %4961 = vmatprep.mubr.bf16.mxu0 %v4515
      %4962 = vmatmul.mubr.bf16.gmra.mxu0 %v4514
      %v4963 = vpop.f32.mrf.mxu0
      %v4964 = vadd.f32 %v4663, %v4963
      %v4965 = vpop.f32.mrf.mxu0
      %v4966 = vpop.f32.mrf.mxu0
      %v4967 = vadd.f32 %v4663, %v4966
      %v4968 = vpop.f32.mrf.mxu0
      %4969 = vmatprep.mubr.bf16.mxu0 %v4520
      %4970 = vmatmul.mubr.bf16.gmra.mxu0 %v4519
      %v4971 = vpop.f32.mrf.mxu0
      %v4972 = vadd.f32 %v4663, %v4971
      %v4973 = vpop.f32.mrf.mxu0
      %v4974 = vpop.f32.mrf.mxu0
      %v4975 = vadd.f32 %v4663, %v4974
      %v4976 = vpop.f32.mrf.mxu0
      %4977 = vmatprep.mubr.bf16.mxu0 %v4525
      %4978 = vmatmul.mubr.bf16.gmra.mxu0 %v4524
      %v4979 = vpop.f32.mrf.mxu0
      %v4980 = vadd.f32 %v4663, %v4979
      %v4981 = vpop.f32.mrf.mxu0
      %v4982 = vpop.f32.mrf.mxu0
      %v4983 = vadd.f32 %v4663, %v4982
      %v4984 = vpop.f32.mrf.mxu0
      %4985 = vmatprep.mubr.bf16.mxu0 %v4530
      %4986 = vmatmul.mubr.bf16.gmra.mxu0 %v4529
      %v4987 = vpop.f32.mrf.mxu0
      %v4988 = vadd.f32 %v4663, %v4987
      %v4989 = vpop.f32.mrf.mxu0
      %v4990 = vpop.f32.mrf.mxu0
      %v4991 = vadd.f32 %v4663, %v4990
      %v4992 = vpop.f32.mrf.mxu0
      %4993 = vmatprep.mubr.bf16.mxu0 %v4535
      %4994 = vmatmul.mubr.bf16.gmra.mxu0 %v4534
      %v4995 = vpop.f32.mrf.mxu0
      %v4996 = vadd.f32 %v4663, %v4995
      %v4997 = vpop.f32.mrf.mxu0
      %v4998 = vpop.f32.mrf.mxu0
      %v4999 = vadd.f32 %v4663, %v4998
      %v5000 = vpop.f32.mrf.mxu0
      %5001 = vmatprep.mubr.bf16.mxu0 %v4540
      %5002 = vmatmul.mubr.bf16.gmra.mxu0 %v4539
      %v5003 = vpop.f32.mrf.mxu0
      %v5004 = vadd.f32 %v4663, %v5003
      %v5005 = vpop.f32.mrf.mxu0
      %v5006 = vpop.f32.mrf.mxu0
      %v5007 = vadd.f32 %v4663, %v5006
      %v5008 = vpop.f32.mrf.mxu0
      %5009 = vmatprep.mubr.bf16.mxu0 %v4545
      %5010 = vmatmul.mubr.bf16.gmra.mxu0 %v4544
      %v5011 = vpop.f32.mrf.mxu0
      %v5012 = vadd.f32 %v4663, %v5011
      %v5013 = vpop.f32.mrf.mxu0
      %v5014 = vpop.f32.mrf.mxu0
      %v5015 = vadd.f32 %v4663, %v5014
      %v5016 = vpop.f32.mrf.mxu0
      %5017 = vmatprep.mubr.bf16.mxu0 %v4550
      %5018 = vmatmul.mubr.bf16.gmra.mxu0 %v4549
      %v5019 = vpop.f32.mrf.mxu0
      %v5020 = vadd.f32 %v4663, %v5019
      %v5021 = vpop.f32.mrf.mxu0
      %v5022 = vpop.f32.mrf.mxu0
      %v5023 = vadd.f32 %v4663, %v5022
      %v5024 = vpop.f32.mrf.mxu0
      %5025 = vmatprep.mubr.bf16.mxu0 %v4555
      %5026 = vmatmul.mubr.bf16.gmra.mxu0 %v4554
      %v5027 = vpop.f32.mrf.mxu0
      %v5028 = vadd.f32 %v4663, %v5027
      %v5029 = vpop.f32.mrf.mxu0
      %v5030 = vpop.f32.mrf.mxu0
      %v5031 = vadd.f32 %v4663, %v5030
      %v5032 = vpop.f32.mrf.mxu0
      %5033 = vmatprep.mubr.bf16.mxu0 %v4559
      %5034 = vmatmul.mubr.bf16.gmra.mxu0 %v4558
      %v5035 = vpop.f32.mrf.mxu0
      %v5036 = vadd.f32 %v4663, %v5035
      %v5037 = vpop.f32.mrf.mxu0
      %v5038 = vpop.f32.mrf.mxu0
      %v5039 = vadd.f32 %v4663, %v5038
      %v5040 = vpop.f32.mrf.mxu0
      %5041 = vmatprep.mubr.bf16.mxu0 %v4563
      %5042 = vmatmul.mubr.bf16.gmra.mxu0 %v4562
      %v5043 = vpop.f32.mrf.mxu0
      %v5044 = vadd.f32 %v4663, %v5043
      %v5045 = vpop.f32.mrf.mxu0
      %v5046 = vpop.f32.mrf.mxu0
      %v5047 = vadd.f32 %v4663, %v5046
      %v5048 = vpop.f32.mrf.mxu0
      %5049 = vmatprep.mubr.bf16.mxu0 %v4567
      %5050 = vmatmul.mubr.bf16.gmra.mxu0 %v4566
      %v5051 = vpop.f32.mrf.mxu0
      %v5052 = vadd.f32 %v4663, %v5051
      %v5053 = vpop.f32.mrf.mxu0
      %v5054 = vpop.f32.mrf.mxu0
      %v5055 = vadd.f32 %v4663, %v5054
      %v5056 = vpop.f32.mrf.mxu0
      %5057 = vmatprep.mubr.bf16.mxu0 %v4570
      %5058 = vmatmul.mubr.bf16.gmra.mxu0 %v4516
      %v5059 = vpop.f32.mrf.mxu0
      %v5060 = vadd.f32 %v4663, %v5059
      %v5061 = vpop.f32.mrf.mxu0
      %v5062 = vpop.f32.mrf.mxu0
      %v5063 = vadd.f32 %v4663, %v5062
      %v5064 = vpop.f32.mrf.mxu0
      %5065 = vmatprep.mubr.bf16.mxu0 %v4574
      %5066 = vmatmul.mubr.bf16.gmra.mxu0 %v4521
      %v5067 = vpop.f32.mrf.mxu0
      %v5068 = vadd.f32 %v4663, %v5067
      %v5069 = vpop.f32.mrf.mxu0
      %v5070 = vpop.f32.mrf.mxu0
      %v5071 = vadd.f32 %v4663, %v5070
      %v5072 = vpop.f32.mrf.mxu0
      %5073 = vmatprep.mubr.bf16.mxu0 %v4578
      %5074 = vmatmul.mubr.bf16.gmra.mxu0 %v4526
      %v5075 = vpop.f32.mrf.mxu0
      %v5076 = vadd.f32 %v4663, %v5075
      %v5077 = vpop.f32.mrf.mxu0
      %v5078 = vpop.f32.mrf.mxu0
      %v5079 = vadd.f32 %v4663, %v5078
      %v5080 = vpop.f32.mrf.mxu0
      %5081 = vmatprep.mubr.bf16.mxu0 %v4582
      %5082 = vmatmul.mubr.bf16.gmra.mxu0 %v4531
      %v5083 = vpop.f32.mrf.mxu0
      %v5084 = vadd.f32 %v4663, %v5083
      %v5085 = vpop.f32.mrf.mxu0
      %v5086 = vpop.f32.mrf.mxu0
      %v5087 = vadd.f32 %v4663, %v5086
      %v5088 = vpop.f32.mrf.mxu0
      %5089 = vdwg.mxu0
      %5090 = vmatprep.subr.bf16.mxu0 0
      %5091 = vmatpush1.bf16.msra.mxu0 %v4832
      %5092 = vmatprep.subr.bf16.mxu0 0
      %5093 = vmatpush1.bf16.msra.mxu0 %v4831
      %5094 = vmatprep.subr.bf16.mxu0 0
      %5095 = vmatpush1.bf16.msra.mxu0 %v4830
      %5096 = vmatprep.subr.bf16.mxu0 0
      %5097 = vmatpush1.bf16.msra.mxu0 %v4829
      %5098 = vmatprep.subr.bf16.mxu0 0
      %5099 = vmatpush1.bf16.msra.mxu0 %v4828
      %5100 = vmatprep.subr.bf16.mxu0 0
      %5101 = vmatpush1.bf16.msra.mxu0 %v4827
      %5102 = vmatprep.subr.bf16.mxu0 0
      %5103 = vmatpush1.bf16.msra.mxu0 %v4826
      %5104 = vmatprep.subr.bf16.mxu0 0
      %5105 = vmatpush1.bf16.msra.mxu0 %v4825
      %5106 = vmatprep.subr.bf16.mxu0 0
      %5107 = vmatpush2.bf16.msra.mxu0 %v4840
      %5108 = vmatprep.subr.bf16.mxu0 0
      %5109 = vmatpush2.bf16.msra.mxu0 %v4839
      %5110 = vmatprep.subr.bf16.mxu0 0
      %5111 = vmatpush2.bf16.msra.mxu0 %v4838
      %5112 = vmatprep.subr.bf16.mxu0 0
      %5113 = vmatpush2.bf16.msra.mxu0 %v4837
      %5114 = vmatprep.subr.bf16.mxu0 0
      %5115 = vmatpush2.bf16.msra.mxu0 %v4836
      %5116 = vmatprep.subr.bf16.mxu0 0
      %5117 = vmatpush2.bf16.msra.mxu0 %v4835
      %5118 = vmatprep.subr.bf16.mxu0 0
      %5119 = vmatpush2.bf16.msra.mxu0 %v4834
      %5120 = vmatprep.subr.bf16.mxu0 0
      %5121 = vmatpush2.bf16.msra.mxu0 %v4833
      %5122 = vmatprep.mubr.bf16.mxu0 %v4517
      %5123 = vmatmul.mubr.bf16.gmra.mxu0 %v4516
      %v5124 = vpop.f32.mrf.mxu0
      %v5125 = vadd.f32 %v4964, %v5124
      %v5126 = vpop.f32.mrf.mxu0
      %v5127 = vpop.f32.mrf.mxu0
      %v5128 = vadd.f32 %v4967, %v5127
      %v5129 = vpop.f32.mrf.mxu0
      %5130 = vmatprep.mubr.bf16.mxu0 %v4522
      %5131 = vmatmul.mubr.bf16.gmra.mxu0 %v4521
      %v5132 = vpop.f32.mrf.mxu0
      %v5133 = vadd.f32 %v4972, %v5132
      %v5134 = vpop.f32.mrf.mxu0
      %v5135 = vpop.f32.mrf.mxu0
      %v5136 = vadd.f32 %v4975, %v5135
      %v5137 = vpop.f32.mrf.mxu0
      %5138 = vmatprep.mubr.bf16.mxu0 %v4527
      %5139 = vmatmul.mubr.bf16.gmra.mxu0 %v4526
      %v5140 = vpop.f32.mrf.mxu0
      %v5141 = vadd.f32 %v4980, %v5140
      %v5142 = vpop.f32.mrf.mxu0
      %v5143 = vpop.f32.mrf.mxu0
      %v5144 = vadd.f32 %v4983, %v5143
      %v5145 = vpop.f32.mrf.mxu0
      %5146 = vmatprep.mubr.bf16.mxu0 %v4532
      %5147 = vmatmul.mubr.bf16.gmra.mxu0 %v4531
      %v5148 = vpop.f32.mrf.mxu0
      %v5149 = vadd.f32 %v4988, %v5148
      %v5150 = vpop.f32.mrf.mxu0
      %v5151 = vpop.f32.mrf.mxu0
      %v5152 = vadd.f32 %v4991, %v5151
      %v5153 = vpop.f32.mrf.mxu0
      %5154 = vmatprep.mubr.bf16.mxu0 %v4537
      %5155 = vmatmul.mubr.bf16.gmra.mxu0 %v4536
      %v5156 = vpop.f32.mrf.mxu0
      %v5157 = vadd.f32 %v4996, %v5156
      %v5158 = vpop.f32.mrf.mxu0
      %v5159 = vpop.f32.mrf.mxu0
      %v5160 = vadd.f32 %v4999, %v5159
      %v5161 = vpop.f32.mrf.mxu0
      %5162 = vmatprep.mubr.bf16.mxu0 %v4542
      %5163 = vmatmul.mubr.bf16.gmra.mxu0 %v4541
      %v5164 = vpop.f32.mrf.mxu0
      %v5165 = vadd.f32 %v5004, %v5164
      %v5166 = vpop.f32.mrf.mxu0
      %v5167 = vpop.f32.mrf.mxu0
      %v5168 = vadd.f32 %v5007, %v5167
      %v5169 = vpop.f32.mrf.mxu0
      %5170 = vmatprep.mubr.bf16.mxu0 %v4547
      %5171 = vmatmul.mubr.bf16.gmra.mxu0 %v4546
      %v5172 = vpop.f32.mrf.mxu0
      %v5173 = vadd.f32 %v5012, %v5172
      %v5174 = vpop.f32.mrf.mxu0
      %v5175 = vpop.f32.mrf.mxu0
      %v5176 = vadd.f32 %v5015, %v5175
      %v5177 = vpop.f32.mrf.mxu0
      %5178 = vmatprep.mubr.bf16.mxu0 %v4552
      %5179 = vmatmul.mubr.bf16.gmra.mxu0 %v4551
      %v5180 = vpop.f32.mrf.mxu0
      %v5181 = vadd.f32 %v5020, %v5180
      %v5182 = vpop.f32.mrf.mxu0
      %v5183 = vpop.f32.mrf.mxu0
      %v5184 = vadd.f32 %v5023, %v5183
      %v5185 = vpop.f32.mrf.mxu0
      %5186 = vmatprep.mubr.bf16.mxu0 %v4556
      %5187 = vmatmul.mubr.bf16.gmra.mxu0 %v4537
      %v5188 = vpop.f32.mrf.mxu0
      %v5189 = vadd.f32 %v5028, %v5188
      %v5190 = vpop.f32.mrf.mxu0
      %v5191 = vpop.f32.mrf.mxu0
      %v5192 = vadd.f32 %v5031, %v5191
      %v5193 = vpop.f32.mrf.mxu0
      %5194 = vmatprep.mubr.bf16.mxu0 %v4560
      %5195 = vmatmul.mubr.bf16.gmra.mxu0 %v4542
      %v5196 = vpop.f32.mrf.mxu0
      %v5197 = vadd.f32 %v5036, %v5196
      %v5198 = vpop.f32.mrf.mxu0
      %v5199 = vpop.f32.mrf.mxu0
      %v5200 = vadd.f32 %v5039, %v5199
      %v5201 = vpop.f32.mrf.mxu0
      %5202 = vmatprep.mubr.bf16.mxu0 %v4564
      %5203 = vmatmul.mubr.bf16.gmra.mxu0 %v4547
      %v5204 = vpop.f32.mrf.mxu0
      %v5205 = vadd.f32 %v5044, %v5204
      %v5206 = vpop.f32.mrf.mxu0
      %v5207 = vpop.f32.mrf.mxu0
      %v5208 = vadd.f32 %v5047, %v5207
      %v5209 = vpop.f32.mrf.mxu0
      %5210 = vmatprep.mubr.bf16.mxu0 %v4568
      %5211 = vmatmul.mubr.bf16.gmra.mxu0 %v4552
      %v5212 = vpop.f32.mrf.mxu0
      %v5213 = vadd.f32 %v5052, %v5212
      %v5214 = vpop.f32.mrf.mxu0
      %v5215 = vpop.f32.mrf.mxu0
      %v5216 = vadd.f32 %v5055, %v5215
      %v5217 = vpop.f32.mrf.mxu0
      %5218 = vmatprep.mubr.bf16.mxu0 %v4572
      %5219 = vmatmul.mubr.bf16.gmra.mxu0 %v4571
      %v5220 = vpop.f32.mrf.mxu0
      %v5221 = vadd.f32 %v5060, %v5220
      %v5222 = vpop.f32.mrf.mxu0
      %v5223 = vpop.f32.mrf.mxu0
      %v5224 = vadd.f32 %v5063, %v5223
      %v5225 = vpop.f32.mrf.mxu0
      %5226 = vmatprep.mubr.bf16.mxu0 %v4576
      %5227 = vmatmul.mubr.bf16.gmra.mxu0 %v4575
      %v5228 = vpop.f32.mrf.mxu0
      %v5229 = vadd.f32 %v5068, %v5228
      %v5230 = vpop.f32.mrf.mxu0
      %v5231 = vpop.f32.mrf.mxu0
      %v5232 = vadd.f32 %v5071, %v5231
      %v5233 = vpop.f32.mrf.mxu0
      %5234 = vmatprep.mubr.bf16.mxu0 %v4580
      %5235 = vmatmul.mubr.bf16.gmra.mxu0 %v4579
      %v5236 = vpop.f32.mrf.mxu0
      %v5237 = vadd.f32 %v5076, %v5236
      %v5238 = vpop.f32.mrf.mxu0
      %v5239 = vpop.f32.mrf.mxu0
      %v5240 = vadd.f32 %v5079, %v5239
      %v5241 = vpop.f32.mrf.mxu0
      %5242 = vmatprep.mubr.bf16.mxu0 %v4584
      %5243 = vmatmul.mubr.bf16.gmra.mxu0 %v4583
      %v5244 = vpop.f32.mrf.mxu0
      %v5245 = vadd.f32 %v5084, %v5244
      %v5246 = vpop.f32.mrf.mxu0
      %v5247 = vpop.f32.mrf.mxu0
      %v5248 = vadd.f32 %v5087, %v5247
      %v5249 = vpop.f32.mrf.mxu0
      %5250 = vdwg.mxu0
      %5251 = vmatprep.subr.bf16.mxu0 0
      %5252 = vmatpush1.bf16.msra.mxu0 0
      %5253 = vmatprep.subr.bf16.mxu0 0
      %5254 = vmatpush1.bf16.msra.mxu0 0
      %5255 = vmatprep.subr.bf16.mxu0 0
      %5256 = vmatpush1.bf16.msra.mxu0 0
      %5257 = vmatprep.subr.bf16.mxu0 0
      %5258 = vmatpush1.bf16.msra.mxu0 0
      %5259 = vmatprep.subr.bf16.mxu0 0
      %5260 = vmatpush1.bf16.msra.mxu0 %v4844
      %5261 = vmatprep.subr.bf16.mxu0 0
      %5262 = vmatpush1.bf16.msra.mxu0 %v4843
      %5263 = vmatprep.subr.bf16.mxu0 0
      %5264 = vmatpush1.bf16.msra.mxu0 %v4842
      %5265 = vmatprep.subr.bf16.mxu0 0
      %5266 = vmatpush1.bf16.msra.mxu0 %v4841
      %5267 = vmatprep.subr.bf16.mxu0 0
      %5268 = vmatpush2.bf16.msra.mxu0 0
      %5269 = vmatprep.subr.bf16.mxu0 0
      %5270 = vmatpush2.bf16.msra.mxu0 0
      %5271 = vmatprep.subr.bf16.mxu0 0
      %5272 = vmatpush2.bf16.msra.mxu0 0
      %5273 = vmatprep.subr.bf16.mxu0 0
      %5274 = vmatpush2.bf16.msra.mxu0 0
      %5275 = vmatprep.subr.bf16.mxu0 0
      %5276 = vmatpush2.bf16.msra.mxu0 0
      %5277 = vmatprep.subr.bf16.mxu0 0
      %5278 = vmatpush2.bf16.msra.mxu0 0
      %5279 = vmatprep.subr.bf16.mxu0 0
      %5280 = vmatpush2.bf16.msra.mxu0 0
      %5281 = vmatprep.subr.bf16.mxu0 0
      %5282 = vmatpush2.bf16.msra.mxu0 0
      %5283 = vmatprep.mubr.bf16.mxu0 0
      %5284 = vmatmul.mubr.bf16.gmra.mxu0 %v4882
      %v5285 = vpop.f32.mrf.mxu0
      %v5286 = vadd.f32 %v5125, %v5285
      %v5287 = vpop.f32.mrf.mxu0
      %v5288 = vpop.f32.mrf.mxu0
      %v5289 = vadd.f32 %v5128, %v5288
      %v5290 = vpop.f32.mrf.mxu0
      %5291 = vmatprep.mubr.bf16.mxu0 0
      %5292 = vmatmul.mubr.bf16.gmra.mxu0 %v4885
      %v5293 = vpop.f32.mrf.mxu0
      %v5294 = vadd.f32 %v5133, %v5293
      %v5295 = vpop.f32.mrf.mxu0
      %v5296 = vpop.f32.mrf.mxu0
      %v5297 = vadd.f32 %v5136, %v5296
      %v5298 = vpop.f32.mrf.mxu0
      %5299 = vmatprep.mubr.bf16.mxu0 0
      %5300 = vmatmul.mubr.bf16.gmra.mxu0 %v4888
      %v5301 = vpop.f32.mrf.mxu0
      %v5302 = vadd.f32 %v5141, %v5301
      %v5303 = vpop.f32.mrf.mxu0
      %v5304 = vpop.f32.mrf.mxu0
      %v5305 = vadd.f32 %v5144, %v5304
      %v5306 = vpop.f32.mrf.mxu0
      %5307 = vmatprep.mubr.bf16.mxu0 0
      %5308 = vmatmul.mubr.bf16.gmra.mxu0 %v4891
      %v5309 = vpop.f32.mrf.mxu0
      %v5310 = vadd.f32 %v5149, %v5309
      %v5311 = vpop.f32.mrf.mxu0
      %v5312 = vpop.f32.mrf.mxu0
      %v5313 = vadd.f32 %v5152, %v5312
      %v5314 = vpop.f32.mrf.mxu0
      %5315 = vmatprep.mubr.bf16.mxu0 0
      %5316 = vmatmul.mubr.bf16.gmra.mxu0 %v4894
      %v5317 = vpop.f32.mrf.mxu0
      %v5318 = vadd.f32 %v5157, %v5317
      %v5319 = vpop.f32.mrf.mxu0
      %v5320 = vpop.f32.mrf.mxu0
      %v5321 = vadd.f32 %v5160, %v5320
      %v5322 = vpop.f32.mrf.mxu0
      %5323 = vmatprep.mubr.bf16.mxu0 0
      %5324 = vmatmul.mubr.bf16.gmra.mxu0 %v4897
      %v5325 = vpop.f32.mrf.mxu0
      %v5326 = vadd.f32 %v5165, %v5325
      %v5327 = vpop.f32.mrf.mxu0
      %v5328 = vpop.f32.mrf.mxu0
      %v5329 = vadd.f32 %v5168, %v5328
      %v5330 = vpop.f32.mrf.mxu0
      %5331 = vmatprep.mubr.bf16.mxu0 0
      %5332 = vmatmul.mubr.bf16.gmra.mxu0 %v4900
      %v5333 = vpop.f32.mrf.mxu0
      %v5334 = vadd.f32 %v5173, %v5333
      %v5335 = vpop.f32.mrf.mxu0
      %v5336 = vpop.f32.mrf.mxu0
      %v5337 = vadd.f32 %v5176, %v5336
      %v5338 = vpop.f32.mrf.mxu0
      %5339 = vmatprep.mubr.bf16.mxu0 0
      %5340 = vmatmul.mubr.bf16.gmra.mxu0 %v4903
      %v5341 = vpop.f32.mrf.mxu0
      %v5342 = vadd.f32 %v5181, %v5341
      %v5343 = vpop.f32.mrf.mxu0
      %v5344 = vpop.f32.mrf.mxu0
      %v5345 = vadd.f32 %v5184, %v5344
      %v5346 = vpop.f32.mrf.mxu0
      %5347 = vmatprep.mubr.bf16.mxu0 0
      %5348 = vmatmul.mubr.bf16.gmra.mxu0 %v4906
      %v5349 = vpop.f32.mrf.mxu0
      %v5350 = vadd.f32 %v5189, %v5349
      %v5351 = vpop.f32.mrf.mxu0
      %v5352 = vpop.f32.mrf.mxu0
      %v5353 = vadd.f32 %v5192, %v5352
      %v5354 = vpop.f32.mrf.mxu0
      %5355 = vmatprep.mubr.bf16.mxu0 0
      %5356 = vmatmul.mubr.bf16.gmra.mxu0 %v4909
      %v5357 = vpop.f32.mrf.mxu0
      %v5358 = vadd.f32 %v5197, %v5357
      %v5359 = vpop.f32.mrf.mxu0
      %v5360 = vpop.f32.mrf.mxu0
      %v5361 = vadd.f32 %v5200, %v5360
      %v5362 = vpop.f32.mrf.mxu0
      %5363 = vmatprep.mubr.bf16.mxu0 0
      %5364 = vmatmul.mubr.bf16.gmra.mxu0 %v4912
      %v5365 = vpop.f32.mrf.mxu0
      %v5366 = vadd.f32 %v5205, %v5365
      %v5367 = vpop.f32.mrf.mxu0
      %v5368 = vpop.f32.mrf.mxu0
      %v5369 = vadd.f32 %v5208, %v5368
      %v5370 = vpop.f32.mrf.mxu0
      %5371 = vmatprep.mubr.bf16.mxu0 0
      %5372 = vmatmul.mubr.bf16.gmra.mxu0 %v4915
      %v5373 = vpop.f32.mrf.mxu0
      %v5374 = vadd.f32 %v5213, %v5373
      %v5375 = vpop.f32.mrf.mxu0
      %v5376 = vpop.f32.mrf.mxu0
      %v5377 = vadd.f32 %v5216, %v5376
      %v5378 = vpop.f32.mrf.mxu0
      %5379 = vmatprep.mubr.bf16.mxu0 0
      %5380 = vmatmul.mubr.bf16.gmra.mxu0 %v4918
      %v5381 = vpop.f32.mrf.mxu0
      %v5382 = vadd.f32 %v5221, %v5381
      %v5383 = vpop.f32.mrf.mxu0
      %v5384 = vpop.f32.mrf.mxu0
      %v5385 = vadd.f32 %v5224, %v5384
      %v5386 = vpop.f32.mrf.mxu0
      %5387 = vmatprep.mubr.bf16.mxu0 0
      %5388 = vmatmul.mubr.bf16.gmra.mxu0 %v4921
      %v5389 = vpop.f32.mrf.mxu0
      %v5390 = vadd.f32 %v5229, %v5389
      %v5391 = vpop.f32.mrf.mxu0
      %v5392 = vpop.f32.mrf.mxu0
      %v5393 = vadd.f32 %v5232, %v5392
      %v5394 = vpop.f32.mrf.mxu0
      %5395 = vmatprep.mubr.bf16.mxu0 0
      %5396 = vmatmul.mubr.bf16.gmra.mxu0 %v4924
      %v5397 = vpop.f32.mrf.mxu0
      %v5398 = vadd.f32 %v5237, %v5397
      %v5399 = vpop.f32.mrf.mxu0
      %v5400 = vpop.f32.mrf.mxu0
      %v5401 = vadd.f32 %v5240, %v5400
      %v5402 = vpop.f32.mrf.mxu0
      %5403 = vmatprep.mubr.bf16.mxu0 0
      %5404 = vmatmul.mubr.bf16.gmra.mxu0 %v4927
      %v5405 = vpop.f32.mrf.mxu0
      %v5406 = vadd.f32 %v5245, %v5405
      %v5407 = vpop.f32.mrf.mxu0
      %v5408 = vpop.f32.mrf.mxu0
      %v5409 = vadd.f32 %v5248, %v5408
      %v5410 = vpop.f32.mrf.mxu0
      %5411 = vdwg.mxu0
      %5420 = vrot.lane.b32.xlu0 %v5318, 64
      %v5421 = vpop.permute.xlu0 %5420
      %5422 = vrot.lane.b32.xlu0 %v5321, 64
      %v5423 = vpop.permute.xlu0 %5422
      %5424 = vrot.lane.b32.xlu0 %v5326, 64
      %v5425 = vpop.permute.xlu0 %5424
      %5426 = vrot.lane.b32.xlu0 %v5329, 64
      %v5427 = vpop.permute.xlu0 %5426
      %5428 = vrot.lane.b32.xlu0 %v5334, 64
      %v5429 = vpop.permute.xlu0 %5428
      %5430 = vrot.lane.b32.xlu0 %v5337, 64
      %v5431 = vpop.permute.xlu0 %5430
      %5432 = vrot.lane.b32.xlu0 %v5342, 64
      %v5433 = vpop.permute.xlu0 %5432
      %5434 = vrot.lane.b32.xlu0 %v5345, 64
      %v5435 = vpop.permute.xlu0 %5434
      %5452 = vrot.lane.b32.xlu0 %v5382, 64
      %v5453 = vpop.permute.xlu0 %5452
      %5454 = vrot.lane.b32.xlu0 %v5385, 64
      %v5455 = vpop.permute.xlu0 %5454
      %5456 = vrot.lane.b32.xlu0 %v5390, 64
      %v5457 = vpop.permute.xlu0 %5456
      %5458 = vrot.lane.b32.xlu0 %v5393, 64
      %v5459 = vpop.permute.xlu0 %5458
      %5460 = vrot.lane.b32.xlu0 %v5398, 64
      %v5461 = vpop.permute.xlu0 %5460
      %5462 = vrot.lane.b32.xlu0 %v5401, 64
      %v5463 = vpop.permute.xlu0 %5462
      %5464 = vrot.lane.b32.xlu0 %v5406, 64
      %v5465 = vpop.permute.xlu0 %5464
      %5466 = vrot.lane.b32.xlu0 %v5409, 64
      %v5467 = vpop.permute.xlu0 %5466
      %v5476 = vsel %vm3707, %v5286, %v5421
      %v5477 = vsel %vm3707, %v5289, %v5423
      %v5478 = vsel %vm3707, %v5294, %v5425
      %v5479 = vsel %vm3707, %v5297, %v5427
      %v5480 = vsel %vm3707, %v5302, %v5429
      %v5481 = vsel %vm3707, %v5305, %v5431
      %v5482 = vsel %vm3707, %v5310, %v5433
      %v5483 = vsel %vm3707, %v5313, %v5435
      %v5484 = vsel %vm3707, %v5350, %v5453
      %v5485 = vsel %vm3707, %v5353, %v5455
      %v5486 = vsel %vm3707, %v5358, %v5457
      %v5487 = vsel %vm3707, %v5361, %v5459
      %v5488 = vsel %vm3707, %v5366, %v5461
      %v5489 = vsel %vm3707, %v5369, %v5463
      %v5490 = vsel %vm3707, %v5374, %v5465
      %v5491 = vsel %vm3707, %v5377, %v5467
      %5492 = vst [vmem:[%s264] sm:$0xff] %v5476
      %5493 = vst [vmem:[%s264 + $0x8] sm:$0xff] %v5484
      %5494 = vst [vmem:[%s264 + $0x10] sm:$0xff] %v5477
      %5495 = vst [vmem:[%s264 + $0x18] sm:$0xff] %v5485
      %5496 = vst [vmem:[%s264 + $0x20] sm:$0xff] %v5478
      %5497 = vst [vmem:[%s264 + $0x28] sm:$0xff] %v5486
      %5498 = vst [vmem:[%s264 + $0x30] sm:$0xff] %v5479
      %5499 = vst [vmem:[%s264 + $0x38] sm:$0xff] %v5487
      %5500 = vst [vmem:[%s264 + $0x40] sm:$0xff] %v5480
      %5501 = vst [vmem:[%s264 + $0x48] sm:$0xff] %v5488
      %5502 = vst [vmem:[%s264 + $0x50] sm:$0xff] %v5481
      %5503 = vst [vmem:[%s264 + $0x58] sm:$0xff] %v5489
      %5504 = vst [vmem:[%s264 + $0x60] sm:$0xff] %v5482
      %5505 = vst [vmem:[%s264 + $0x68] sm:$0xff] %v5490
      %5506 = vst [vmem:[%s264 + $0x70] sm:$0xff] %v5483
      %5507 = vst [vmem:[%s264 + $0x78] sm:$0xff] %v5491
      %p5508 = scmp.lt.s32.totalorder %s18, 1
      %s5509 = scalar_select %p5508, %s18, 1
      %s5510 = smul.addr %s5509, 16
      %s5511 = smul.addr %s5510, 8
      %s5512 = scalar_lea.vmem %s5, %s5511
      %p5513 = scmp.lt.s32.totalorder %s18, 1
      %s5514 = scalar_select %p5513, %s18, 1
      %s5515 = smul.addr %s5514, 16
      %s5516 = smul.addr %s5515, 8
      %s5517 = scalar_lea.vmem %s6, %s5516
      // Predicated region
      $region41: #{first_layer_4.1} parent=39 // pred_check
        %p5518 = pneg %p146
      $region42: #{first_layer_4.1} parent=39 // pred_check_branch
        %5520 = sbr.rel (%p5518) target = $region44
      $region43: #{first_layer_4.1} parent=39 // pred_region
        _
      $region44: #{first_layer_4.1} parent=39 // pred_fallthru
        _
      // Predicated region
      $region45: #{first_layer_4.1} parent=39 // pred_check
        %p5521 = pneg %p172
      $region46: #{first_layer_4.1} parent=39 // pred_check_branch
        %5523 = sbr.rel (%p5521) target = $region48
      $region47: #{first_layer_4.1} parent=39 // pred_region
        _
      $region48: #{first_layer_4.1} parent=39 // pred_fallthru
        _
    $region40: #{first_layer_4.1} parent=5 // pred_fallthru
      _
    %p5524 = scmp.le.s32.totalorder 2, %s13
    // Predicated region
    $region49: #{first_layer_4.1} parent=5 // pred_check
      %p5525 = pneg %p5524
    $region50: #{first_layer_4.1} parent=5 // pred_check_branch
      %5527 = sbr.rel (%p5525) target = $region52
    $region51: #{first_layer_4.1} parent=5 // pred_region
      %s5528 = ssub.s32 %s13, 2
      // Predicated region
      $region53: #{first_layer_4.1} parent=51 // pred_check
        %p5529 = pneg %p152
      $region54: #{first_layer_4.1} parent=51 // pred_check_branch
        %5531 = sbr.rel (%p5529) target = $region56
      $region55: #{first_layer_4.1} parent=51 // pred_region
        %p5532 = scmp.lt.s32.totalorder %s19, 1
        %s5533 = scalar_select %p5532, %s19, 1
        %s5534 = smul.addr %s5533, 16
        %s5535 = smul.addr %s5534, 8
        %s5536 = scalar_lea.vmem %s5, %s5535
      $region56: #{first_layer_4.1} parent=51 // pred_fallthru
        _
      // Predicated region
      $region57: #{first_layer_4.1} parent=51 // pred_check
        %p5537 = pneg %p178
      $region58: #{first_layer_4.1} parent=51 // pred_check_branch
        %5539 = sbr.rel (%p5537) target = $region60
      $region59: #{first_layer_4.1} parent=51 // pred_region
        %p5540 = scmp.lt.s32.totalorder %s19, 1
        %s5541 = scalar_select %p5540, %s19, 1
        %s5542 = smul.addr %s5541, 16
        %s5543 = smul.addr %s5542, 8
        %s5544 = scalar_lea.vmem %s6, %s5543
      $region60: #{first_layer_4.1} parent=51 // pred_fallthru
        _
    $region52: #{first_layer_4.1} parent=5 // pred_fallthru
      _
  $region6: #{first_layer_4.1} parent=0 // loop_footer
    %s17 = sadd.s32 1, %s13
  $region7: #{first_layer_4.1} parent=0 // loop_footer_branch
    %12 = sbr.rel target = $region3
  $region8: #{first_layer_4.1} parent=0 // loop_exit
    _

</llo_original>
